<compile_context>
chip_gen: v7x
topology: tpu7x:2x2x1
jax: 0.10.0
libtpu: 0.0.40
codegen_flags: <defaults>
</compile_context>

<pallas_src>
import functools
import math

import jax
import jax.numpy as jnp
from jax import lax
from jax.experimental import pallas as pl
from jax.experimental.pallas import tpu as pltpu

# ----------------------------- config (small) -----------------------------
B = 2            # batch
S = 8            # sequence length
H = 32           # hidden size (768 in the real model)
N_HEADS = 4
HEAD_DIM = H // N_HEADS
FF = 64          # intermediate size
N_LAYERS = 2
VOCAB = 50
TYPE_VOCAB = 2
MAX_POS = 16
LN_EPS = 1e-12
F32 = jnp.float32
BF16 = jnp.bfloat16

_VMEM = pl.BlockSpec(memory_space=pltpu.MemorySpace.VMEM)


# ----------------------------- in-kernel helpers -----------------------------
def _layernorm(x, g, b):
    """LayerNorm over last dim; x:[M,H] f32, g,b:[1,H] f32."""
    mu = jnp.mean(x, axis=-1, keepdims=True)
    var = jnp.mean(jnp.square(x - mu), axis=-1, keepdims=True)
    return (x - mu) * lax.rsqrt(var + LN_EPS) * g + b


def _gelu(x):
    """tanh-approximate GELU (EUP-friendly), f32 in / f32 out."""
    c = jnp.float32(0.7978845608028654)   # sqrt(2/pi)
    return 0.5 * x * (1.0 + jnp.tanh(c * (x + 0.044715 * x * x * x)))


# ----------------------------- fused encoder kernel -----------------------------
def _encoder_kernel(emb_ref, mask_ref, eg_ref, eb_ref,
                    qkvw_ref, qkvb_ref, aow_ref, aob_ref,
                    ln1g_ref, ln1b_ref,
                    iw_ref, ib_ref, ow_ref, ob_ref,
                    ln2g_ref, ln2b_ref,
                    pw_ref, pb_ref,
                    pooled_ref):
    """One grid step == one BERT tower: emb-LN -> N_LAYERS transformer layers -> pooler.

    Blocks (leading tower dim = 1):
      emb:[1,B*S,H] f32   mask:[1,B,1,S] i32   weights: stacked per tower, bf16 matmuls
      pooled out:[1,B,H] f32
    """
    x = emb_ref[0].astype(F32)                                   # [B*S, H]
    x = _layernorm(x, eg_ref[0], eb_ref[0])

    # additive attention mask built in-kernel from the int attention_mask
    mask_add = (1.0 - mask_ref[0].astype(F32)) * -10000.0        # [B, 1, S]

    scale = 1.0 / math.sqrt(HEAD_DIM)
    for li in range(N_LAYERS):
        # ---- fused QKV projection: single MXU push, lane-dense 3H output ----
        qkv = (jnp.dot(x.astype(BF16), qkvw_ref[0, li],
                       preferred_element_type=F32) + qkvb_ref[0, li])     # [B*S, 3H]

        # ---- per-head attention via static lane slices (batched over B) ----
        ctx_heads = []
        for h in range(N_HEADS):
            lo = h * HEAD_DIM
            q = qkv[:, lo:lo + HEAD_DIM].reshape(B, S, HEAD_DIM)
            k = qkv[:, H + lo:H + lo + HEAD_DIM].reshape(B, S, HEAD_DIM)
            v = qkv[:, 2 * H + lo:2 * H + lo + HEAD_DIM].reshape(B, S, HEAD_DIM)

            s = jnp.einsum("bqd,bkd->bqk", q.astype(BF16), k.astype(BF16),
                           preferred_element_type=F32)                    # [B, S, S]
            s = s * scale + mask_add
            s = s - jnp.max(s, axis=-1, keepdims=True)
            p = jnp.exp(s)
            p = p * pl.reciprocal(jnp.sum(p, axis=-1, keepdims=True), approx=True)

            ctx = jnp.einsum("bqk,bkd->bqd", p.astype(BF16), v.astype(BF16),
                             preferred_element_type=F32)                  # [B, S, hd]
            ctx_heads.append(ctx.reshape(B * S, HEAD_DIM))
        ctx = jnp.concatenate(ctx_heads, axis=-1)                         # [B*S, H]

        # ---- attention output projection + residual LayerNorm ----
        att = (jnp.dot(ctx.astype(BF16), aow_ref[0, li],
                       preferred_element_type=F32) + aob_ref[0, li])
        x = _layernorm(att + x, ln1g_ref[0, li], ln1b_ref[0, li])

        # ---- FFN (GELU) + residual LayerNorm ----
        ff = (jnp.dot(x.astype(BF16), iw_ref[0, li],
                      preferred_element_type=F32) + ib_ref[0, li])
        ff = _gelu(ff)
        ffo = (jnp.dot(ff.astype(BF16), ow_ref[0, li],
                       preferred_element_type=F32) + ob_ref[0, li])
        x = _layernorm(ffo + x, ln2g_ref[0, li], ln2b_ref[0, li])

    # ---- pooler: pick CLS rows via a one-hot selection matmul (layout-safe) ----
    rows = lax.broadcasted_iota(jnp.int32, (B, B * S), 1)
    cls_rows = lax.broadcasted_iota(jnp.int32, (B, B * S), 0) * S
    sel = (rows == cls_rows).astype(F32)                                  # [B, B*S]
    cls = jnp.dot(sel, x, preferred_element_type=F32)                     # [B, H]
    pooled = jnp.tanh(jnp.dot(cls.astype(BF16), pw_ref[0],
                              preferred_element_type=F32) + pb_ref[0])    # [B, H]
    pooled_ref[0] = pooled.astype(pooled_ref.dtype)


def _tower_spec(arr):
    """BlockSpec selecting one tower (leading axis) per grid step."""
    zeros = (0,) * (arr.ndim - 1)
    return pl.BlockSpec((1,) + tuple(arr.shape[1:]), lambda t: (t,) + zeros)


def encoder_pair(emb2, mask2, W):
    """Run both BERT towers; grid=(2,) over the tower index ('parallel' => 2 TCs on v7x)."""
    inputs = [emb2, mask2,
              W["emb_ln_g"], W["emb_ln_b"],
              W["qkv_w"], W["qkv_b"], W["ao_w"], W["ao_b"],
              W["ln1_g"], W["ln1_b"],
              W["i_w"], W["i_b"], W["o_w"], W["o_b"],
              W["ln2_g"], W["ln2_b"],
              W["pool_w"], W["pool_b"]]
    return pl.pallas_call(
        _encoder_kernel,
        out_shape=jax.ShapeDtypeStruct((2, B, H), F32),
        grid=(2,),
        in_specs=[_tower_spec(a) for a in inputs],
        out_specs=pl.BlockSpec((1, B, H), lambda t: (t, 0, 0)),
        compiler_params=pltpu.CompilerParams(dimension_semantics=("parallel",)),
    )(*inputs)


# ----------------------------- head kernel (concat + Linear + ReLU) -----------------------------
def _head_kernel(pooled_ref, w_ref, b_ref, cat_ref, score_ref):
    """pooled:[2,B,H] -> cat:[B,2H], score:[B,1] = ReLU(cat @ w + b)."""
    cat = jnp.concatenate([pooled_ref[0], pooled_ref[1]], axis=-1)        # [B, 2H]
    cat_ref[...] = cat.astype(cat_ref.dtype)
    s = jnp.dot(cat.astype(BF16), w_ref[...], preferred_element_type=F32) + b_ref[...]
    score_ref[...] = jnp.maximum(s, 0.0).astype(score_ref.dtype)


def head(pooled2, lin_w, lin_b):
    return pl.pallas_call(
        _head_kernel,
        out_shape=(jax.ShapeDtypeStruct((B, 2 * H), F32),
                   jax.ShapeDtypeStruct((B, 1), F32)),
        in_specs=[_VMEM, _VMEM, _VMEM],
        out_specs=(_VMEM, _VMEM),
    )(pooled2, lin_w, lin_b)


# ----------------------------- parameter init -----------------------------
def _normal(key, shape, scale=0.02):
    return (scale * jax.random.normal(key, shape)).astype(F32)


def init_bert_params(key):
    keys = jax.random.split(key, 8 + N_LAYERS)
    p = {
        "word_emb": _normal(keys[0], (VOCAB, H)),
        "pos_emb": _normal(keys[1], (MAX_POS, H)),
        "type_emb": _normal(keys[2], (TYPE_VOCAB, H)),
        "emb_ln_g": jnp.ones((H,), F32),
        "emb_ln_b": jnp.zeros((H,), F32),
        "pool_w": _normal(keys[3], (H, H)),
        "pool_b": jnp.zeros((H,), F32),
        "layers": [],
    }
    for li in range(N_LAYERS):
        lk = jax.random.split(keys[8 + li], 6)
        p["layers"].append({
            "q_w": _normal(lk[0], (H, H)), "q_b": jnp.zeros((H,), F32),
            "k_w": _normal(lk[1], (H, H)), "k_b": jnp.zeros((H,), F32),
            "v_w": _normal(lk[2], (H, H)), "v_b": jnp.zeros((H,), F32),
            "ao_w": _normal(lk[3], (H, H)), "ao_b": jnp.zeros((H,), F32),
            "ln1_g": jnp.ones((H,), F32), "ln1_b": jnp.zeros((H,), F32),
            "i_w": _normal(lk[4], (H, FF)), "i_b": jnp.zeros((FF,), F32),
            "o_w": _normal(lk[5], (FF, H)), "o_b": jnp.zeros((H,), F32),
            "ln2_g": jnp.ones((H,), F32), "ln2_b": jnp.zeros((H,), F32),
        })
    return p


def init_monobert_params(key):
    kt, ka, kl = jax.random.split(key, 3)
    return {
        "bert_t": init_bert_params(kt),
        "bert_a": init_bert_params(ka),
        "lin_w": _normal(kl, (2 * H, 1)),
        "lin_b": jnp.zeros((1,), F32),
    }


# ----------------------------- weight packing (kernel layout) -----------------------------
def _pack_tower(bp):
    Ls = bp["layers"]
    return {
        "emb_ln_g": bp["emb_ln_g"].reshape(1, H),
        "emb_ln_b": bp["emb_ln_b"].reshape(1, H),
        # fused QKV weight [L, H, 3H] (bf16 for the MXU) and bias [L, 1, 3H]
        "qkv_w": jnp.stack([jnp.concatenate([l["q_w"], l["k_w"], l["v_w"]], axis=1)
                            for l in Ls]).astype(BF16),
        "qkv_b": jnp.stack([jnp.concatenate([l["q_b"], l["k_b"], l["v_b"]],
                                            axis=0).reshape(1, 3 * H) for l in Ls]),
        "ao_w": jnp.stack([l["ao_w"] for l in Ls]).astype(BF16),
        "ao_b": jnp.stack([l["ao_b"].reshape(1, H) for l in Ls]),
        "ln1_g": jnp.stack([l["ln1_g"].reshape(1, H) for l in Ls]),
        "ln1_b": jnp.stack([l["ln1_b"].reshape(1, H) for l in Ls]),
        "i_w": jnp.stack([l["i_w"] for l in Ls]).astype(BF16),
        "i_b": jnp.stack([l["i_b"].reshape(1, FF) for l in Ls]),
        "o_w": jnp.stack([l["o_w"] for l in Ls]).astype(BF16),
        "o_b": jnp.stack([l["o_b"].reshape(1, H) for l in Ls]),
        "ln2_g": jnp.stack([l["ln2_g"].reshape(1, H) for l in Ls]),
        "ln2_b": jnp.stack([l["ln2_b"].reshape(1, H) for l in Ls]),
        "pool_w": bp["pool_w"].astype(BF16),
        "pool_b": bp["pool_b"].reshape(1, H),
    }


def pack_params(params):
    t = _pack_tower(params["bert_t"])
    a = _pack_tower(params["bert_a"])
    W = {k: jnp.stack([t[k], a[k]], axis=0) for k in t}   # leading tower axis of size 2
    W["lin_w"] = params["lin_w"].astype(BF16)             # [2H, 1]
    W["lin_b"] = params["lin_b"].reshape(1, 1)
    return W


# ----------------------------- model forward -----------------------------
def _embed(input_ids, token_type_ids, bp):
    # embedding gather is glue (plain JAX); everything downstream runs inside Pallas
    pos_ids = jnp.arange(S)
    emb = (bp["word_emb"][input_ids]
           + bp["pos_emb"][pos_ids][None, :, :]
           + bp["type_emb"][token_type_ids])               # [B, S, H]
    return emb.reshape(B * S, H).astype(F32)


def monobert_forward(params, t_input_ids, t_attention_mask, t_token_type_ids,
                     a_input_ids, a_attention_mask, a_token_type_ids):
    W = pack_params(params)
    emb2 = jnp.stack([_embed(t_input_ids, t_token_type_ids, params["bert_t"]),
                      _embed(a_input_ids, a_token_type_ids, params["bert_a"])],
                     axis=0)                                               # [2, B*S, H]
    mask2 = jnp.stack([t_attention_mask, a_attention_mask],
                      axis=0).astype(jnp.int32)[:, :, None, :]             # [2, B, 1, S]

    pooled2 = encoder_pair(emb2, mask2, W)                                 # [2, B, H]
    pooled_cat, score2 = head(pooled2, W["lin_w"], W["lin_b"])             # [B,2H], [B,1]
    return pooled_cat, score2[:, 0]


# ----------------------------- main -----------------------------
if __name__ == "__main__":
    key = jax.random.PRNGKey(0)
    kp, k1, k2 = jax.random.split(key, 3)
    params = init_monobert_params(kp)

    t_input_ids = jax.random.randint(k1, (B, S), 0, VOCAB, dtype=jnp.int32)
    a_input_ids = jax.random.randint(k2, (B, S), 0, VOCAB, dtype=jnp.int32)
    t_attention_mask = jnp.ones((B, S), jnp.int32)
    a_attention_mask = jnp.ones((B, S), jnp.int32)
    t_token_type_ids = jnp.zeros((B, S), jnp.int32)
    a_token_type_ids = jnp.zeros((B, S), jnp.int32)

    fwd = jax.jit(monobert_forward)
    pooled, score = fwd(params, t_input_ids, t_attention_mask, t_token_type_ids,
                        a_input_ids, a_attention_mask, a_token_type_ids)
    jax.block_until_ready((pooled, score))

    assert pooled.shape == (B, 2 * H), pooled.shape
    assert score.shape == (B,), score.shape
    print("KERNEL_OK")
</pallas_src>

<mosaic_0001>
module attributes {stable_mosaic.version = 11 : i64} {
  func.func @_head_kernel(%arg0: memref<2x2x32xf32, #tpu.memory_space<vmem>>, %arg1: memref<64x1xbf16, #tpu.memory_space<vmem>>, %arg2: memref<1x1xf32, #tpu.memory_space<vmem>>, %arg3: memref<2x64xf32, #tpu.memory_space<vmem>>, %arg4: memref<2x1xf32, #tpu.memory_space<vmem>>) attributes {dimension_semantics = [], scalar_prefetch = 0 : i64, scratch_operands = 0 : i64, tpu.core_type = #tpu.core_type<tc>} {
    %c0 = arith.constant 0 : index
    %c0_0 = arith.constant 0 : index
    %c0_1 = arith.constant 0 : index
    %0 = vector.load %arg0[%c0, %c0_0, %c0_1] : memref<2x2x32xf32, #tpu.memory_space<vmem>>, vector<1x2x32xf32>
    %1 = vector.shape_cast %0 : vector<1x2x32xf32> to vector<2x32xf32>
    %c1 = arith.constant 1 : index
    %c0_2 = arith.constant 0 : index
    %c0_3 = arith.constant 0 : index
    %2 = vector.load %arg0[%c1, %c0_2, %c0_3] : memref<2x2x32xf32, #tpu.memory_space<vmem>>, vector<1x2x32xf32>
    %3 = vector.shape_cast %2 : vector<1x2x32xf32> to vector<2x32xf32>
    %4 = tpu.concatenate %1, %3 in 1 : vector<2x32xf32>, vector<2x32xf32> -> vector<2x64xf32>
    %c0_4 = arith.constant 0 : index
    %c0_5 = arith.constant 0 : index
    %5 = vector.load %arg3[%c0_4, %c0_5] : memref<2x64xf32, #tpu.memory_space<vmem>>, vector<2x64xf32>
    tpu.vector_store %arg3[%c0_4, %c0_5], %4 {strides = array<i32>} : memref<2x64xf32, #tpu.memory_space<vmem>>, vector<2x64xf32>,
    %6 = arith.truncf %4 : vector<2x64xf32> to vector<2x64xbf16>
    %c0_6 = arith.constant 0 : index
    %c0_7 = arith.constant 0 : index
    %7 = vector.load %arg1[%c0_6, %c0_7] : memref<64x1xbf16, #tpu.memory_space<vmem>>, vector<64x1xbf16>
    %cst = arith.constant dense<0.000000e+00> : vector<2x1xf32>
    %8 = tpu.matmul %6, %7, %cst {dimension_numbers = #tpu.dot_dimension_numbers<[1], [0], [0], [1], [0, 0, 1, 1], [], []>} : vector<2x64xbf16>, vector<64x1xbf16>, vector<2x1xf32> -> vector<2x1xf32>
    %c0_8 = arith.constant 0 : index
    %c0_9 = arith.constant 0 : index
    %9 = vector.load %arg2[%c0_8, %c0_9] : memref<1x1xf32, #tpu.memory_space<vmem>>, vector<1x1xf32>
    %10 = vector.broadcast %9 : vector<1x1xf32> to vector<2x1xf32>
    %11 = arith.addf %8, %10 : vector<2x1xf32>
    %cst_10 = arith.constant 0.000000e+00 : f32
    %12 = vector.broadcast %cst_10 : f32 to vector<2x1xf32>
    %13 = arith.maximumf %11, %12 : vector<2x1xf32>
    %c0_11 = arith.constant 0 : index
    %c0_12 = arith.constant 0 : index
    %14 = vector.load %arg4[%c0_11, %c0_12] : memref<2x1xf32, #tpu.memory_space<vmem>>, vector<2x1xf32>
    tpu.vector_store %arg4[%c0_11, %c0_12], %13 {strides = array<i32>} : memref<2x1xf32, #tpu.memory_space<vmem>>, vector<2x1xf32>,
    return
  }
}

module attributes {stable_mosaic.version = 11 : i64} {
  func.func @_encoder_kernel(%arg0: i32, %arg1: memref<1x16x32xf32, #tpu.memory_space<vmem>>, %arg2: memref<1x2x1x8xi32, #tpu.memory_space<vmem>>, %arg3: memref<1x1x32xf32, #tpu.memory_space<vmem>>, %arg4: memref<1x1x32xf32, #tpu.memory_space<vmem>>, %arg5: memref<1x2x32x96xbf16, #tpu.memory_space<vmem>>, %arg6: memref<1x2x1x96xf32, #tpu.memory_space<vmem>>, %arg7: memref<1x2x32x32xbf16, #tpu.memory_space<vmem>>, %arg8: memref<1x2x1x32xf32, #tpu.memory_space<vmem>>, %arg9: memref<1x2x1x32xf32, #tpu.memory_space<vmem>>, %arg10: memref<1x2x1x32xf32, #tpu.memory_space<vmem>>, %arg11: memref<1x2x32x64xbf16, #tpu.memory_space<vmem>>, %arg12: memref<1x2x1x64xf32, #tpu.memory_space<vmem>>, %arg13: memref<1x2x64x32xbf16, #tpu.memory_space<vmem>>, %arg14: memref<1x2x1x32xf32, #tpu.memory_space<vmem>>, %arg15: memref<1x2x1x32xf32, #tpu.memory_space<vmem>>, %arg16: memref<1x2x1x32xf32, #tpu.memory_space<vmem>>, %arg17: memref<1x32x32xbf16, #tpu.memory_space<vmem>>, %arg18: memref<1x1x32xf32, #tpu.memory_space<vmem>>, %arg19: memref<1x2x32xf32, #tpu.memory_space<vmem>>) attributes {dimension_semantics = [#tpu.dimension_semantics<parallel>], iteration_bounds = array<i64: 2>, scalar_prefetch = 0 : i64, scratch_operands = 0 : i64, tpu.core_type = #tpu.core_type<tc>, window_params = [{transform_indices = @transform_0, window_bounds = array<i64: 1, 16, 32>}, {transform_indices = @transform_1, window_bounds = array<i64: 1, 2, 1, 8>}, {transform_indices = @transform_2, window_bounds = array<i64: 1, 1, 32>}, {transform_indices = @transform_3, window_bounds = array<i64: 1, 1, 32>}, {transform_indices = @transform_4, window_bounds = array<i64: 1, 2, 32, 96>}, {transform_indices = @transform_5, window_bounds = array<i64: 1, 2, 1, 96>}, {transform_indices = @transform_6, window_bounds = array<i64: 1, 2, 32, 32>}, {transform_indices = @transform_7, window_bounds = array<i64: 1, 2, 1, 32>}, {transform_indices = @transform_8, window_bounds = array<i64: 1, 2, 1, 32>}, {transform_indices = @transform_9, window_bounds = array<i64: 1, 2, 1, 32>}, {transform_indices = @transform_10, window_bounds = array<i64: 1, 2, 32, 64>}, {transform_indices = @transform_11, window_bounds = array<i64: 1, 2, 1, 64>}, {transform_indices = @transform_12, window_bounds = array<i64: 1, 2, 64, 32>}, {transform_indices = @transform_13, window_bounds = array<i64: 1, 2, 1, 32>}, {transform_indices = @transform_14, window_bounds = array<i64: 1, 2, 1, 32>}, {transform_indices = @transform_15, window_bounds = array<i64: 1, 2, 1, 32>}, {transform_indices = @transform_16, window_bounds = array<i64: 1, 32, 32>}, {transform_indices = @transform_17, window_bounds = array<i64: 1, 1, 32>}, {transform_indices = @transform_18, window_bounds = array<i64: 1, 2, 32>}]} {
    %c0 = arith.constant 0 : index
    %c0_0 = arith.constant 0 : index
    %c0_1 = arith.constant 0 : index
    %0 = vector.load %arg1[%c0, %c0_0, %c0_1] : memref<1x16x32xf32, #tpu.memory_space<vmem>>, vector<1x16x32xf32>
    %1 = vector.shape_cast %0 : vector<1x16x32xf32> to vector<16x32xf32>
    %c0_2 = arith.constant 0 : index
    %c0_3 = arith.constant 0 : index
    %c0_4 = arith.constant 0 : index
    %2 = vector.load %arg3[%c0_2, %c0_3, %c0_4] : memref<1x1x32xf32, #tpu.memory_space<vmem>>, vector<1x1x32xf32>
    %3 = vector.shape_cast %2 : vector<1x1x32xf32> to vector<1x32xf32>
    %c0_5 = arith.constant 0 : index
    %c0_6 = arith.constant 0 : index
    %c0_7 = arith.constant 0 : index
    %4 = vector.load %arg4[%c0_5, %c0_6, %c0_7] : memref<1x1x32xf32, #tpu.memory_space<vmem>>, vector<1x1x32xf32>
    %5 = vector.shape_cast %4 : vector<1x1x32xf32> to vector<1x32xf32>
    %cst = arith.constant dense<0.000000e+00> : vector<16xf32>
    %6 = vector.multi_reduction <add>, %1, %cst [1] : vector<16x32xf32> to vector<16xf32>
    %7 = vector.shape_cast %6 : vector<16xf32> to vector<16x1xf32>
    %cst_8 = arith.constant 3.200000e+01 : f32
    %8 = vector.broadcast %cst_8 : f32 to vector<16x1xf32>
    %9 = arith.divf %7, %8 : vector<16x1xf32>
    %10 = vector.broadcast %9 : vector<16x1xf32> to vector<16x32xf32>
    %11 = arith.subf %1, %10 : vector<16x32xf32>
    %12 = arith.mulf %11, %11 : vector<16x32xf32>
    %cst_9 = arith.constant dense<0.000000e+00> : vector<16xf32>
    %13 = vector.multi_reduction <add>, %12, %cst_9 [1] : vector<16x32xf32> to vector<16xf32>
    %14 = vector.shape_cast %13 : vector<16xf32> to vector<16x1xf32>
    %cst_10 = arith.constant 3.200000e+01 : f32
    %15 = vector.broadcast %cst_10 : f32 to vector<16x1xf32>
    %16 = arith.divf %14, %15 : vector<16x1xf32>
    %17 = vector.broadcast %9 : vector<16x1xf32> to vector<16x32xf32>
    %18 = arith.subf %1, %17 : vector<16x32xf32>
    %cst_11 = arith.constant 9.99999996E-13 : f32
    %19 = vector.broadcast %cst_11 : f32 to vector<16x1xf32>
    %20 = arith.addf %16, %19 : vector<16x1xf32>
    %21 = math.rsqrt %20 : vector<16x1xf32>
    %22 = vector.broadcast %21 : vector<16x1xf32> to vector<16x32xf32>
    %23 = arith.mulf %18, %22 : vector<16x32xf32>
    %24 = vector.broadcast %3 : vector<1x32xf32> to vector<16x32xf32>
    %25 = arith.mulf %23, %24 : vector<16x32xf32>
    %26 = vector.broadcast %5 : vector<1x32xf32> to vector<16x32xf32>
    %27 = arith.addf %25, %26 : vector<16x32xf32>
    %c0_12 = arith.constant 0 : index
    %c0_13 = arith.constant 0 : index
    %c0_14 = arith.constant 0 : index
    %c0_15 = arith.constant 0 : index
    %28 = vector.load %arg2[%c0_12, %c0_13, %c0_14, %c0_15] : memref<1x2x1x8xi32, #tpu.memory_space<vmem>>, vector<1x2x1x8xi32>
    %29 = vector.shape_cast %28 : vector<1x2x1x8xi32> to vector<2x1x8xi32>
    %30 = arith.sitofp %29 : vector<2x1x8xi32> to vector<2x1x8xf32>
    %cst_16 = arith.constant 1.000000e+00 : f32
    %31 = vector.broadcast %cst_16 : f32 to vector<2x1x8xf32>
    %32 = arith.subf %31, %30 : vector<2x1x8xf32>
    %cst_17 = arith.constant -1.000000e+04 : f32
    %33 = vector.broadcast %cst_17 : f32 to vector<2x1x8xf32>
    %34 = arith.mulf %32, %33 : vector<2x1x8xf32>
    %35 = arith.truncf %27 : vector<16x32xf32> to vector<16x32xbf16>
    %c0_18 = arith.constant 0 : index
    %c0_19 = arith.constant 0 : index
    %c0_20 = arith.constant 0 : index
    %c0_21 = arith.constant 0 : index
    %36 = vector.load %arg5[%c0_18, %c0_19, %c0_20, %c0_21] : memref<1x2x32x96xbf16, #tpu.memory_space<vmem>>, vector<1x1x32x96xbf16>
    %37 = vector.shape_cast %36 : vector<1x1x32x96xbf16> to vector<32x96xbf16>
    %cst_22 = arith.constant dense<0.000000e+00> : vector<16x96xf32>
    %38 = tpu.matmul %35, %37, %cst_22 {dimension_numbers = #tpu.dot_dimension_numbers<[1], [0], [0], [1], [0, 0, 1, 1], [], []>} : vector<16x32xbf16>, vector<32x96xbf16>, vector<16x96xf32> -> vector<16x96xf32>
    %c0_23 = arith.constant 0 : index
    %c0_24 = arith.constant 0 : index
    %c0_25 = arith.constant 0 : index
    %c0_26 = arith.constant 0 : index
    %39 = vector.load %arg6[%c0_23, %c0_24, %c0_25, %c0_26] : memref<1x2x1x96xf32, #tpu.memory_space<vmem>>, vector<1x1x1x96xf32>
    %40 = vector.shape_cast %39 : vector<1x1x1x96xf32> to vector<1x96xf32>
    %41 = vector.broadcast %40 : vector<1x96xf32> to vector<16x96xf32>
    %42 = arith.addf %38, %41 : vector<16x96xf32>
    %43 = vector.extract_strided_slice %42 {offsets = [0, 0], sizes = [16, 8], strides = [1, 1]} : vector<16x96xf32> to vector<16x8xf32>
    %44 = vector.shape_cast %43 : vector<16x8xf32> to vector<2x8x8xf32>
    %45 = vector.extract_strided_slice %42 {offsets = [0, 32], sizes = [16, 8], strides = [1, 1]} : vector<16x96xf32> to vector<16x8xf32>
    %46 = vector.shape_cast %45 : vector<16x8xf32> to vector<2x8x8xf32>
    %47 = vector.extract_strided_slice %42 {offsets = [0, 64], sizes = [16, 8], strides = [1, 1]} : vector<16x96xf32> to vector<16x8xf32>
    %48 = vector.shape_cast %47 : vector<16x8xf32> to vector<2x8x8xf32>
    %49 = arith.truncf %44 : vector<2x8x8xf32> to vector<2x8x8xbf16>
    %50 = arith.truncf %46 : vector<2x8x8xf32> to vector<2x8x8xbf16>
    "tpu.trace_start"() <{level = 10 : i32, message = "bqd,bkd->bqk"}> : () -> ()
    %cst_27 = arith.constant dense<0.000000e+00> : vector<2x8x8xf32>
    %51 = tpu.matmul %49, %50, %cst_27 {dimension_numbers = #tpu.dot_dimension_numbers<[2], [2], [1], [1], [0, 0, 0, 1, 1, 1], [0], [0]>} : vector<2x8x8xbf16>, vector<2x8x8xbf16>, vector<2x8x8xf32> -> vector<2x8x8xf32>
    "tpu.trace_stop"() : () -> ()
    %cst_28 = arith.constant 0.353553385 : f32
    %52 = vector.broadcast %cst_28 : f32 to vector<2x8x8xf32>
    %53 = arith.mulf %51, %52 : vector<2x8x8xf32>
    %54 = vector.broadcast %34 : vector<2x1x8xf32> to vector<2x8x8xf32>
    %55 = arith.addf %53, %54 : vector<2x8x8xf32>
    %cst_29 = arith.constant dense<0xFF800000> : vector<2x8xf32>
    %56 = vector.multi_reduction <maximumf>, %55, %cst_29 [2] : vector<2x8x8xf32> to vector<2x8xf32>
    %57 = vector.shape_cast %56 : vector<2x8xf32> to vector<2x8x1xf32>
    %58 = vector.broadcast %57 : vector<2x8x1xf32> to vector<2x8x8xf32>
    %59 = arith.subf %55, %58 : vector<2x8x8xf32>
    %60 = math.exp %59 : vector<2x8x8xf32>
    %cst_30 = arith.constant dense<0.000000e+00> : vector<2x8xf32>
    %61 = vector.multi_reduction <add>, %60, %cst_30 [2] : vector<2x8x8xf32> to vector<2x8xf32>
    %62 = vector.shape_cast %61 : vector<2x8xf32> to vector<2x8x1xf32>
    %63 = tpu.reciprocal %62 {approx = true} : vector<2x8x1xf32> -> vector<2x8x1xf32>
    %64 = vector.broadcast %63 : vector<2x8x1xf32> to vector<2x8x8xf32>
    %65 = arith.mulf %60, %64 : vector<2x8x8xf32>
    %66 = arith.truncf %65 : vector<2x8x8xf32> to vector<2x8x8xbf16>
    %67 = arith.truncf %48 : vector<2x8x8xf32> to vector<2x8x8xbf16>
    "tpu.trace_start"() <{level = 10 : i32, message = "bqk,bkd->bqd"}> : () -> ()
    %cst_31 = arith.constant dense<0.000000e+00> : vector<2x8x8xf32>
    %68 = tpu.matmul %66, %67, %cst_31 {dimension_numbers = #tpu.dot_dimension_numbers<[2], [1], [1], [2], [0, 0, 0, 1, 1, 2], [0], [0]>} : vector<2x8x8xbf16>, vector<2x8x8xbf16>, vector<2x8x8xf32> -> vector<2x8x8xf32>
    "tpu.trace_stop"() : () -> ()
    %69 = vector.shape_cast %68 : vector<2x8x8xf32> to vector<16x8xf32>
    %70 = vector.extract_strided_slice %42 {offsets = [0, 8], sizes = [16, 8], strides = [1, 1]} : vector<16x96xf32> to vector<16x8xf32>
    %71 = vector.shape_cast %70 : vector<16x8xf32> to vector<2x8x8xf32>
    %72 = vector.extract_strided_slice %42 {offsets = [0, 40], sizes = [16, 8], strides = [1, 1]} : vector<16x96xf32> to vector<16x8xf32>
    %73 = vector.shape_cast %72 : vector<16x8xf32> to vector<2x8x8xf32>
    %74 = vector.extract_strided_slice %42 {offsets = [0, 72], sizes = [16, 8], strides = [1, 1]} : vector<16x96xf32> to vector<16x8xf32>
    %75 = vector.shape_cast %74 : vector<16x8xf32> to vector<2x8x8xf32>
    %76 = arith.truncf %71 : vector<2x8x8xf32> to vector<2x8x8xbf16>
    %77 = arith.truncf %73 : vector<2x8x8xf32> to vector<2x8x8xbf16>
    "tpu.trace_start"() <{level = 10 : i32, message = "bqd,bkd->bqk"}> : () -> ()
    %cst_32 = arith.constant dense<0.000000e+00> : vector<2x8x8xf32>
    %78 = tpu.matmul %76, %77, %cst_32 {dimension_numbers = #tpu.dot_dimension_numbers<[2], [2], [1], [1], [0, 0, 0, 1, 1, 1], [0], [0]>} : vector<2x8x8xbf16>, vector<2x8x8xbf16>, vector<2x8x8xf32> -> vector<2x8x8xf32>
    "tpu.trace_stop"() : () -> ()
    %cst_33 = arith.constant 0.353553385 : f32
    %79 = vector.broadcast %cst_33 : f32 to vector<2x8x8xf32>
    %80 = arith.mulf %78, %79 : vector<2x8x8xf32>
    %81 = vector.broadcast %34 : vector<2x1x8xf32> to vector<2x8x8xf32>
    %82 = arith.addf %80, %81 : vector<2x8x8xf32>
    %cst_34 = arith.constant dense<0xFF800000> : vector<2x8xf32>
    %83 = vector.multi_reduction <maximumf>, %82, %cst_34 [2] : vector<2x8x8xf32> to vector<2x8xf32>
    %84 = vector.shape_cast %83 : vector<2x8xf32> to vector<2x8x1xf32>
    %85 = vector.broadcast %84 : vector<2x8x1xf32> to vector<2x8x8xf32>
    %86 = arith.subf %82, %85 : vector<2x8x8xf32>
    %87 = math.exp %86 : vector<2x8x8xf32>
    %cst_35 = arith.constant dense<0.000000e+00> : vector<2x8xf32>
    %88 = vector.multi_reduction <add>, %87, %cst_35 [2] : vector<2x8x8xf32> to vector<2x8xf32>
    %89 = vector.shape_cast %88 : vector<2x8xf32> to vector<2x8x1xf32>
    %90 = tpu.reciprocal %89 {approx = true} : vector<2x8x1xf32> -> vector<2x8x1xf32>
    %91 = vector.broadcast %90 : vector<2x8x1xf32> to vector<2x8x8xf32>
    %92 = arith.mulf %87, %91 : vector<2x8x8xf32>
    %93 = arith.truncf %92 : vector<2x8x8xf32> to vector<2x8x8xbf16>
    %94 = arith.truncf %75 : vector<2x8x8xf32> to vector<2x8x8xbf16>
    "tpu.trace_start"() <{level = 10 : i32, message = "bqk,bkd->bqd"}> : () -> ()
    %cst_36 = arith.constant dense<0.000000e+00> : vector<2x8x8xf32>
    %95 = tpu.matmul %93, %94, %cst_36 {dimension_numbers = #tpu.dot_dimension_numbers<[2], [1], [1], [2], [0, 0, 0, 1, 1, 2], [0], [0]>} : vector<2x8x8xbf16>, vector<2x8x8xbf16>, vector<2x8x8xf32> -> vector<2x8x8xf32>
    "tpu.trace_stop"() : () -> ()
    %96 = vector.shape_cast %95 : vector<2x8x8xf32> to vector<16x8xf32>
    %97 = vector.extract_strided_slice %42 {offsets = [0, 16], sizes = [16, 8], strides = [1, 1]} : vector<16x96xf32> to vector<16x8xf32>
    %98 = vector.shape_cast %97 : vector<16x8xf32> to vector<2x8x8xf32>
    %99 = vector.extract_strided_slice %42 {offsets = [0, 48], sizes = [16, 8], strides = [1, 1]} : vector<16x96xf32> to vector<16x8xf32>
    %100 = vector.shape_cast %99 : vector<16x8xf32> to vector<2x8x8xf32>
    %101 = vector.extract_strided_slice %42 {offsets = [0, 80], sizes = [16, 8], strides = [1, 1]} : vector<16x96xf32> to vector<16x8xf32>
    %102 = vector.shape_cast %101 : vector<16x8xf32> to vector<2x8x8xf32>
    %103 = arith.truncf %98 : vector<2x8x8xf32> to vector<2x8x8xbf16>
    %104 = arith.truncf %100 : vector<2x8x8xf32> to vector<2x8x8xbf16>
    "tpu.trace_start"() <{level = 10 : i32, message = "bqd,bkd->bqk"}> : () -> ()
    %cst_37 = arith.constant dense<0.000000e+00> : vector<2x8x8xf32>
    %105 = tpu.matmul %103, %104, %cst_37 {dimension_numbers = #tpu.dot_dimension_numbers<[2], [2], [1], [1], [0, 0, 0, 1, 1, 1], [0], [0]>} : vector<2x8x8xbf16>, vector<2x8x8xbf16>, vector<2x8x8xf32> -> vector<2x8x8xf32>
    "tpu.trace_stop"() : () -> ()
    %cst_38 = arith.constant 0.353553385 : f32
    %106 = vector.broadcast %cst_38 : f32 to vector<2x8x8xf32>
    %107 = arith.mulf %105, %106 : vector<2x8x8xf32>
    %108 = vector.broadcast %34 : vector<2x1x8xf32> to vector<2x8x8xf32>
    %109 = arith.addf %107, %108 : vector<2x8x8xf32>
    %cst_39 = arith.constant dense<0xFF800000> : vector<2x8xf32>
    %110 = vector.multi_reduction <maximumf>, %109, %cst_39 [2] : vector<2x8x8xf32> to vector<2x8xf32>
    %111 = vector.shape_cast %110 : vector<2x8xf32> to vector<2x8x1xf32>
    %112 = vector.broadcast %111 : vector<2x8x1xf32> to vector<2x8x8xf32>
    %113 = arith.subf %109, %112 : vector<2x8x8xf32>
    %114 = math.exp %113 : vector<2x8x8xf32>
    %cst_40 = arith.constant dense<0.000000e+00> : vector<2x8xf32>
    %115 = vector.multi_reduction <add>, %114, %cst_40 [2] : vector<2x8x8xf32> to vector<2x8xf32>
    %116 = vector.shape_cast %115 : vector<2x8xf32> to vector<2x8x1xf32>
    %117 = tpu.reciprocal %116 {approx = true} : vector<2x8x1xf32> -> vector<2x8x1xf32>
    %118 = vector.broadcast %117 : vector<2x8x1xf32> to vector<2x8x8xf32>
    %119 = arith.mulf %114, %118 : vector<2x8x8xf32>
    %120 = arith.truncf %119 : vector<2x8x8xf32> to vector<2x8x8xbf16>
    %121 = arith.truncf %102 : vector<2x8x8xf32> to vector<2x8x8xbf16>
    "tpu.trace_start"() <{level = 10 : i32, message = "bqk,bkd->bqd"}> : () -> ()
    %cst_41 = arith.constant dense<0.000000e+00> : vector<2x8x8xf32>
    %122 = tpu.matmul %120, %121, %cst_41 {dimension_numbers = #tpu.dot_dimension_numbers<[2], [1], [1], [2], [0, 0, 0, 1, 1, 2], [0], [0]>} : vector<2x8x8xbf16>, vector<2x8x8xbf16>, vector<2x8x8xf32> -> vector<2x8x8xf32>
    "tpu.trace_stop"() : () -> ()
    %123 = vector.shape_cast %122 : vector<2x8x8xf32> to vector<16x8xf32>
    %124 = vector.extract_strided_slice %42 {offsets = [0, 24], sizes = [16, 8], strides = [1, 1]} : vector<16x96xf32> to vector<16x8xf32>
    %125 = vector.shape_cast %124 : vector<16x8xf32> to vector<2x8x8xf32>
    %126 = vector.extract_strided_slice %42 {offsets = [0, 56], sizes = [16, 8], strides = [1, 1]} : vector<16x96xf32> to vector<16x8xf32>
    %127 = vector.shape_cast %126 : vector<16x8xf32> to vector<2x8x8xf32>
    %128 = vector.extract_strided_slice %42 {offsets = [0, 88], sizes = [16, 8], strides = [1, 1]} : vector<16x96xf32> to vector<16x8xf32>
    %129 = vector.shape_cast %128 : vector<16x8xf32> to vector<2x8x8xf32>
    %130 = arith.truncf %125 : vector<2x8x8xf32> to vector<2x8x8xbf16>
    %131 = arith.truncf %127 : vector<2x8x8xf32> to vector<2x8x8xbf16>
    "tpu.trace_start"() <{level = 10 : i32, message = "bqd,bkd->bqk"}> : () -> ()
    %cst_42 = arith.constant dense<0.000000e+00> : vector<2x8x8xf32>
    %132 = tpu.matmul %130, %131, %cst_42 {dimension_numbers = #tpu.dot_dimension_numbers<[2], [2], [1], [1], [0, 0, 0, 1, 1, 1], [0], [0]>} : vector<2x8x8xbf16>, vector<2x8x8xbf16>, vector<2x8x8xf32> -> vector<2x8x8xf32>
    "tpu.trace_stop"() : () -> ()
    %cst_43 = arith.constant 0.353553385 : f32
    %133 = vector.broadcast %cst_43 : f32 to vector<2x8x8xf32>
    %134 = arith.mulf %132, %133 : vector<2x8x8xf32>
    %135 = vector.broadcast %34 : vector<2x1x8xf32> to vector<2x8x8xf32>
    %136 = arith.addf %134, %135 : vector<2x8x8xf32>
    %cst_44 = arith.constant dense<0xFF800000> : vector<2x8xf32>
    %137 = vector.multi_reduction <maximumf>, %136, %cst_44 [2] : vector<2x8x8xf32> to vector<2x8xf32>
    %138 = vector.shape_cast %137 : vector<2x8xf32> to vector<2x8x1xf32>
    %139 = vector.broadcast %138 : vector<2x8x1xf32> to vector<2x8x8xf32>
    %140 = arith.subf %136, %139 : vector<2x8x8xf32>
    %141 = math.exp %140 : vector<2x8x8xf32>
    %cst_45 = arith.constant dense<0.000000e+00> : vector<2x8xf32>
    %142 = vector.multi_reduction <add>, %141, %cst_45 [2] : vector<2x8x8xf32> to vector<2x8xf32>
    %143 = vector.shape_cast %142 : vector<2x8xf32> to vector<2x8x1xf32>
    %144 = tpu.reciprocal %143 {approx = true} : vector<2x8x1xf32> -> vector<2x8x1xf32>
    %145 = vector.broadcast %144 : vector<2x8x1xf32> to vector<2x8x8xf32>
    %146 = arith.mulf %141, %145 : vector<2x8x8xf32>
    %147 = arith.truncf %146 : vector<2x8x8xf32> to vector<2x8x8xbf16>
    %148 = arith.truncf %129 : vector<2x8x8xf32> to vector<2x8x8xbf16>
    "tpu.trace_start"() <{level = 10 : i32, message = "bqk,bkd->bqd"}> : () -> ()
    %cst_46 = arith.constant dense<0.000000e+00> : vector<2x8x8xf32>
    %149 = tpu.matmul %147, %148, %cst_46 {dimension_numbers = #tpu.dot_dimension_numbers<[2], [1], [1], [2], [0, 0, 0, 1, 1, 2], [0], [0]>} : vector<2x8x8xbf16>, vector<2x8x8xbf16>, vector<2x8x8xf32> -> vector<2x8x8xf32>
    "tpu.trace_stop"() : () -> ()
    %150 = vector.shape_cast %149 : vector<2x8x8xf32> to vector<16x8xf32>
    %151 = tpu.concatenate %69, %96, %123, %150 in 1 : vector<16x8xf32>, vector<16x8xf32>, vector<16x8xf32>, vector<16x8xf32> -> vector<16x32xf32>
    %152 = arith.truncf %151 : vector<16x32xf32> to vector<16x32xbf16>
    %c0_47 = arith.constant 0 : index
    %c0_48 = arith.constant 0 : index
    %c0_49 = arith.constant 0 : index
    %c0_50 = arith.constant 0 : index
    %153 = vector.load %arg7[%c0_47, %c0_48, %c0_49, %c0_50] : memref<1x2x32x32xbf16, #tpu.memory_space<vmem>>, vector<1x1x32x32xbf16>
    %154 = vector.shape_cast %153 : vector<1x1x32x32xbf16> to vector<32x32xbf16>
    %cst_51 = arith.constant dense<0.000000e+00> : vector<16x32xf32>
    %155 = tpu.matmul %152, %154, %cst_51 {dimension_numbers = #tpu.dot_dimension_numbers<[1], [0], [0], [1], [0, 0, 1, 1], [], []>} : vector<16x32xbf16>, vector<32x32xbf16>, vector<16x32xf32> -> vector<16x32xf32>
    %c0_52 = arith.constant 0 : index
    %c0_53 = arith.constant 0 : index
    %c0_54 = arith.constant 0 : index
    %c0_55 = arith.constant 0 : index
    %156 = vector.load %arg8[%c0_52, %c0_53, %c0_54, %c0_55] : memref<1x2x1x32xf32, #tpu.memory_space<vmem>>, vector<1x1x1x32xf32>
    %157 = vector.shape_cast %156 : vector<1x1x1x32xf32> to vector<1x32xf32>
    %158 = vector.broadcast %157 : vector<1x32xf32> to vector<16x32xf32>
    %159 = arith.addf %155, %158 : vector<16x32xf32>
    %160 = arith.addf %159, %27 : vector<16x32xf32>
    %c0_56 = arith.constant 0 : index
    %c0_57 = arith.constant 0 : index
    %c0_58 = arith.constant 0 : index
    %c0_59 = arith.constant 0 : index
    %161 = vector.load %arg9[%c0_56, %c0_57, %c0_58, %c0_59] : memref<1x2x1x32xf32, #tpu.memory_space<vmem>>, vector<1x1x1x32xf32>
    %162 = vector.shape_cast %161 : vector<1x1x1x32xf32> to vector<1x32xf32>
    %c0_60 = arith.constant 0 : index
    %c0_61 = arith.constant 0 : index
    %c0_62 = arith.constant 0 : index
    %c0_63 = arith.constant 0 : index
    %163 = vector.load %arg10[%c0_60, %c0_61, %c0_62, %c0_63] : memref<1x2x1x32xf32, #tpu.memory_space<vmem>>, vector<1x1x1x32xf32>
    %164 = vector.shape_cast %163 : vector<1x1x1x32xf32> to vector<1x32xf32>
    %cst_64 = arith.constant dense<0.000000e+00> : vector<16xf32>
    %165 = vector.multi_reduction <add>, %160, %cst_64 [1] : vector<16x32xf32> to vector<16xf32>
    %166 = vector.shape_cast %165 : vector<16xf32> to vector<16x1xf32>
    %cst_65 = arith.constant 3.200000e+01 : f32
    %167 = vector.broadcast %cst_65 : f32 to vector<16x1xf32>
    %168 = arith.divf %166, %167 : vector<16x1xf32>
    %169 = vector.broadcast %168 : vector<16x1xf32> to vector<16x32xf32>
    %170 = arith.subf %160, %169 : vector<16x32xf32>
    %171 = arith.mulf %170, %170 : vector<16x32xf32>
    %cst_66 = arith.constant dense<0.000000e+00> : vector<16xf32>
    %172 = vector.multi_reduction <add>, %171, %cst_66 [1] : vector<16x32xf32> to vector<16xf32>
    %173 = vector.shape_cast %172 : vector<16xf32> to vector<16x1xf32>
    %cst_67 = arith.constant 3.200000e+01 : f32
    %174 = vector.broadcast %cst_67 : f32 to vector<16x1xf32>
    %175 = arith.divf %173, %174 : vector<16x1xf32>
    %176 = vector.broadcast %168 : vector<16x1xf32> to vector<16x32xf32>
    %177 = arith.subf %160, %176 : vector<16x32xf32>
    %cst_68 = arith.constant 9.99999996E-13 : f32
    %178 = vector.broadcast %cst_68 : f32 to vector<16x1xf32>
    %179 = arith.addf %175, %178 : vector<16x1xf32>
    %180 = math.rsqrt %179 : vector<16x1xf32>
    %181 = vector.broadcast %180 : vector<16x1xf32> to vector<16x32xf32>
    %182 = arith.mulf %177, %181 : vector<16x32xf32>
    %183 = vector.broadcast %162 : vector<1x32xf32> to vector<16x32xf32>
    %184 = arith.mulf %182, %183 : vector<16x32xf32>
    %185 = vector.broadcast %164 : vector<1x32xf32> to vector<16x32xf32>
    %186 = arith.addf %184, %185 : vector<16x32xf32>
    %187 = arith.truncf %186 : vector<16x32xf32> to vector<16x32xbf16>
    %c0_69 = arith.constant 0 : index
    %c0_70 = arith.constant 0 : index
    %c0_71 = arith.constant 0 : index
    %c0_72 = arith.constant 0 : index
    %188 = vector.load %arg11[%c0_69, %c0_70, %c0_71, %c0_72] : memref<1x2x32x64xbf16, #tpu.memory_space<vmem>>, vector<1x1x32x64xbf16>
    %189 = vector.shape_cast %188 : vector<1x1x32x64xbf16> to vector<32x64xbf16>
    %cst_73 = arith.constant dense<0.000000e+00> : vector<16x64xf32>
    %190 = tpu.matmul %187, %189, %cst_73 {dimension_numbers = #tpu.dot_dimension_numbers<[1], [0], [0], [1], [0, 0, 1, 1], [], []>} : vector<16x32xbf16>, vector<32x64xbf16>, vector<16x64xf32> -> vector<16x64xf32>
    %c0_74 = arith.constant 0 : index
    %c0_75 = arith.constant 0 : index
    %c0_76 = arith.constant 0 : index
    %c0_77 = arith.constant 0 : index
    %191 = vector.load %arg12[%c0_74, %c0_75, %c0_76, %c0_77] : memref<1x2x1x64xf32, #tpu.memory_space<vmem>>, vector<1x1x1x64xf32>
    %192 = vector.shape_cast %191 : vector<1x1x1x64xf32> to vector<1x64xf32>
    %193 = vector.broadcast %192 : vector<1x64xf32> to vector<16x64xf32>
    %194 = arith.addf %190, %193 : vector<16x64xf32>
    %cst_78 = arith.constant 5.000000e-01 : f32
    %195 = vector.broadcast %cst_78 : f32 to vector<16x64xf32>
    %196 = arith.mulf %195, %194 : vector<16x64xf32>
    %cst_79 = arith.constant 4.471500e-02 : f32
    %197 = vector.broadcast %cst_79 : f32 to vector<16x64xf32>
    %198 = arith.mulf %197, %194 : vector<16x64xf32>
    %199 = arith.mulf %198, %194 : vector<16x64xf32>
    %200 = arith.mulf %199, %194 : vector<16x64xf32>
    %201 = arith.addf %194, %200 : vector<16x64xf32>
    %cst_80 = arith.constant 0.797884583 : f32
    %202 = vector.broadcast %cst_80 : f32 to vector<16x64xf32>
    %203 = arith.mulf %202, %201 : vector<16x64xf32>
    %204 = math.tanh %203 : vector<16x64xf32>
    %cst_81 = arith.constant 1.000000e+00 : f32
    %205 = vector.broadcast %cst_81 : f32 to vector<16x64xf32>
    %206 = arith.addf %205, %204 : vector<16x64xf32>
    %207 = arith.mulf %196, %206 : vector<16x64xf32>
    %208 = arith.truncf %207 : vector<16x64xf32> to vector<16x64xbf16>
    %c0_82 = arith.constant 0 : index
    %c0_83 = arith.constant 0 : index
    %c0_84 = arith.constant 0 : index
    %c0_85 = arith.constant 0 : index
    %209 = vector.load %arg13[%c0_82, %c0_83, %c0_84, %c0_85] : memref<1x2x64x32xbf16, #tpu.memory_space<vmem>>, vector<1x1x64x32xbf16>
    %210 = vector.shape_cast %209 : vector<1x1x64x32xbf16> to vector<64x32xbf16>
    %cst_86 = arith.constant dense<0.000000e+00> : vector<16x32xf32>
    %211 = tpu.matmul %208, %210, %cst_86 {dimension_numbers = #tpu.dot_dimension_numbers<[1], [0], [0], [1], [0, 0, 1, 1], [], []>} : vector<16x64xbf16>, vector<64x32xbf16>, vector<16x32xf32> -> vector<16x32xf32>
    %c0_87 = arith.constant 0 : index
    %c0_88 = arith.constant 0 : index
    %c0_89 = arith.constant 0 : index
    %c0_90 = arith.constant 0 : index
    %212 = vector.load %arg14[%c0_87, %c0_88, %c0_89, %c0_90] : memref<1x2x1x32xf32, #tpu.memory_space<vmem>>, vector<1x1x1x32xf32>
    %213 = vector.shape_cast %212 : vector<1x1x1x32xf32> to vector<1x32xf32>
    %214 = vector.broadcast %213 : vector<1x32xf32> to vector<16x32xf32>
    %215 = arith.addf %211, %214 : vector<16x32xf32>
    %216 = arith.addf %215, %186 : vector<16x32xf32>
    %c0_91 = arith.constant 0 : index
    %c0_92 = arith.constant 0 : index
    %c0_93 = arith.constant 0 : index
    %c0_94 = arith.constant 0 : index
    %217 = vector.load %arg15[%c0_91, %c0_92, %c0_93, %c0_94] : memref<1x2x1x32xf32, #tpu.memory_space<vmem>>, vector<1x1x1x32xf32>
    %218 = vector.shape_cast %217 : vector<1x1x1x32xf32> to vector<1x32xf32>
    %c0_95 = arith.constant 0 : index
    %c0_96 = arith.constant 0 : index
    %c0_97 = arith.constant 0 : index
    %c0_98 = arith.constant 0 : index
    %219 = vector.load %arg16[%c0_95, %c0_96, %c0_97, %c0_98] : memref<1x2x1x32xf32, #tpu.memory_space<vmem>>, vector<1x1x1x32xf32>
    %220 = vector.shape_cast %219 : vector<1x1x1x32xf32> to vector<1x32xf32>
    %cst_99 = arith.constant dense<0.000000e+00> : vector<16xf32>
    %221 = vector.multi_reduction <add>, %216, %cst_99 [1] : vector<16x32xf32> to vector<16xf32>
    %222 = vector.shape_cast %221 : vector<16xf32> to vector<16x1xf32>
    %cst_100 = arith.constant 3.200000e+01 : f32
    %223 = vector.broadcast %cst_100 : f32 to vector<16x1xf32>
    %224 = arith.divf %222, %223 : vector<16x1xf32>
    %225 = vector.broadcast %224 : vector<16x1xf32> to vector<16x32xf32>
    %226 = arith.subf %216, %225 : vector<16x32xf32>
    %227 = arith.mulf %226, %226 : vector<16x32xf32>
    %cst_101 = arith.constant dense<0.000000e+00> : vector<16xf32>
    %228 = vector.multi_reduction <add>, %227, %cst_101 [1] : vector<16x32xf32> to vector<16xf32>
    %229 = vector.shape_cast %228 : vector<16xf32> to vector<16x1xf32>
    %cst_102 = arith.constant 3.200000e+01 : f32
    %230 = vector.broadcast %cst_102 : f32 to vector<16x1xf32>
    %231 = arith.divf %229, %230 : vector<16x1xf32>
    %232 = vector.broadcast %224 : vector<16x1xf32> to vector<16x32xf32>
    %233 = arith.subf %216, %232 : vector<16x32xf32>
    %cst_103 = arith.constant 9.99999996E-13 : f32
    %234 = vector.broadcast %cst_103 : f32 to vector<16x1xf32>
    %235 = arith.addf %231, %234 : vector<16x1xf32>
    %236 = math.rsqrt %235 : vector<16x1xf32>
    %237 = vector.broadcast %236 : vector<16x1xf32> to vector<16x32xf32>
    %238 = arith.mulf %233, %237 : vector<16x32xf32>
    %239 = vector.broadcast %218 : vector<1x32xf32> to vector<16x32xf32>
    %240 = arith.mulf %238, %239 : vector<16x32xf32>
    %241 = vector.broadcast %220 : vector<1x32xf32> to vector<16x32xf32>
    %242 = arith.addf %240, %241 : vector<16x32xf32>
    %243 = arith.truncf %242 : vector<16x32xf32> to vector<16x32xbf16>
    %c0_104 = arith.constant 0 : index
    %c1 = arith.constant 1 : index
    %c0_105 = arith.constant 0 : index
    %c0_106 = arith.constant 0 : index
    %244 = vector.load %arg5[%c0_104, %c1, %c0_105, %c0_106] : memref<1x2x32x96xbf16, #tpu.memory_space<vmem>>, vector<1x1x32x96xbf16>
    %245 = vector.shape_cast %244 : vector<1x1x32x96xbf16> to vector<32x96xbf16>
    %cst_107 = arith.constant dense<0.000000e+00> : vector<16x96xf32>
    %246 = tpu.matmul %243, %245, %cst_107 {dimension_numbers = #tpu.dot_dimension_numbers<[1], [0], [0], [1], [0, 0, 1, 1], [], []>} : vector<16x32xbf16>, vector<32x96xbf16>, vector<16x96xf32> -> vector<16x96xf32>
    %c0_108 = arith.constant 0 : index
    %c1_109 = arith.constant 1 : index
    %c0_110 = arith.constant 0 : index
    %c0_111 = arith.constant 0 : index
    %247 = vector.load %arg6[%c0_108, %c1_109, %c0_110, %c0_111] : memref<1x2x1x96xf32, #tpu.memory_space<vmem>>, vector<1x1x1x96xf32>
    %248 = vector.shape_cast %247 : vector<1x1x1x96xf32> to vector<1x96xf32>
    %249 = vector.broadcast %248 : vector<1x96xf32> to vector<16x96xf32>
    %250 = arith.addf %246, %249 : vector<16x96xf32>
    %251 = vector.extract_strided_slice %250 {offsets = [0, 0], sizes = [16, 8], strides = [1, 1]} : vector<16x96xf32> to vector<16x8xf32>
    %252 = vector.shape_cast %251 : vector<16x8xf32> to vector<2x8x8xf32>
    %253 = vector.extract_strided_slice %250 {offsets = [0, 32], sizes = [16, 8], strides = [1, 1]} : vector<16x96xf32> to vector<16x8xf32>
    %254 = vector.shape_cast %253 : vector<16x8xf32> to vector<2x8x8xf32>
    %255 = vector.extract_strided_slice %250 {offsets = [0, 64], sizes = [16, 8], strides = [1, 1]} : vector<16x96xf32> to vector<16x8xf32>
    %256 = vector.shape_cast %255 : vector<16x8xf32> to vector<2x8x8xf32>
    %257 = arith.truncf %252 : vector<2x8x8xf32> to vector<2x8x8xbf16>
    %258 = arith.truncf %254 : vector<2x8x8xf32> to vector<2x8x8xbf16>
    "tpu.trace_start"() <{level = 10 : i32, message = "bqd,bkd->bqk"}> : () -> ()
    %cst_112 = arith.constant dense<0.000000e+00> : vector<2x8x8xf32>
    %259 = tpu.matmul %257, %258, %cst_112 {dimension_numbers = #tpu.dot_dimension_numbers<[2], [2], [1], [1], [0, 0, 0, 1, 1, 1], [0], [0]>} : vector<2x8x8xbf16>, vector<2x8x8xbf16>, vector<2x8x8xf32> -> vector<2x8x8xf32>
    "tpu.trace_stop"() : () -> ()
    %cst_113 = arith.constant 0.353553385 : f32
    %260 = vector.broadcast %cst_113 : f32 to vector<2x8x8xf32>
    %261 = arith.mulf %259, %260 : vector<2x8x8xf32>
    %262 = vector.broadcast %34 : vector<2x1x8xf32> to vector<2x8x8xf32>
    %263 = arith.addf %261, %262 : vector<2x8x8xf32>
    %cst_114 = arith.constant dense<0xFF800000> : vector<2x8xf32>
    %264 = vector.multi_reduction <maximumf>, %263, %cst_114 [2] : vector<2x8x8xf32> to vector<2x8xf32>
    %265 = vector.shape_cast %264 : vector<2x8xf32> to vector<2x8x1xf32>
    %266 = vector.broadcast %265 : vector<2x8x1xf32> to vector<2x8x8xf32>
    %267 = arith.subf %263, %266 : vector<2x8x8xf32>
    %268 = math.exp %267 : vector<2x8x8xf32>
    %cst_115 = arith.constant dense<0.000000e+00> : vector<2x8xf32>
    %269 = vector.multi_reduction <add>, %268, %cst_115 [2] : vector<2x8x8xf32> to vector<2x8xf32>
    %270 = vector.shape_cast %269 : vector<2x8xf32> to vector<2x8x1xf32>
    %271 = tpu.reciprocal %270 {approx = true} : vector<2x8x1xf32> -> vector<2x8x1xf32>
    %272 = vector.broadcast %271 : vector<2x8x1xf32> to vector<2x8x8xf32>
    %273 = arith.mulf %268, %272 : vector<2x8x8xf32>
    %274 = arith.truncf %273 : vector<2x8x8xf32> to vector<2x8x8xbf16>
    %275 = arith.truncf %256 : vector<2x8x8xf32> to vector<2x8x8xbf16>
    "tpu.trace_start"() <{level = 10 : i32, message = "bqk,bkd->bqd"}> : () -> ()
    %cst_116 = arith.constant dense<0.000000e+00> : vector<2x8x8xf32>
    %276 = tpu.matmul %274, %275, %cst_116 {dimension_numbers = #tpu.dot_dimension_numbers<[2], [1], [1], [2], [0, 0, 0, 1, 1, 2], [0], [0]>} : vector<2x8x8xbf16>, vector<2x8x8xbf16>, vector<2x8x8xf32> -> vector<2x8x8xf32>
    "tpu.trace_stop"() : () -> ()
    %277 = vector.shape_cast %276 : vector<2x8x8xf32> to vector<16x8xf32>
    %278 = vector.extract_strided_slice %250 {offsets = [0, 8], sizes = [16, 8], strides = [1, 1]} : vector<16x96xf32> to vector<16x8xf32>
    %279 = vector.shape_cast %278 : vector<16x8xf32> to vector<2x8x8xf32>
    %280 = vector.extract_strided_slice %250 {offsets = [0, 40], sizes = [16, 8], strides = [1, 1]} : vector<16x96xf32> to vector<16x8xf32>
    %281 = vector.shape_cast %280 : vector<16x8xf32> to vector<2x8x8xf32>
    %282 = vector.extract_strided_slice %250 {offsets = [0, 72], sizes = [16, 8], strides = [1, 1]} : vector<16x96xf32> to vector<16x8xf32>
    %283 = vector.shape_cast %282 : vector<16x8xf32> to vector<2x8x8xf32>
    %284 = arith.truncf %279 : vector<2x8x8xf32> to vector<2x8x8xbf16>
    %285 = arith.truncf %281 : vector<2x8x8xf32> to vector<2x8x8xbf16>
    "tpu.trace_start"() <{level = 10 : i32, message = "bqd,bkd->bqk"}> : () -> ()
    %cst_117 = arith.constant dense<0.000000e+00> : vector<2x8x8xf32>
    %286 = tpu.matmul %284, %285, %cst_117 {dimension_numbers = #tpu.dot_dimension_numbers<[2], [2], [1], [1], [0, 0, 0, 1, 1, 1], [0], [0]>} : vector<2x8x8xbf16>, vector<2x8x8xbf16>, vector<2x8x8xf32> -> vector<2x8x8xf32>
    "tpu.trace_stop"() : () -> ()
    %cst_118 = arith.constant 0.353553385 : f32
    %287 = vector.broadcast %cst_118 : f32 to vector<2x8x8xf32>
    %288 = arith.mulf %286, %287 : vector<2x8x8xf32>
    %289 = vector.broadcast %34 : vector<2x1x8xf32> to vector<2x8x8xf32>
    %290 = arith.addf %288, %289 : vector<2x8x8xf32>
    %cst_119 = arith.constant dense<0xFF800000> : vector<2x8xf32>
    %291 = vector.multi_reduction <maximumf>, %290, %cst_119 [2] : vector<2x8x8xf32> to vector<2x8xf32>
    %292 = vector.shape_cast %291 : vector<2x8xf32> to vector<2x8x1xf32>
    %293 = vector.broadcast %292 : vector<2x8x1xf32> to vector<2x8x8xf32>
    %294 = arith.subf %290, %293 : vector<2x8x8xf32>
    %295 = math.exp %294 : vector<2x8x8xf32>
    %cst_120 = arith.constant dense<0.000000e+00> : vector<2x8xf32>
    %296 = vector.multi_reduction <add>, %295, %cst_120 [2] : vector<2x8x8xf32> to vector<2x8xf32>
    %297 = vector.shape_cast %296 : vector<2x8xf32> to vector<2x8x1xf32>
    %298 = tpu.reciprocal %297 {approx = true} : vector<2x8x1xf32> -> vector<2x8x1xf32>
    %299 = vector.broadcast %298 : vector<2x8x1xf32> to vector<2x8x8xf32>
    %300 = arith.mulf %295, %299 : vector<2x8x8xf32>
    %301 = arith.truncf %300 : vector<2x8x8xf32> to vector<2x8x8xbf16>
    %302 = arith.truncf %283 : vector<2x8x8xf32> to vector<2x8x8xbf16>
    "tpu.trace_start"() <{level = 10 : i32, message = "bqk,bkd->bqd"}> : () -> ()
    %cst_121 = arith.constant dense<0.000000e+00> : vector<2x8x8xf32>
    %303 = tpu.matmul %301, %302, %cst_121 {dimension_numbers = #tpu.dot_dimension_numbers<[2], [1], [1], [2], [0, 0, 0, 1, 1, 2], [0], [0]>} : vector<2x8x8xbf16>, vector<2x8x8xbf16>, vector<2x8x8xf32> -> vector<2x8x8xf32>
    "tpu.trace_stop"() : () -> ()
    %304 = vector.shape_cast %303 : vector<2x8x8xf32> to vector<16x8xf32>
    %305 = vector.extract_strided_slice %250 {offsets = [0, 16], sizes = [16, 8], strides = [1, 1]} : vector<16x96xf32> to vector<16x8xf32>
    %306 = vector.shape_cast %305 : vector<16x8xf32> to vector<2x8x8xf32>
    %307 = vector.extract_strided_slice %250 {offsets = [0, 48], sizes = [16, 8], strides = [1, 1]} : vector<16x96xf32> to vector<16x8xf32>
    %308 = vector.shape_cast %307 : vector<16x8xf32> to vector<2x8x8xf32>
    %309 = vector.extract_strided_slice %250 {offsets = [0, 80], sizes = [16, 8], strides = [1, 1]} : vector<16x96xf32> to vector<16x8xf32>
    %310 = vector.shape_cast %309 : vector<16x8xf32> to vector<2x8x8xf32>
    %311 = arith.truncf %306 : vector<2x8x8xf32> to vector<2x8x8xbf16>
    %312 = arith.truncf %308 : vector<2x8x8xf32> to vector<2x8x8xbf16>
    "tpu.trace_start"() <{level = 10 : i32, message = "bqd,bkd->bqk"}> : () -> ()
    %cst_122 = arith.constant dense<0.000000e+00> : vector<2x8x8xf32>
    %313 = tpu.matmul %311, %312, %cst_122 {dimension_numbers = #tpu.dot_dimension_numbers<[2], [2], [1], [1], [0, 0, 0, 1, 1, 1], [0], [0]>} : vector<2x8x8xbf16>, vector<2x8x8xbf16>, vector<2x8x8xf32> -> vector<2x8x8xf32>
    "tpu.trace_stop"() : () -> ()
    %cst_123 = arith.constant 0.353553385 : f32
    %314 = vector.broadcast %cst_123 : f32 to vector<2x8x8xf32>
    %315 = arith.mulf %313, %314 : vector<2x8x8xf32>
    %316 = vector.broadcast %34 : vector<2x1x8xf32> to vector<2x8x8xf32>
    %317 = arith.addf %315, %316 : vector<2x8x8xf32>
    %cst_124 = arith.constant dense<0xFF800000> : vector<2x8xf32>
    %318 = vector.multi_reduction <maximumf>, %317, %cst_124 [2] : vector<2x8x8xf32> to vector<2x8xf32>
    %319 = vector.shape_cast %318 : vector<2x8xf32> to vector<2x8x1xf32>
    %320 = vector.broadcast %319 : vector<2x8x1xf32> to vector<2x8x8xf32>
    %321 = arith.subf %317, %320 : vector<2x8x8xf32>
    %322 = math.exp %321 : vector<2x8x8xf32>
    %cst_125 = arith.constant dense<0.000000e+00> : vector<2x8xf32>
    %323 = vector.multi_reduction <add>, %322, %cst_125 [2] : vector<2x8x8xf32> to vector<2x8xf32>
    %324 = vector.shape_cast %323 : vector<2x8xf32> to vector<2x8x1xf32>
    %325 = tpu.reciprocal %324 {approx = true} : vector<2x8x1xf32> -> vector<2x8x1xf32>
    %326 = vector.broadcast %325 : vector<2x8x1xf32> to vector<2x8x8xf32>
    %327 = arith.mulf %322, %326 : vector<2x8x8xf32>
    %328 = arith.truncf %327 : vector<2x8x8xf32> to vector<2x8x8xbf16>
    %329 = arith.truncf %310 : vector<2x8x8xf32> to vector<2x8x8xbf16>
    "tpu.trace_start"() <{level = 10 : i32, message = "bqk,bkd->bqd"}> : () -> ()
    %cst_126 = arith.constant dense<0.000000e+00> : vector<2x8x8xf32>
    %330 = tpu.matmul %328, %329, %cst_126 {dimension_numbers = #tpu.dot_dimension_numbers<[2], [1], [1], [2], [0, 0, 0, 1, 1, 2], [0], [0]>} : vector<2x8x8xbf16>, vector<2x8x8xbf16>, vector<2x8x8xf32> -> vector<2x8x8xf32>
    "tpu.trace_stop"() : () -> ()
    %331 = vector.shape_cast %330 : vector<2x8x8xf32> to vector<16x8xf32>
    %332 = vector.extract_strided_slice %250 {offsets = [0, 24], sizes = [16, 8], strides = [1, 1]} : vector<16x96xf32> to vector<16x8xf32>
    %333 = vector.shape_cast %332 : vector<16x8xf32> to vector<2x8x8xf32>
    %334 = vector.extract_strided_slice %250 {offsets = [0, 56], sizes = [16, 8], strides = [1, 1]} : vector<16x96xf32> to vector<16x8xf32>
    %335 = vector.shape_cast %334 : vector<16x8xf32> to vector<2x8x8xf32>
    %336 = vector.extract_strided_slice %250 {offsets = [0, 88], sizes = [16, 8], strides = [1, 1]} : vector<16x96xf32> to vector<16x8xf32>
    %337 = vector.shape_cast %336 : vector<16x8xf32> to vector<2x8x8xf32>
    %338 = arith.truncf %333 : vector<2x8x8xf32> to vector<2x8x8xbf16>
    %339 = arith.truncf %335 : vector<2x8x8xf32> to vector<2x8x8xbf16>
    "tpu.trace_start"() <{level = 10 : i32, message = "bqd,bkd->bqk"}> : () -> ()
    %cst_127 = arith.constant dense<0.000000e+00> : vector<2x8x8xf32>
    %340 = tpu.matmul %338, %339, %cst_127 {dimension_numbers = #tpu.dot_dimension_numbers<[2], [2], [1], [1], [0, 0, 0, 1, 1, 1], [0], [0]>} : vector<2x8x8xbf16>, vector<2x8x8xbf16>, vector<2x8x8xf32> -> vector<2x8x8xf32>
    "tpu.trace_stop"() : () -> ()
    %cst_128 = arith.constant 0.353553385 : f32
    %341 = vector.broadcast %cst_128 : f32 to vector<2x8x8xf32>
    %342 = arith.mulf %340, %341 : vector<2x8x8xf32>
    %343 = vector.broadcast %34 : vector<2x1x8xf32> to vector<2x8x8xf32>
    %344 = arith.addf %342, %343 : vector<2x8x8xf32>
    %cst_129 = arith.constant dense<0xFF800000> : vector<2x8xf32>
    %345 = vector.multi_reduction <maximumf>, %344, %cst_129 [2] : vector<2x8x8xf32> to vector<2x8xf32>
    %346 = vector.shape_cast %345 : vector<2x8xf32> to vector<2x8x1xf32>
    %347 = vector.broadcast %346 : vector<2x8x1xf32> to vector<2x8x8xf32>
    %348 = arith.subf %344, %347 : vector<2x8x8xf32>
    %349 = math.exp %348 : vector<2x8x8xf32>
    %cst_130 = arith.constant dense<0.000000e+00> : vector<2x8xf32>
    %350 = vector.multi_reduction <add>, %349, %cst_130 [2] : vector<2x8x8xf32> to vector<2x8xf32>
    %351 = vector.shape_cast %350 : vector<2x8xf32> to vector<2x8x1xf32>
    %352 = tpu.reciprocal %351 {approx = true} : vector<2x8x1xf32> -> vector<2x8x1xf32>
    %353 = vector.broadcast %352 : vector<2x8x1xf32> to vector<2x8x8xf32>
    %354 = arith.mulf %349, %353 : vector<2x8x8xf32>
    %355 = arith.truncf %354 : vector<2x8x8xf32> to vector<2x8x8xbf16>
    %356 = arith.truncf %337 : vector<2x8x8xf32> to vector<2x8x8xbf16>
    "tpu.trace_start"() <{level = 10 : i32, message = "bqk,bkd->bqd"}> : () -> ()
    %cst_131 = arith.constant dense<0.000000e+00> : vector<2x8x8xf32>
    %357 = tpu.matmul %355, %356, %cst_131 {dimension_numbers = #tpu.dot_dimension_numbers<[2], [1], [1], [2], [0, 0, 0, 1, 1, 2], [0], [0]>} : vector<2x8x8xbf16>, vector<2x8x8xbf16>, vector<2x8x8xf32> -> vector<2x8x8xf32>
    "tpu.trace_stop"() : () -> ()
    %358 = vector.shape_cast %357 : vector<2x8x8xf32> to vector<16x8xf32>
    %359 = tpu.concatenate %277, %304, %331, %358 in 1 : vector<16x8xf32>, vector<16x8xf32>, vector<16x8xf32>, vector<16x8xf32> -> vector<16x32xf32>
    %360 = arith.truncf %359 : vector<16x32xf32> to vector<16x32xbf16>
    %c0_132 = arith.constant 0 : index
    %c1_133 = arith.constant 1 : index
    %c0_134 = arith.constant 0 : index
    %c0_135 = arith.constant 0 : index
    %361 = vector.load %arg7[%c0_132, %c1_133, %c0_134, %c0_135] : memref<1x2x32x32xbf16, #tpu.memory_space<vmem>>, vector<1x1x32x32xbf16>
    %362 = vector.shape_cast %361 : vector<1x1x32x32xbf16> to vector<32x32xbf16>
    %cst_136 = arith.constant dense<0.000000e+00> : vector<16x32xf32>
    %363 = tpu.matmul %360, %362, %cst_136 {dimension_numbers = #tpu.dot_dimension_numbers<[1], [0], [0], [1], [0, 0, 1, 1], [], []>} : vector<16x32xbf16>, vector<32x32xbf16>, vector<16x32xf32> -> vector<16x32xf32>
    %c0_137 = arith.constant 0 : index
    %c1_138 = arith.constant 1 : index
    %c0_139 = arith.constant 0 : index
    %c0_140 = arith.constant 0 : index
    %364 = vector.load %arg8[%c0_137, %c1_138, %c0_139, %c0_140] : memref<1x2x1x32xf32, #tpu.memory_space<vmem>>, vector<1x1x1x32xf32>
    %365 = vector.shape_cast %364 : vector<1x1x1x32xf32> to vector<1x32xf32>
    %366 = vector.broadcast %365 : vector<1x32xf32> to vector<16x32xf32>
    %367 = arith.addf %363, %366 : vector<16x32xf32>
    %368 = arith.addf %367, %242 : vector<16x32xf32>
    %c0_141 = arith.constant 0 : index
    %c1_142 = arith.constant 1 : index
    %c0_143 = arith.constant 0 : index
    %c0_144 = arith.constant 0 : index
    %369 = vector.load %arg9[%c0_141, %c1_142, %c0_143, %c0_144] : memref<1x2x1x32xf32, #tpu.memory_space<vmem>>, vector<1x1x1x32xf32>
    %370 = vector.shape_cast %369 : vector<1x1x1x32xf32> to vector<1x32xf32>
    %c0_145 = arith.constant 0 : index
    %c1_146 = arith.constant 1 : index
    %c0_147 = arith.constant 0 : index
    %c0_148 = arith.constant 0 : index
    %371 = vector.load %arg10[%c0_145, %c1_146, %c0_147, %c0_148] : memref<1x2x1x32xf32, #tpu.memory_space<vmem>>, vector<1x1x1x32xf32>
    %372 = vector.shape_cast %371 : vector<1x1x1x32xf32> to vector<1x32xf32>
    %cst_149 = arith.constant dense<0.000000e+00> : vector<16xf32>
    %373 = vector.multi_reduction <add>, %368, %cst_149 [1] : vector<16x32xf32> to vector<16xf32>
    %374 = vector.shape_cast %373 : vector<16xf32> to vector<16x1xf32>
    %cst_150 = arith.constant 3.200000e+01 : f32
    %375 = vector.broadcast %cst_150 : f32 to vector<16x1xf32>
    %376 = arith.divf %374, %375 : vector<16x1xf32>
    %377 = vector.broadcast %376 : vector<16x1xf32> to vector<16x32xf32>
    %378 = arith.subf %368, %377 : vector<16x32xf32>
    %379 = arith.mulf %378, %378 : vector<16x32xf32>
    %cst_151 = arith.constant dense<0.000000e+00> : vector<16xf32>
    %380 = vector.multi_reduction <add>, %379, %cst_151 [1] : vector<16x32xf32> to vector<16xf32>
    %381 = vector.shape_cast %380 : vector<16xf32> to vector<16x1xf32>
    %cst_152 = arith.constant 3.200000e+01 : f32
    %382 = vector.broadcast %cst_152 : f32 to vector<16x1xf32>
    %383 = arith.divf %381, %382 : vector<16x1xf32>
    %384 = vector.broadcast %376 : vector<16x1xf32> to vector<16x32xf32>
    %385 = arith.subf %368, %384 : vector<16x32xf32>
    %cst_153 = arith.constant 9.99999996E-13 : f32
    %386 = vector.broadcast %cst_153 : f32 to vector<16x1xf32>
    %387 = arith.addf %383, %386 : vector<16x1xf32>
    %388 = math.rsqrt %387 : vector<16x1xf32>
    %389 = vector.broadcast %388 : vector<16x1xf32> to vector<16x32xf32>
    %390 = arith.mulf %385, %389 : vector<16x32xf32>
    %391 = vector.broadcast %370 : vector<1x32xf32> to vector<16x32xf32>
    %392 = arith.mulf %390, %391 : vector<16x32xf32>
    %393 = vector.broadcast %372 : vector<1x32xf32> to vector<16x32xf32>
    %394 = arith.addf %392, %393 : vector<16x32xf32>
    %395 = arith.truncf %394 : vector<16x32xf32> to vector<16x32xbf16>
    %c0_154 = arith.constant 0 : index
    %c1_155 = arith.constant 1 : index
    %c0_156 = arith.constant 0 : index
    %c0_157 = arith.constant 0 : index
    %396 = vector.load %arg11[%c0_154, %c1_155, %c0_156, %c0_157] : memref<1x2x32x64xbf16, #tpu.memory_space<vmem>>, vector<1x1x32x64xbf16>
    %397 = vector.shape_cast %396 : vector<1x1x32x64xbf16> to vector<32x64xbf16>
    %cst_158 = arith.constant dense<0.000000e+00> : vector<16x64xf32>
    %398 = tpu.matmul %395, %397, %cst_158 {dimension_numbers = #tpu.dot_dimension_numbers<[1], [0], [0], [1], [0, 0, 1, 1], [], []>} : vector<16x32xbf16>, vector<32x64xbf16>, vector<16x64xf32> -> vector<16x64xf32>
    %c0_159 = arith.constant 0 : index
    %c1_160 = arith.constant 1 : index
    %c0_161 = arith.constant 0 : index
    %c0_162 = arith.constant 0 : index
    %399 = vector.load %arg12[%c0_159, %c1_160, %c0_161, %c0_162] : memref<1x2x1x64xf32, #tpu.memory_space<vmem>>, vector<1x1x1x64xf32>
    %400 = vector.shape_cast %399 : vector<1x1x1x64xf32> to vector<1x64xf32>
    %401 = vector.broadcast %400 : vector<1x64xf32> to vector<16x64xf32>
    %402 = arith.addf %398, %401 : vector<16x64xf32>
    %cst_163 = arith.constant 5.000000e-01 : f32
    %403 = vector.broadcast %cst_163 : f32 to vector<16x64xf32>
    %404 = arith.mulf %403, %402 : vector<16x64xf32>
    %cst_164 = arith.constant 4.471500e-02 : f32
    %405 = vector.broadcast %cst_164 : f32 to vector<16x64xf32>
    %406 = arith.mulf %405, %402 : vector<16x64xf32>
    %407 = arith.mulf %406, %402 : vector<16x64xf32>
    %408 = arith.mulf %407, %402 : vector<16x64xf32>
    %409 = arith.addf %402, %408 : vector<16x64xf32>
    %cst_165 = arith.constant 0.797884583 : f32
    %410 = vector.broadcast %cst_165 : f32 to vector<16x64xf32>
    %411 = arith.mulf %410, %409 : vector<16x64xf32>
    %412 = math.tanh %411 : vector<16x64xf32>
    %cst_166 = arith.constant 1.000000e+00 : f32
    %413 = vector.broadcast %cst_166 : f32 to vector<16x64xf32>
    %414 = arith.addf %413, %412 : vector<16x64xf32>
    %415 = arith.mulf %404, %414 : vector<16x64xf32>
    %416 = arith.truncf %415 : vector<16x64xf32> to vector<16x64xbf16>
    %c0_167 = arith.constant 0 : index
    %c1_168 = arith.constant 1 : index
    %c0_169 = arith.constant 0 : index
    %c0_170 = arith.constant 0 : index
    %417 = vector.load %arg13[%c0_167, %c1_168, %c0_169, %c0_170] : memref<1x2x64x32xbf16, #tpu.memory_space<vmem>>, vector<1x1x64x32xbf16>
    %418 = vector.shape_cast %417 : vector<1x1x64x32xbf16> to vector<64x32xbf16>
    %cst_171 = arith.constant dense<0.000000e+00> : vector<16x32xf32>
    %419 = tpu.matmul %416, %418, %cst_171 {dimension_numbers = #tpu.dot_dimension_numbers<[1], [0], [0], [1], [0, 0, 1, 1], [], []>} : vector<16x64xbf16>, vector<64x32xbf16>, vector<16x32xf32> -> vector<16x32xf32>
    %c0_172 = arith.constant 0 : index
    %c1_173 = arith.constant 1 : index
    %c0_174 = arith.constant 0 : index
    %c0_175 = arith.constant 0 : index
    %420 = vector.load %arg14[%c0_172, %c1_173, %c0_174, %c0_175] : memref<1x2x1x32xf32, #tpu.memory_space<vmem>>, vector<1x1x1x32xf32>
    %421 = vector.shape_cast %420 : vector<1x1x1x32xf32> to vector<1x32xf32>
    %422 = vector.broadcast %421 : vector<1x32xf32> to vector<16x32xf32>
    %423 = arith.addf %419, %422 : vector<16x32xf32>
    %424 = arith.addf %423, %394 : vector<16x32xf32>
    %c0_176 = arith.constant 0 : index
    %c1_177 = arith.constant 1 : index
    %c0_178 = arith.constant 0 : index
    %c0_179 = arith.constant 0 : index
    %425 = vector.load %arg15[%c0_176, %c1_177, %c0_178, %c0_179] : memref<1x2x1x32xf32, #tpu.memory_space<vmem>>, vector<1x1x1x32xf32>
    %426 = vector.shape_cast %425 : vector<1x1x1x32xf32> to vector<1x32xf32>
    %c0_180 = arith.constant 0 : index
    %c1_181 = arith.constant 1 : index
    %c0_182 = arith.constant 0 : index
    %c0_183 = arith.constant 0 : index
    %427 = vector.load %arg16[%c0_180, %c1_181, %c0_182, %c0_183] : memref<1x2x1x32xf32, #tpu.memory_space<vmem>>, vector<1x1x1x32xf32>
    %428 = vector.shape_cast %427 : vector<1x1x1x32xf32> to vector<1x32xf32>
    %cst_184 = arith.constant dense<0.000000e+00> : vector<16xf32>
    %429 = vector.multi_reduction <add>, %424, %cst_184 [1] : vector<16x32xf32> to vector<16xf32>
    %430 = vector.shape_cast %429 : vector<16xf32> to vector<16x1xf32>
    %cst_185 = arith.constant 3.200000e+01 : f32
    %431 = vector.broadcast %cst_185 : f32 to vector<16x1xf32>
    %432 = arith.divf %430, %431 : vector<16x1xf32>
    %433 = vector.broadcast %432 : vector<16x1xf32> to vector<16x32xf32>
    %434 = arith.subf %424, %433 : vector<16x32xf32>
    %435 = arith.mulf %434, %434 : vector<16x32xf32>
    %cst_186 = arith.constant dense<0.000000e+00> : vector<16xf32>
    %436 = vector.multi_reduction <add>, %435, %cst_186 [1] : vector<16x32xf32> to vector<16xf32>
    %437 = vector.shape_cast %436 : vector<16xf32> to vector<16x1xf32>
    %cst_187 = arith.constant 3.200000e+01 : f32
    %438 = vector.broadcast %cst_187 : f32 to vector<16x1xf32>
    %439 = arith.divf %437, %438 : vector<16x1xf32>
    %440 = vector.broadcast %432 : vector<16x1xf32> to vector<16x32xf32>
    %441 = arith.subf %424, %440 : vector<16x32xf32>
    %cst_188 = arith.constant 9.99999996E-13 : f32
    %442 = vector.broadcast %cst_188 : f32 to vector<16x1xf32>
    %443 = arith.addf %439, %442 : vector<16x1xf32>
    %444 = math.rsqrt %443 : vector<16x1xf32>
    %445 = vector.broadcast %444 : vector<16x1xf32> to vector<16x32xf32>
    %446 = arith.mulf %441, %445 : vector<16x32xf32>
    %447 = vector.broadcast %426 : vector<1x32xf32> to vector<16x32xf32>
    %448 = arith.mulf %446, %447 : vector<16x32xf32>
    %449 = vector.broadcast %428 : vector<1x32xf32> to vector<16x32xf32>
    %450 = arith.addf %448, %449 : vector<16x32xf32>
    %451 = tpu.iota {dimensions = array<i32: 1>} : vector<2x16xi32>
    %452 = tpu.iota {dimensions = array<i32: 0>} : vector<2x16xi32>
    %c8_i32 = arith.constant 8 : i32
    %453 = vector.broadcast %c8_i32 : i32 to vector<2x16xi32>
    %454 = arith.muli %452, %453 : vector<2x16xi32>
    %455 = arith.cmpi eq, %451, %454 : vector<2x16xi32>
    %456 = arith.extui %455 : vector<2x16xi1> to vector<2x16xi32>
    %457 = arith.sitofp %456 : vector<2x16xi32> to vector<2x16xf32>
    %cst_189 = arith.constant dense<0.000000e+00> : vector<2x32xf32>
    %458 = tpu.matmul %457, %450, %cst_189 {dimension_numbers = #tpu.dot_dimension_numbers<[1], [0], [0], [1], [0, 0, 1, 1], [], []>} : vector<2x16xf32>, vector<16x32xf32>, vector<2x32xf32> -> vector<2x32xf32>
    %459 = arith.truncf %458 : vector<2x32xf32> to vector<2x32xbf16>
    %c0_190 = arith.constant 0 : index
    %c0_191 = arith.constant 0 : index
    %c0_192 = arith.constant 0 : index
    %460 = vector.load %arg17[%c0_190, %c0_191, %c0_192] : memref<1x32x32xbf16, #tpu.memory_space<vmem>>, vector<1x32x32xbf16>
    %461 = vector.shape_cast %460 : vector<1x32x32xbf16> to vector<32x32xbf16>
    %cst_193 = arith.constant dense<0.000000e+00> : vector<2x32xf32>
    %462 = tpu.matmul %459, %461, %cst_193 {dimension_numbers = #tpu.dot_dimension_numbers<[1], [0], [0], [1], [0, 0, 1, 1], [], []>} : vector<2x32xbf16>, vector<32x32xbf16>, vector<2x32xf32> -> vector<2x32xf32>
    %c0_194 = arith.constant 0 : index
    %c0_195 = arith.constant 0 : index
    %c0_196 = arith.constant 0 : index
    %463 = vector.load %arg18[%c0_194, %c0_195, %c0_196] : memref<1x1x32xf32, #tpu.memory_space<vmem>>, vector<1x1x32xf32>
    %464 = vector.shape_cast %463 : vector<1x1x32xf32> to vector<1x32xf32>
    %465 = vector.broadcast %464 : vector<1x32xf32> to vector<2x32xf32>
    %466 = arith.addf %462, %465 : vector<2x32xf32>
    %467 = math.tanh %466 : vector<2x32xf32>
    %c0_197 = arith.constant 0 : index
    %c0_198 = arith.constant 0 : index
    %c0_199 = arith.constant 0 : index
    %468 = vector.load %arg19[%c0_197, %c0_198, %c0_199] : memref<1x2x32xf32, #tpu.memory_space<vmem>>, vector<1x2x32xf32>
    %469 = vector.shape_cast %468 : vector<1x2x32xf32> to vector<2x32xf32>
    %470 = vector.shape_cast %467 : vector<2x32xf32> to vector<1x2x32xf32>
    tpu.vector_store %arg19[%c0_197, %c0_198, %c0_199], %470 {strides = array<i32>} : memref<1x2x32xf32, #tpu.memory_space<vmem>>, vector<1x2x32xf32>,
    return
  }
  func.func @transform_0(%arg0: i32) -> (i32, i32, i32) {
    %c0_i32 = arith.constant 0 : i32
    %c0_i32_0 = arith.constant 0 : i32
    %c0_i32_1 = arith.constant 0 : i32
    return %arg0, %c0_i32, %c0_i32_0 : i32, i32, i32
  }
  func.func @transform_1(%arg0: i32) -> (i32, i32, i32, i32) {
    %c0_i32 = arith.constant 0 : i32
    %c0_i32_0 = arith.constant 0 : i32
    %c0_i32_1 = arith.constant 0 : i32
    %c0_i32_2 = arith.constant 0 : i32
    return %arg0, %c0_i32, %c0_i32_0, %c0_i32_1 : i32, i32, i32, i32
  }
  func.func @transform_2(%arg0: i32) -> (i32, i32, i32) {
    %c0_i32 = arith.constant 0 : i32
    %c0_i32_0 = arith.constant 0 : i32
    %c0_i32_1 = arith.constant 0 : i32
    return %arg0, %c0_i32, %c0_i32_0 : i32, i32, i32
  }
  func.func @transform_3(%arg0: i32) -> (i32, i32, i32) {
    %c0_i32 = arith.constant 0 : i32
    %c0_i32_0 = arith.constant 0 : i32
    %c0_i32_1 = arith.constant 0 : i32
    return %arg0, %c0_i32, %c0_i32_0 : i32, i32, i32
  }
  func.func @transform_4(%arg0: i32) -> (i32, i32, i32, i32) {
    %c0_i32 = arith.constant 0 : i32
    %c0_i32_0 = arith.constant 0 : i32
    %c0_i32_1 = arith.constant 0 : i32
    %c0_i32_2 = arith.constant 0 : i32
    return %arg0, %c0_i32, %c0_i32_0, %c0_i32_1 : i32, i32, i32, i32
  }
  func.func @transform_5(%arg0: i32) -> (i32, i32, i32, i32) {
    %c0_i32 = arith.constant 0 : i32
    %c0_i32_0 = arith.constant 0 : i32
    %c0_i32_1 = arith.constant 0 : i32
    %c0_i32_2 = arith.constant 0 : i32
    return %arg0, %c0_i32, %c0_i32_0, %c0_i32_1 : i32, i32, i32, i32
  }
  func.func @transform_6(%arg0: i32) -> (i32, i32, i32, i32) {
    %c0_i32 = arith.constant 0 : i32
    %c0_i32_0 = arith.constant 0 : i32
    %c0_i32_1 = arith.constant 0 : i32
    %c0_i32_2 = arith.constant 0 : i32
    return %arg0, %c0_i32, %c0_i32_0, %c0_i32_1 : i32, i32, i32, i32
  }
  func.func @transform_7(%arg0: i32) -> (i32, i32, i32, i32) {
    %c0_i32 = arith.constant 0 : i32
    %c0_i32_0 = arith.constant 0 : i32
    %c0_i32_1 = arith.constant 0 : i32
    %c0_i32_2 = arith.constant 0 : i32
    return %arg0, %c0_i32, %c0_i32_0, %c0_i32_1 : i32, i32, i32, i32
  }
  func.func @transform_8(%arg0: i32) -> (i32, i32, i32, i32) {
    %c0_i32 = arith.constant 0 : i32
    %c0_i32_0 = arith.constant 0 : i32
    %c0_i32_1 = arith.constant 0 : i32
    %c0_i32_2 = arith.constant 0 : i32
    return %arg0, %c0_i32, %c0_i32_0, %c0_i32_1 : i32, i32, i32, i32
  }
  func.func @transform_9(%arg0: i32) -> (i32, i32, i32, i32) {
    %c0_i32 = arith.constant 0 : i32
    %c0_i32_0 = arith.constant 0 : i32
    %c0_i32_1 = arith.constant 0 : i32
    %c0_i32_2 = arith.constant 0 : i32
    return %arg0, %c0_i32, %c0_i32_0, %c0_i32_1 : i32, i32, i32, i32
  }
  func.func @transform_10(%arg0: i32) -> (i32, i32, i32, i32) {
    %c0_i32 = arith.constant 0 : i32
    %c0_i32_0 = arith.constant 0 : i32
    %c0_i32_1 = arith.constant 0 : i32
    %c0_i32_2 = arith.constant 0 : i32
    return %arg0, %c0_i32, %c0_i32_0, %c0_i32_1 : i32, i32, i32, i32
  }
  func.func @transform_11(%arg0: i32) -> (i32, i32, i32, i32) {
    %c0_i32 = arith.constant 0 : i32
    %c0_i32_0 = arith.constant 0 : i32
    %c0_i32_1 = arith.constant 0 : i32
    %c0_i32_2 = arith.constant 0 : i32
    return %arg0, %c0_i32, %c0_i32_0, %c0_i32_1 : i32, i32, i32, i32
  }
  func.func @transform_12(%arg0: i32) -> (i32, i32, i32, i32) {
    %c0_i32 = arith.constant 0 : i32
    %c0_i32_0 = arith.constant 0 : i32
    %c0_i32_1 = arith.constant 0 : i32
    %c0_i32_2 = arith.constant 0 : i32
    return %arg0, %c0_i32, %c0_i32_0, %c0_i32_1 : i32, i32, i32, i32
  }
  func.func @transform_13(%arg0: i32) -> (i32, i32, i32, i32) {
    %c0_i32 = arith.constant 0 : i32
    %c0_i32_0 = arith.constant 0 : i32
    %c0_i32_1 = arith.constant 0 : i32
    %c0_i32_2 = arith.constant 0 : i32
    return %arg0, %c0_i32, %c0_i32_0, %c0_i32_1 : i32, i32, i32, i32
  }
  func.func @transform_14(%arg0: i32) -> (i32, i32, i32, i32) {
    %c0_i32 = arith.constant 0 : i32
    %c0_i32_0 = arith.constant 0 : i32
    %c0_i32_1 = arith.constant 0 : i32
    %c0_i32_2 = arith.constant 0 : i32
    return %arg0, %c0_i32, %c0_i32_0, %c0_i32_1 : i32, i32, i32, i32
  }
  func.func @transform_15(%arg0: i32) -> (i32, i32, i32, i32) {
    %c0_i32 = arith.constant 0 : i32
    %c0_i32_0 = arith.constant 0 : i32
    %c0_i32_1 = arith.constant 0 : i32
    %c0_i32_2 = arith.constant 0 : i32
    return %arg0, %c0_i32, %c0_i32_0, %c0_i32_1 : i32, i32, i32, i32
  }
  func.func @transform_16(%arg0: i32) -> (i32, i32, i32) {
    %c0_i32 = arith.constant 0 : i32
    %c0_i32_0 = arith.constant 0 : i32
    %c0_i32_1 = arith.constant 0 : i32
    return %arg0, %c0_i32, %c0_i32_0 : i32, i32, i32
  }
  func.func @transform_17(%arg0: i32) -> (i32, i32, i32) {
    %c0_i32 = arith.constant 0 : i32
    %c0_i32_0 = arith.constant 0 : i32
    %c0_i32_1 = arith.constant 0 : i32
    return %arg0, %c0_i32, %c0_i32_0 : i32, i32, i32
  }
  func.func @transform_18(%arg0: i32) -> (i32, i32, i32) {
    %c0_i32 = arith.constant 0 : i32
    %c0_i32_0 = arith.constant 0 : i32
    %c0_i32_1 = arith.constant 0 : i32
    return %arg0, %c0_i32, %c0_i32_0 : i32, i32, i32
  }
}

</mosaic_0001>

<llo_original>
// kernel: monobert_forward.3
$region0: #{monobert_forward.3}
  #allocation0 [shape = 'u32[]', space=smem, size = 0x4, offset = 0x4, fixed_abs, tag = 'smem constant byte address 0x4 - core index']
  #allocation1 [shape = 'u32[144,128]{1,0:T(1,128)}', space=vmem, size = 0x12000, scoped, tag = 'internal scratch']
  #allocation2 [shape = 'f32[1,1]{1,0:T(1,128)S(1)}', space=vmem, size = 0x200, scoped, tag = 'scoped memory for monobert_forward.3']
  %s0 = inlined_call_operand.vmem [shape: f32[2,2,32], index: 0, kind: input, shape index: {}]
  %s1 = inlined_call_operand.vmem [shape: bf16[64,1], index: 1, kind: input, shape index: {}]
  %s2 = inlined_call_operand.<no memory space> [shape: f32[1,1], index: 2, kind: input, shape index: {}]
  %s3 = inlined_call_operand.hbm [shape: f32[2,64], index: 3, kind: output, shape index: {0}]
  %s4 = inlined_call_operand.vmem [shape: f32[2,1], index: 4, kind: output, shape index: {1}]
  %5 = xla_tuple %s3, %s4
  %s6 = sld [smem:[#allocation0]]
  $region30: #{monobert_forward.3} parent=0
    _
  %s8 = ssub.s32 1, %s6
  %s9 = scalar_select 0, %s8, %s6
  %v10 = vstv %s2
  %11 = vst [vmem:[#allocation2] sm:$0x1] %v10
  $region1: #{monobert_forward.3} parent=0
    #allocation3 [shape = 'u8[1024]{0}', space=vmem, size = 0x400, scoped, tag = 'output window, operand 0, single buffered']
    #allocation4 [shape = 's32[1]{0}', space=sflag, size = 0x4, scoped, tag = 'scoped memory for monobert_forward.3']
    %12 = vsyncpa [#allocation4], 0
    // Predicated region
    $region2: #{monobert_forward.3} parent=1 // pred_check
      _
    $region3: #{monobert_forward.3} parent=1 // pred_check_branch
      %14 = sbr.rel (0) target = $region5
    $region4: #{monobert_forward.3} parent=1 // pred_region
      _
    $region5: #{monobert_forward.3} parent=1 // pred_fallthru
      _
    // Predicated region
    $region6: #{monobert_forward.3} parent=1 // pred_check
      _
    $region7: #{monobert_forward.3} parent=1 // pred_check_branch
      %16 = sbr.rel (0) target = $region9
    $region8: #{monobert_forward.3} parent=1 // pred_region
      _
    $region9: #{monobert_forward.3} parent=1 // pred_fallthru
      _
    // Predicated region
    $region10: #{monobert_forward.3} parent=1 // pred_check
      _
    $region11: #{monobert_forward.3} parent=1 // pred_check_branch
      %18 = sbr.rel (0) target = $region13
    $region12: #{monobert_forward.3} parent=1 // pred_region
      _
    $region13: #{monobert_forward.3} parent=1 // pred_fallthru
      _
    %v20 = vld [vmem:[%s0] sm:$0x3]
    %s21 = scalar_lea.vmem %s0, 2
    %v22 = vld [vmem:[%s21] sm:$0x3]
    %24 = vrot.lane.b32.xlu0 %v22, 32
    %v25 = vpop.permute.xlu0 %24
    %vm27 = vcmask 261120
    %v28 = vsel %vm27, %v20, %v25
    %vm29 = vcmask 517120
    %30 = vst.msk [vmem:[#allocation3] sm:$0x3] %vm29, %v28
    %v31 = vpack.c.bf16 %v28, %v28
    %v32 = vld [vmem:[%s1] sm:$0xf]
    %v33 = vld [vmem:[%s1 + $0x4] sm:$0xf]
    %v34 = vld [vmem:[%s1 + $0x8] sm:$0xf]
    %v35 = vld [vmem:[%s1 + $0xc] sm:$0xf]
    %v36 = vld [vmem:[%s1 + $0x10] sm:$0xf]
    %v37 = vld [vmem:[%s1 + $0x14] sm:$0xf]
    %v38 = vld [vmem:[%s1 + $0x18] sm:$0xf]
    %v39 = vld [vmem:[%s1 + $0x1c] sm:$0xf]
    %v40 = vld [vmem:[#allocation2] sm:$0x1]
    %v42 = vlaneseq
    %v43 = vshrl.u32 %v42, 7
    %v44 = vsub.s32 0, %v43
    %v45 = vrot.slane %v40, %v44
    %v55 = vunpack.c.l.b16 %v32
    %v56 = vunpack.c.l.b16 %v33
    %v57 = vunpack.c.l.b16 %v34
    %v58 = vunpack.c.l.b16 %v35
    %v59 = vunpack.c.l.b16 %v36
    %v60 = vunpack.c.l.b16 %v37
    %v61 = vunpack.c.l.b16 %v38
    %v62 = vunpack.c.l.b16 %v39
    %v63 = vpack.c.b16 %v56, %v55
    %v64 = vpack.c.b16 %v58, %v57
    %v65 = vpack.c.b16 %v60, %v59
    %v66 = vpack.c.b16 %v62, %v61
    %vm71 = vcmask 523264
    %v73 = vsel %vm71, %v31, 0
    %75 = vmatprep.subr.bf16.mxu0 0
    %76 = vmatpush1.bf16.msra.mxu0 %v63
    %77 = vmatprep.subr.bf16.mxu0 0
    %78 = vmatpush1.bf16.msra.mxu0 %v64
    %79 = vmatprep.subr.bf16.mxu0 0
    %80 = vmatpush1.bf16.msra.mxu0 %v65
    %81 = vmatprep.subr.bf16.mxu0 0
    %82 = vmatpush1.bf16.msra.mxu0 %v66
    %83 = vmatprep.subr.bf16.mxu0 0
    %84 = vmatpush1.bf16.msra.mxu0 0
    %85 = vmatprep.subr.bf16.mxu0 0
    %86 = vmatpush1.bf16.msra.mxu0 0
    %87 = vmatprep.subr.bf16.mxu0 0
    %88 = vmatpush1.bf16.msra.mxu0 0
    %89 = vmatprep.subr.bf16.mxu0 0
    %90 = vmatpush1.bf16.msra.mxu0 0
    %91 = vmatprep.subr.bf16.mxu0 0
    %92 = vmatpush1.bf16.msra.mxu0 0
    %93 = vmatprep.subr.bf16.mxu0 0
    %94 = vmatpush1.bf16.msra.mxu0 0
    %95 = vmatprep.subr.bf16.mxu0 0
    %96 = vmatpush1.bf16.msra.mxu0 0
    %97 = vmatprep.subr.bf16.mxu0 0
    %98 = vmatpush1.bf16.msra.mxu0 0
    %99 = vmatprep.subr.bf16.mxu0 0
    %100 = vmatpush1.bf16.msra.mxu0 0
    %101 = vmatprep.subr.bf16.mxu0 0
    %102 = vmatpush1.bf16.msra.mxu0 0
    %103 = vmatprep.subr.bf16.mxu0 0
    %104 = vmatpush1.bf16.msra.mxu0 0
    %105 = vmatprep.subr.bf16.mxu0 0
    %106 = vmatpush1.bf16.msra.mxu0 0
    %107 = vmatprep.mubr.bf16.mxu0 0
    %108 = vmatmul.mubr.bf16.gmra.mrb[0].mxu0 %v73
    %v109 = vpop.f32.mrb[0].mxu0
    %v110 = vadd.f32 %v45, %v109
    %v111 = vpop.f32.mrb[0].mxu0
    %v112 = vpop.f32.mrb[0].mxu0
    %v113 = vpop.f32.mrb[0].mxu0
    %114 = vdwg.mxu0
    %v115 = vmax.f32 %v110, 0.0
    %vm116 = vcmask 1024
    %117 = vst.msk [vmem:[%s4] sm:$0x3] %vm116, %v115
    // Predicated region
    $region14: #{monobert_forward.3} parent=1 // pred_check
      _
    $region15: #{monobert_forward.3} parent=1 // pred_check_branch
      %119 = sbr.rel (0) target = $region17
    $region16: #{monobert_forward.3} parent=1 // pred_region
      %s121 = ssub.s32 32, 32
      %122 = vsyncadd [#allocation4], %s121
      %s124 = sshll.u32 [#allocation3], 4
      %s125 = int_to_ptr.vmem [resolvable:$true] %s124
      %127 = dma.vmem_to_hbm [thread:$0]  %s125, 32, %s3, [#allocation4]
    $region17: #{monobert_forward.3} parent=1 // pred_fallthru
      _
    // Predicated region
    $region18: #{monobert_forward.3} parent=1 // pred_check
      _
    $region19: #{monobert_forward.3} parent=1 // pred_check_branch
      %129 = sbr.rel (0) target = $region21
    $region20: #{monobert_forward.3} parent=1 // pred_region
      _
    $region21: #{monobert_forward.3} parent=1 // pred_fallthru
      _
    // Predicated region
    $region22: #{monobert_forward.3} parent=1 // pred_check
      _
    $region23: #{monobert_forward.3} parent=1 // pred_check_branch
      %131 = sbr.rel (0) target = $region25
    $region24: #{monobert_forward.3} parent=1 // pred_region
      %132 = dma.done [#allocation4], 32
    $region25: #{monobert_forward.3} parent=1 // pred_fallthru
      _
    // Predicated region
    $region26: #{monobert_forward.3} parent=1 // pred_check
      _
    $region27: #{monobert_forward.3} parent=1 // pred_check_branch
      %134 = sbr.rel (0) target = $region29
    $region28: #{monobert_forward.3} parent=1 // pred_region
      _
    $region29: #{monobert_forward.3} parent=1 // pred_fallthru
      _
    %135 = vsyncpa [#allocation4], 1

// kernel: monobert_forward.2
$region0: #{monobert_forward.2}
  #allocation0 [shape = 'u32[]', space=smem, size = 0x4, offset = 0x4, fixed_abs, tag = 'smem constant byte address 0x4 - core index']
  #allocation1 [shape = 'u32[144,128]{1,0:T(1,128)}', space=vmem, size = 0x12000, scoped, tag = 'internal scratch']
  %s0 = inlined_call_operand.vmem [shape: f32[2,16,32], index: 0, kind: input, shape index: {}]
  %s1 = inlined_call_operand.vmem [shape: s32[2,2,1,8], index: 1, kind: input, shape index: {}]
  %s2 = inlined_call_operand.vmem [shape: f32[2,1,32], index: 2, kind: input, shape index: {}]
  %s3 = inlined_call_operand.vmem [shape: f32[2,1,32], index: 3, kind: input, shape index: {}]
  %s4 = inlined_call_operand.vmem [shape: bf16[2,2,32,96], index: 4, kind: input, shape index: {}]
  %s5 = inlined_call_operand.vmem [shape: f32[2,2,1,96], index: 5, kind: input, shape index: {}]
  %s6 = inlined_call_operand.vmem [shape: bf16[2,2,32,32], index: 6, kind: input, shape index: {}]
  %s7 = inlined_call_operand.vmem [shape: f32[2,2,1,32], index: 7, kind: input, shape index: {}]
  %s8 = inlined_call_operand.vmem [shape: f32[2,2,1,32], index: 8, kind: input, shape index: {}]
  %s9 = inlined_call_operand.vmem [shape: f32[2,2,1,32], index: 9, kind: input, shape index: {}]
  %s10 = inlined_call_operand.vmem [shape: bf16[2,2,32,64], index: 10, kind: input, shape index: {}]
  %s11 = inlined_call_operand.vmem [shape: f32[2,2,1,64], index: 11, kind: input, shape index: {}]
  %s12 = inlined_call_operand.vmem [shape: bf16[2,2,64,32], index: 12, kind: input, shape index: {}]
  %s13 = inlined_call_operand.vmem [shape: f32[2,2,1,32], index: 13, kind: input, shape index: {}]
  %s14 = inlined_call_operand.vmem [shape: f32[2,2,1,32], index: 14, kind: input, shape index: {}]
  %s15 = inlined_call_operand.vmem [shape: f32[2,2,1,32], index: 15, kind: input, shape index: {}]
  %s16 = inlined_call_operand.vmem [shape: bf16[2,32,32], index: 16, kind: input, shape index: {}]
  %s17 = inlined_call_operand.vmem [shape: f32[2,1,32], index: 17, kind: input, shape index: {}]
  %s18 = inlined_call_operand.vmem [shape: f32[2,2,32], index: 18, kind: output, shape index: {}]
  %s19 = sld [smem:[#allocation0]]
  $region105: #{monobert_forward.2} parent=0
    _
  %s21 = ssub.s32 1, %s19
  %s22 = scalar_select 0, %s21, %s19
  loop: start=0, step=1, limit=4
  $region2: #{monobert_forward.2} parent=0 // loop_pre_header
    _
  $region3: #{monobert_forward.2} parent=0 // loop_header
    %s24 = sphi 0, %s28
    %p25 = scmp.ge.s32.totalorder %s24, 4
    %s34 = sphi 0, %s36
    %s37 = sphi 0, %s34
    %s38 = sphi 0, %s37
    %s54 = sphi 0, %s38
    %s60 = sphi 0, %s62
    %s63 = sphi 0, %s60
    %s64 = sphi 0, %s63
    %s80 = sphi 0, %s64
    %s86 = sphi 0, %s88
    %s89 = sphi 0, %s86
    %s90 = sphi 0, %s89
    %s106 = sphi 0, %s90
    %s112 = sphi 0, %s114
    %s115 = sphi 0, %s112
    %s116 = sphi 0, %s115
    %s132 = sphi 0, %s116
    %s138 = sphi 0, %s140
    %s141 = sphi 0, %s138
    %s142 = sphi 0, %s141
    %s158 = sphi 0, %s142
    %s164 = sphi 0, %s166
    %s167 = sphi 0, %s164
    %s168 = sphi 0, %s167
    %s184 = sphi 0, %s168
    %s190 = sphi 0, %s192
    %s193 = sphi 0, %s190
    %s194 = sphi 0, %s193
    %s210 = sphi 0, %s194
    %s216 = sphi 0, %s218
    %s219 = sphi 0, %s216
    %s220 = sphi 0, %s219
    %s236 = sphi 0, %s220
    %s242 = sphi 0, %s244
    %s245 = sphi 0, %s242
    %s246 = sphi 0, %s245
    %s262 = sphi 0, %s246
    %s268 = sphi 0, %s270
    %s271 = sphi 0, %s268
    %s272 = sphi 0, %s271
    %s288 = sphi 0, %s272
    %s294 = sphi 0, %s296
    %s297 = sphi 0, %s294
    %s298 = sphi 0, %s297
    %s314 = sphi 0, %s298
    %s320 = sphi 0, %s322
    %s323 = sphi 0, %s320
    %s324 = sphi 0, %s323
    %s340 = sphi 0, %s324
    %s346 = sphi 0, %s348
    %s349 = sphi 0, %s346
    %s350 = sphi 0, %s349
    %s366 = sphi 0, %s350
    %s372 = sphi 0, %s374
    %s375 = sphi 0, %s372
    %s376 = sphi 0, %s375
    %s392 = sphi 0, %s376
    %s398 = sphi 0, %s400
    %s401 = sphi 0, %s398
    %s402 = sphi 0, %s401
    %s418 = sphi 0, %s402
    %s424 = sphi 0, %s426
    %s427 = sphi 0, %s424
    %s428 = sphi 0, %s427
    %s444 = sphi 0, %s428
    %s450 = sphi 0, %s452
    %s453 = sphi 0, %s450
    %s454 = sphi 0, %s453
    %s470 = sphi 0, %s454
    %s476 = sphi 0, %s478
    %s479 = sphi 0, %s476
    %s480 = sphi 0, %s479
    %s496 = sphi 0, %s480
    %s502 = sphi 0, %s504
    %s505 = sphi 0, %s502
    %s506 = sphi 0, %s505
    %s522 = sphi 0, %s506
  $region4: #{monobert_forward.2} parent=0 // loop_header_branch
    %27 = sbr.rel (%p25) target = $region8
  $region5: #{monobert_forward.2} parent=0 // loop_body
    %s29 = ssub.s32 %s24, 1
    %s30 = ssub.s32 %s24, 2
    %s31 = sadd.s32 %s24, 1
    %s32 = ssub.s32 %s24, %s31
    %p33 = scmp.eq.s32.totalorder %s32, 0
    %s35 = sadd.s32 %s34, 1
    %s36 = scalar_select %p33, %s34, %s35
    %p39 = pneg %p33
    %p40 = scmp.eq.s32.totalorder %s24, 1
    %p41 = por %p39, %p40
    %p42 = scmp.ne.s32.totalorder %s34, %s37
    %p43 = scmp.eq.s32.totalorder %s24, 0
    %p44 = por %p42, %p43
    %p45 = scmp.ne.s32.totalorder %s34, %s37
    %p46 = scmp.eq.s32.totalorder %s29, 1
    %p47 = por %p45, %p46
    %p48 = scmp.ne.s32.totalorder %s37, %s38
    %p49 = scmp.eq.s32.totalorder %s29, 0
    %p50 = por %p48, %p49
    %p51 = scmp.ne.s32.totalorder %s37, %s38
    %p52 = scmp.eq.s32.totalorder %s30, 1
    %p53 = por %p51, %p52
    %p55 = scmp.ne.s32.totalorder %s38, %s54
    %p56 = scmp.eq.s32.totalorder %s30, 0
    %p57 = por %p55, %p56
    %s58 = ssub.s32 %s24, %s31
    %p59 = scmp.eq.s32.totalorder %s58, 0
    %s61 = sadd.s32 %s60, 1
    %s62 = scalar_select %p59, %s60, %s61
    %p65 = pneg %p59
    %p66 = scmp.eq.s32.totalorder %s24, 1
    %p67 = por %p65, %p66
    %p68 = scmp.ne.s32.totalorder %s60, %s63
    %p69 = scmp.eq.s32.totalorder %s24, 0
    %p70 = por %p68, %p69
    %p71 = scmp.ne.s32.totalorder %s60, %s63
    %p72 = scmp.eq.s32.totalorder %s29, 1
    %p73 = por %p71, %p72
    %p74 = scmp.ne.s32.totalorder %s63, %s64
    %p75 = scmp.eq.s32.totalorder %s29, 0
    %p76 = por %p74, %p75
    %p77 = scmp.ne.s32.totalorder %s63, %s64
    %p78 = scmp.eq.s32.totalorder %s30, 1
    %p79 = por %p77, %p78
    %p81 = scmp.ne.s32.totalorder %s64, %s80
    %p82 = scmp.eq.s32.totalorder %s30, 0
    %p83 = por %p81, %p82
    %s84 = ssub.s32 %s24, %s31
    %p85 = scmp.eq.s32.totalorder %s84, 0
    %s87 = sadd.s32 %s86, 1
    %s88 = scalar_select %p85, %s86, %s87
    %p91 = pneg %p85
    %p92 = scmp.eq.s32.totalorder %s24, 1
    %p93 = por %p91, %p92
    %p94 = scmp.ne.s32.totalorder %s86, %s89
    %p95 = scmp.eq.s32.totalorder %s24, 0
    %p96 = por %p94, %p95
    %p97 = scmp.ne.s32.totalorder %s86, %s89
    %p98 = scmp.eq.s32.totalorder %s29, 1
    %p99 = por %p97, %p98
    %p100 = scmp.ne.s32.totalorder %s89, %s90
    %p101 = scmp.eq.s32.totalorder %s29, 0
    %p102 = por %p100, %p101
    %p103 = scmp.ne.s32.totalorder %s89, %s90
    %p104 = scmp.eq.s32.totalorder %s30, 1
    %p105 = por %p103, %p104
    %p107 = scmp.ne.s32.totalorder %s90, %s106
    %p108 = scmp.eq.s32.totalorder %s30, 0
    %p109 = por %p107, %p108
    %s110 = ssub.s32 %s24, %s31
    %p111 = scmp.eq.s32.totalorder %s110, 0
    %s113 = sadd.s32 %s112, 1
    %s114 = scalar_select %p111, %s112, %s113
    %p117 = pneg %p111
    %p118 = scmp.eq.s32.totalorder %s24, 1
    %p119 = por %p117, %p118
    %p120 = scmp.ne.s32.totalorder %s112, %s115
    %p121 = scmp.eq.s32.totalorder %s24, 0
    %p122 = por %p120, %p121
    %p123 = scmp.ne.s32.totalorder %s112, %s115
    %p124 = scmp.eq.s32.totalorder %s29, 1
    %p125 = por %p123, %p124
    %p126 = scmp.ne.s32.totalorder %s115, %s116
    %p127 = scmp.eq.s32.totalorder %s29, 0
    %p128 = por %p126, %p127
    %p129 = scmp.ne.s32.totalorder %s115, %s116
    %p130 = scmp.eq.s32.totalorder %s30, 1
    %p131 = por %p129, %p130
    %p133 = scmp.ne.s32.totalorder %s116, %s132
    %p134 = scmp.eq.s32.totalorder %s30, 0
    %p135 = por %p133, %p134
    %s136 = ssub.s32 %s24, %s31
    %p137 = scmp.eq.s32.totalorder %s136, 0
    %s139 = sadd.s32 %s138, 1
    %s140 = scalar_select %p137, %s138, %s139
    %p143 = pneg %p137
    %p144 = scmp.eq.s32.totalorder %s24, 1
    %p145 = por %p143, %p144
    %p146 = scmp.ne.s32.totalorder %s138, %s141
    %p147 = scmp.eq.s32.totalorder %s24, 0
    %p148 = por %p146, %p147
    %p149 = scmp.ne.s32.totalorder %s138, %s141
    %p150 = scmp.eq.s32.totalorder %s29, 1
    %p151 = por %p149, %p150
    %p152 = scmp.ne.s32.totalorder %s141, %s142
    %p153 = scmp.eq.s32.totalorder %s29, 0
    %p154 = por %p152, %p153
    %p155 = scmp.ne.s32.totalorder %s141, %s142
    %p156 = scmp.eq.s32.totalorder %s30, 1
    %p157 = por %p155, %p156
    %p159 = scmp.ne.s32.totalorder %s142, %s158
    %p160 = scmp.eq.s32.totalorder %s30, 0
    %p161 = por %p159, %p160
    %s162 = ssub.s32 %s24, %s31
    %p163 = scmp.eq.s32.totalorder %s162, 0
    %s165 = sadd.s32 %s164, 1
    %s166 = scalar_select %p163, %s164, %s165
    %p169 = pneg %p163
    %p170 = scmp.eq.s32.totalorder %s24, 1
    %p171 = por %p169, %p170
    %p172 = scmp.ne.s32.totalorder %s164, %s167
    %p173 = scmp.eq.s32.totalorder %s24, 0
    %p174 = por %p172, %p173
    %p175 = scmp.ne.s32.totalorder %s164, %s167
    %p176 = scmp.eq.s32.totalorder %s29, 1
    %p177 = por %p175, %p176
    %p178 = scmp.ne.s32.totalorder %s167, %s168
    %p179 = scmp.eq.s32.totalorder %s29, 0
    %p180 = por %p178, %p179
    %p181 = scmp.ne.s32.totalorder %s167, %s168
    %p182 = scmp.eq.s32.totalorder %s30, 1
    %p183 = por %p181, %p182
    %p185 = scmp.ne.s32.totalorder %s168, %s184
    %p186 = scmp.eq.s32.totalorder %s30, 0
    %p187 = por %p185, %p186
    %s188 = ssub.s32 %s24, %s31
    %p189 = scmp.eq.s32.totalorder %s188, 0
    %s191 = sadd.s32 %s190, 1
    %s192 = scalar_select %p189, %s190, %s191
    %p195 = pneg %p189
    %p196 = scmp.eq.s32.totalorder %s24, 1
    %p197 = por %p195, %p196
    %p198 = scmp.ne.s32.totalorder %s190, %s193
    %p199 = scmp.eq.s32.totalorder %s24, 0
    %p200 = por %p198, %p199
    %p201 = scmp.ne.s32.totalorder %s190, %s193
    %p202 = scmp.eq.s32.totalorder %s29, 1
    %p203 = por %p201, %p202
    %p204 = scmp.ne.s32.totalorder %s193, %s194
    %p205 = scmp.eq.s32.totalorder %s29, 0
    %p206 = por %p204, %p205
    %p207 = scmp.ne.s32.totalorder %s193, %s194
    %p208 = scmp.eq.s32.totalorder %s30, 1
    %p209 = por %p207, %p208
    %p211 = scmp.ne.s32.totalorder %s194, %s210
    %p212 = scmp.eq.s32.totalorder %s30, 0
    %p213 = por %p211, %p212
    %s214 = ssub.s32 %s24, %s31
    %p215 = scmp.eq.s32.totalorder %s214, 0
    %s217 = sadd.s32 %s216, 1
    %s218 = scalar_select %p215, %s216, %s217
    %p221 = pneg %p215
    %p222 = scmp.eq.s32.totalorder %s24, 1
    %p223 = por %p221, %p222
    %p224 = scmp.ne.s32.totalorder %s216, %s219
    %p225 = scmp.eq.s32.totalorder %s24, 0
    %p226 = por %p224, %p225
    %p227 = scmp.ne.s32.totalorder %s216, %s219
    %p228 = scmp.eq.s32.totalorder %s29, 1
    %p229 = por %p227, %p228
    %p230 = scmp.ne.s32.totalorder %s219, %s220
    %p231 = scmp.eq.s32.totalorder %s29, 0
    %p232 = por %p230, %p231
    %p233 = scmp.ne.s32.totalorder %s219, %s220
    %p234 = scmp.eq.s32.totalorder %s30, 1
    %p235 = por %p233, %p234
    %p237 = scmp.ne.s32.totalorder %s220, %s236
    %p238 = scmp.eq.s32.totalorder %s30, 0
    %p239 = por %p237, %p238
    %s240 = ssub.s32 %s24, %s31
    %p241 = scmp.eq.s32.totalorder %s240, 0
    %s243 = sadd.s32 %s242, 1
    %s244 = scalar_select %p241, %s242, %s243
    %p247 = pneg %p241
    %p248 = scmp.eq.s32.totalorder %s24, 1
    %p249 = por %p247, %p248
    %p250 = scmp.ne.s32.totalorder %s242, %s245
    %p251 = scmp.eq.s32.totalorder %s24, 0
    %p252 = por %p250, %p251
    %p253 = scmp.ne.s32.totalorder %s242, %s245
    %p254 = scmp.eq.s32.totalorder %s29, 1
    %p255 = por %p253, %p254
    %p256 = scmp.ne.s32.totalorder %s245, %s246
    %p257 = scmp.eq.s32.totalorder %s29, 0
    %p258 = por %p256, %p257
    %p259 = scmp.ne.s32.totalorder %s245, %s246
    %p260 = scmp.eq.s32.totalorder %s30, 1
    %p261 = por %p259, %p260
    %p263 = scmp.ne.s32.totalorder %s246, %s262
    %p264 = scmp.eq.s32.totalorder %s30, 0
    %p265 = por %p263, %p264
    %s266 = ssub.s32 %s24, %s31
    %p267 = scmp.eq.s32.totalorder %s266, 0
    %s269 = sadd.s32 %s268, 1
    %s270 = scalar_select %p267, %s268, %s269
    %p273 = pneg %p267
    %p274 = scmp.eq.s32.totalorder %s24, 1
    %p275 = por %p273, %p274
    %p276 = scmp.ne.s32.totalorder %s268, %s271
    %p277 = scmp.eq.s32.totalorder %s24, 0
    %p278 = por %p276, %p277
    %p279 = scmp.ne.s32.totalorder %s268, %s271
    %p280 = scmp.eq.s32.totalorder %s29, 1
    %p281 = por %p279, %p280
    %p282 = scmp.ne.s32.totalorder %s271, %s272
    %p283 = scmp.eq.s32.totalorder %s29, 0
    %p284 = por %p282, %p283
    %p285 = scmp.ne.s32.totalorder %s271, %s272
    %p286 = scmp.eq.s32.totalorder %s30, 1
    %p287 = por %p285, %p286
    %p289 = scmp.ne.s32.totalorder %s272, %s288
    %p290 = scmp.eq.s32.totalorder %s30, 0
    %p291 = por %p289, %p290
    %s292 = ssub.s32 %s24, %s31
    %p293 = scmp.eq.s32.totalorder %s292, 0
    %s295 = sadd.s32 %s294, 1
    %s296 = scalar_select %p293, %s294, %s295
    %p299 = pneg %p293
    %p300 = scmp.eq.s32.totalorder %s24, 1
    %p301 = por %p299, %p300
    %p302 = scmp.ne.s32.totalorder %s294, %s297
    %p303 = scmp.eq.s32.totalorder %s24, 0
    %p304 = por %p302, %p303
    %p305 = scmp.ne.s32.totalorder %s294, %s297
    %p306 = scmp.eq.s32.totalorder %s29, 1
    %p307 = por %p305, %p306
    %p308 = scmp.ne.s32.totalorder %s297, %s298
    %p309 = scmp.eq.s32.totalorder %s29, 0
    %p310 = por %p308, %p309
    %p311 = scmp.ne.s32.totalorder %s297, %s298
    %p312 = scmp.eq.s32.totalorder %s30, 1
    %p313 = por %p311, %p312
    %p315 = scmp.ne.s32.totalorder %s298, %s314
    %p316 = scmp.eq.s32.totalorder %s30, 0
    %p317 = por %p315, %p316
    %s318 = ssub.s32 %s24, %s31
    %p319 = scmp.eq.s32.totalorder %s318, 0
    %s321 = sadd.s32 %s320, 1
    %s322 = scalar_select %p319, %s320, %s321
    %p325 = pneg %p319
    %p326 = scmp.eq.s32.totalorder %s24, 1
    %p327 = por %p325, %p326
    %p328 = scmp.ne.s32.totalorder %s320, %s323
    %p329 = scmp.eq.s32.totalorder %s24, 0
    %p330 = por %p328, %p329
    %p331 = scmp.ne.s32.totalorder %s320, %s323
    %p332 = scmp.eq.s32.totalorder %s29, 1
    %p333 = por %p331, %p332
    %p334 = scmp.ne.s32.totalorder %s323, %s324
    %p335 = scmp.eq.s32.totalorder %s29, 0
    %p336 = por %p334, %p335
    %p337 = scmp.ne.s32.totalorder %s323, %s324
    %p338 = scmp.eq.s32.totalorder %s30, 1
    %p339 = por %p337, %p338
    %p341 = scmp.ne.s32.totalorder %s324, %s340
    %p342 = scmp.eq.s32.totalorder %s30, 0
    %p343 = por %p341, %p342
    %s344 = ssub.s32 %s24, %s31
    %p345 = scmp.eq.s32.totalorder %s344, 0
    %s347 = sadd.s32 %s346, 1
    %s348 = scalar_select %p345, %s346, %s347
    %p351 = pneg %p345
    %p352 = scmp.eq.s32.totalorder %s24, 1
    %p353 = por %p351, %p352
    %p354 = scmp.ne.s32.totalorder %s346, %s349
    %p355 = scmp.eq.s32.totalorder %s24, 0
    %p356 = por %p354, %p355
    %p357 = scmp.ne.s32.totalorder %s346, %s349
    %p358 = scmp.eq.s32.totalorder %s29, 1
    %p359 = por %p357, %p358
    %p360 = scmp.ne.s32.totalorder %s349, %s350
    %p361 = scmp.eq.s32.totalorder %s29, 0
    %p362 = por %p360, %p361
    %p363 = scmp.ne.s32.totalorder %s349, %s350
    %p364 = scmp.eq.s32.totalorder %s30, 1
    %p365 = por %p363, %p364
    %p367 = scmp.ne.s32.totalorder %s350, %s366
    %p368 = scmp.eq.s32.totalorder %s30, 0
    %p369 = por %p367, %p368
    %s370 = ssub.s32 %s24, %s31
    %p371 = scmp.eq.s32.totalorder %s370, 0
    %s373 = sadd.s32 %s372, 1
    %s374 = scalar_select %p371, %s372, %s373
    %p377 = pneg %p371
    %p378 = scmp.eq.s32.totalorder %s24, 1
    %p379 = por %p377, %p378
    %p380 = scmp.ne.s32.totalorder %s372, %s375
    %p381 = scmp.eq.s32.totalorder %s24, 0
    %p382 = por %p380, %p381
    %p383 = scmp.ne.s32.totalorder %s372, %s375
    %p384 = scmp.eq.s32.totalorder %s29, 1
    %p385 = por %p383, %p384
    %p386 = scmp.ne.s32.totalorder %s375, %s376
    %p387 = scmp.eq.s32.totalorder %s29, 0
    %p388 = por %p386, %p387
    %p389 = scmp.ne.s32.totalorder %s375, %s376
    %p390 = scmp.eq.s32.totalorder %s30, 1
    %p391 = por %p389, %p390
    %p393 = scmp.ne.s32.totalorder %s376, %s392
    %p394 = scmp.eq.s32.totalorder %s30, 0
    %p395 = por %p393, %p394
    %s396 = ssub.s32 %s24, %s31
    %p397 = scmp.eq.s32.totalorder %s396, 0
    %s399 = sadd.s32 %s398, 1
    %s400 = scalar_select %p397, %s398, %s399
    %p403 = pneg %p397
    %p404 = scmp.eq.s32.totalorder %s24, 1
    %p405 = por %p403, %p404
    %p406 = scmp.ne.s32.totalorder %s398, %s401
    %p407 = scmp.eq.s32.totalorder %s24, 0
    %p408 = por %p406, %p407
    %p409 = scmp.ne.s32.totalorder %s398, %s401
    %p410 = scmp.eq.s32.totalorder %s29, 1
    %p411 = por %p409, %p410
    %p412 = scmp.ne.s32.totalorder %s401, %s402
    %p413 = scmp.eq.s32.totalorder %s29, 0
    %p414 = por %p412, %p413
    %p415 = scmp.ne.s32.totalorder %s401, %s402
    %p416 = scmp.eq.s32.totalorder %s30, 1
    %p417 = por %p415, %p416
    %p419 = scmp.ne.s32.totalorder %s402, %s418
    %p420 = scmp.eq.s32.totalorder %s30, 0
    %p421 = por %p419, %p420
    %s422 = ssub.s32 %s24, %s31
    %p423 = scmp.eq.s32.totalorder %s422, 0
    %s425 = sadd.s32 %s424, 1
    %s426 = scalar_select %p423, %s424, %s425
    %p429 = pneg %p423
    %p430 = scmp.eq.s32.totalorder %s24, 1
    %p431 = por %p429, %p430
    %p432 = scmp.ne.s32.totalorder %s424, %s427
    %p433 = scmp.eq.s32.totalorder %s24, 0
    %p434 = por %p432, %p433
    %p435 = scmp.ne.s32.totalorder %s424, %s427
    %p436 = scmp.eq.s32.totalorder %s29, 1
    %p437 = por %p435, %p436
    %p438 = scmp.ne.s32.totalorder %s427, %s428
    %p439 = scmp.eq.s32.totalorder %s29, 0
    %p440 = por %p438, %p439
    %p441 = scmp.ne.s32.totalorder %s427, %s428
    %p442 = scmp.eq.s32.totalorder %s30, 1
    %p443 = por %p441, %p442
    %p445 = scmp.ne.s32.totalorder %s428, %s444
    %p446 = scmp.eq.s32.totalorder %s30, 0
    %p447 = por %p445, %p446
    %s448 = ssub.s32 %s24, %s31
    %p449 = scmp.eq.s32.totalorder %s448, 0
    %s451 = sadd.s32 %s450, 1
    %s452 = scalar_select %p449, %s450, %s451
    %p455 = pneg %p449
    %p456 = scmp.eq.s32.totalorder %s24, 1
    %p457 = por %p455, %p456
    %p458 = scmp.ne.s32.totalorder %s450, %s453
    %p459 = scmp.eq.s32.totalorder %s24, 0
    %p460 = por %p458, %p459
    %p461 = scmp.ne.s32.totalorder %s450, %s453
    %p462 = scmp.eq.s32.totalorder %s29, 1
    %p463 = por %p461, %p462
    %p464 = scmp.ne.s32.totalorder %s453, %s454
    %p465 = scmp.eq.s32.totalorder %s29, 0
    %p466 = por %p464, %p465
    %p467 = scmp.ne.s32.totalorder %s453, %s454
    %p468 = scmp.eq.s32.totalorder %s30, 1
    %p469 = por %p467, %p468
    %p471 = scmp.ne.s32.totalorder %s454, %s470
    %p472 = scmp.eq.s32.totalorder %s30, 0
    %p473 = por %p471, %p472
    %s474 = ssub.s32 %s24, %s31
    %p475 = scmp.eq.s32.totalorder %s474, 0
    %s477 = sadd.s32 %s476, 1
    %s478 = scalar_select %p475, %s476, %s477
    %p481 = pneg %p475
    %p482 = scmp.eq.s32.totalorder %s24, 1
    %p483 = por %p481, %p482
    %p484 = scmp.ne.s32.totalorder %s476, %s479
    %p485 = scmp.eq.s32.totalorder %s24, 0
    %p486 = por %p484, %p485
    %p487 = scmp.ne.s32.totalorder %s476, %s479
    %p488 = scmp.eq.s32.totalorder %s29, 1
    %p489 = por %p487, %p488
    %p490 = scmp.ne.s32.totalorder %s479, %s480
    %p491 = scmp.eq.s32.totalorder %s29, 0
    %p492 = por %p490, %p491
    %p493 = scmp.ne.s32.totalorder %s479, %s480
    %p494 = scmp.eq.s32.totalorder %s30, 1
    %p495 = por %p493, %p494
    %p497 = scmp.ne.s32.totalorder %s480, %s496
    %p498 = scmp.eq.s32.totalorder %s30, 0
    %p499 = por %p497, %p498
    %s500 = ssub.s32 %s24, %s31
    %p501 = scmp.eq.s32.totalorder %s500, 0
    %s503 = sadd.s32 %s502, 1
    %s504 = scalar_select %p501, %s502, %s503
    %p507 = pneg %p501
    %p508 = scmp.eq.s32.totalorder %s24, 1
    %p509 = por %p507, %p508
    %p510 = scmp.ne.s32.totalorder %s502, %s505
    %p511 = scmp.eq.s32.totalorder %s24, 0
    %p512 = por %p510, %p511
    %p513 = scmp.ne.s32.totalorder %s502, %s505
    %p514 = scmp.eq.s32.totalorder %s29, 1
    %p515 = por %p513, %p514
    %p516 = scmp.ne.s32.totalorder %s505, %s506
    %p517 = scmp.eq.s32.totalorder %s29, 0
    %p518 = por %p516, %p517
    %p519 = scmp.ne.s32.totalorder %s505, %s506
    %p520 = scmp.eq.s32.totalorder %s30, 1
    %p521 = por %p519, %p520
    %p523 = scmp.ne.s32.totalorder %s506, %s522
    %p524 = scmp.eq.s32.totalorder %s30, 0
    %p525 = por %p523, %p524
    %p526 = scmp.le.s32.totalorder 1, %s24
    %p527 = scmp.lt.s32.totalorder %s24, 3
    %p528 = pnand %p526, %p527
    %p529 = pneg %p528
    // Predicated region
    $region9: #{monobert_forward.2} parent=5 // pred_check
      _
    $region10: #{monobert_forward.2} parent=5 // pred_check_branch
      %531 = sbr.rel (%p528) target = $region12
    $region11: #{monobert_forward.2} parent=5 // pred_region
      %s532 = ssub.s32 %s24, 1
    $region12: #{monobert_forward.2} parent=5 // pred_fallthru
      _
    %p533 = scmp.lt.s32.totalorder %s24, 2
    // Predicated region
    $region13: #{monobert_forward.2} parent=5 // pred_check
      %p534 = pneg %p533
    $region14: #{monobert_forward.2} parent=5 // pred_check_branch
      %536 = sbr.rel (%p534) target = $region16
    $region15: #{monobert_forward.2} parent=5 // pred_region
      // Predicated region
      $region17: #{monobert_forward.2} parent=15 // pred_check
        %p537 = pneg %p44
      $region18: #{monobert_forward.2} parent=15 // pred_check_branch
        %539 = sbr.rel (%p537) target = $region20
      $region19: #{monobert_forward.2} parent=15 // pred_region
        %p540 = scmp.lt.s32.totalorder %s24, 1
        %s541 = scalar_select %p540, %s24, 1
        %s542 = smul.addr %s541, 2
        %s543 = smul.addr %s542, 8
        %s544 = scalar_lea.vmem %s0, %s543
      $region20: #{monobert_forward.2} parent=15 // pred_fallthru
        _
      // Predicated region
      $region21: #{monobert_forward.2} parent=15 // pred_check
        %p545 = pneg %p70
      $region22: #{monobert_forward.2} parent=15 // pred_check_branch
        %547 = sbr.rel (%p545) target = $region24
      $region23: #{monobert_forward.2} parent=15 // pred_region
        %p548 = scmp.lt.s32.totalorder %s24, 1
        %s549 = scalar_select %p548, %s24, 1
        %s550 = smul.addr %s549, 2
        %s551 = scalar_lea.vmem %s1, %s550
      $region24: #{monobert_forward.2} parent=15 // pred_fallthru
        _
      // Predicated region
      $region25: #{monobert_forward.2} parent=15 // pred_check
        %p552 = pneg %p96
      $region26: #{monobert_forward.2} parent=15 // pred_check_branch
        %554 = sbr.rel (%p552) target = $region28
      $region27: #{monobert_forward.2} parent=15 // pred_region
        %p555 = scmp.lt.s32.totalorder %s24, 1
        %s556 = scalar_select %p555, %s24, 1
        %s557 = scalar_lea.vmem %s2, %s556
      $region28: #{monobert_forward.2} parent=15 // pred_fallthru
        _
      // Predicated region
      $region29: #{monobert_forward.2} parent=15 // pred_check
        %p558 = pneg %p122
      $region30: #{monobert_forward.2} parent=15 // pred_check_branch
        %560 = sbr.rel (%p558) target = $region32
      $region31: #{monobert_forward.2} parent=15 // pred_region
        %p561 = scmp.lt.s32.totalorder %s24, 1
        %s562 = scalar_select %p561, %s24, 1
        %s563 = scalar_lea.vmem %s3, %s562
      $region32: #{monobert_forward.2} parent=15 // pred_fallthru
        _
      // Predicated region
      $region33: #{monobert_forward.2} parent=15 // pred_check
        %p564 = pneg %p148
      $region34: #{monobert_forward.2} parent=15 // pred_check_branch
        %566 = sbr.rel (%p564) target = $region36
      $region35: #{monobert_forward.2} parent=15 // pred_region
        %p567 = scmp.lt.s32.totalorder %s24, 1
        %s568 = scalar_select %p567, %s24, 1
        %s569 = smul.addr %s568, 8
        %s570 = smul.addr %s569, 4
        %s571 = scalar_lea.vmem %s4, %s570
      $region36: #{monobert_forward.2} parent=15 // pred_fallthru
        _
      // Predicated region
      $region37: #{monobert_forward.2} parent=15 // pred_check
        %p572 = pneg %p174
      $region38: #{monobert_forward.2} parent=15 // pred_check_branch
        %574 = sbr.rel (%p572) target = $region40
      $region39: #{monobert_forward.2} parent=15 // pred_region
        %p575 = scmp.lt.s32.totalorder %s24, 1
        %s576 = scalar_select %p575, %s24, 1
        %s577 = smul.addr %s576, 2
        %s578 = scalar_lea.vmem %s5, %s577
      $region40: #{monobert_forward.2} parent=15 // pred_fallthru
        _
      // Predicated region
      $region41: #{monobert_forward.2} parent=15 // pred_check
        %p579 = pneg %p200
      $region42: #{monobert_forward.2} parent=15 // pred_check_branch
        %581 = sbr.rel (%p579) target = $region44
      $region43: #{monobert_forward.2} parent=15 // pred_region
        %p582 = scmp.lt.s32.totalorder %s24, 1
        %s583 = scalar_select %p582, %s24, 1
        %s584 = smul.addr %s583, 8
        %s585 = smul.addr %s584, 4
        %s586 = scalar_lea.vmem %s6, %s585
      $region44: #{monobert_forward.2} parent=15 // pred_fallthru
        _
      // Predicated region
      $region45: #{monobert_forward.2} parent=15 // pred_check
        %p587 = pneg %p226
      $region46: #{monobert_forward.2} parent=15 // pred_check_branch
        %589 = sbr.rel (%p587) target = $region48
      $region47: #{monobert_forward.2} parent=15 // pred_region
        %p590 = scmp.lt.s32.totalorder %s24, 1
        %s591 = scalar_select %p590, %s24, 1
        %s592 = smul.addr %s591, 2
        %s593 = scalar_lea.vmem %s7, %s592
      $region48: #{monobert_forward.2} parent=15 // pred_fallthru
        _
      // Predicated region
      $region49: #{monobert_forward.2} parent=15 // pred_check
        %p594 = pneg %p252
      $region50: #{monobert_forward.2} parent=15 // pred_check_branch
        %596 = sbr.rel (%p594) target = $region52
      $region51: #{monobert_forward.2} parent=15 // pred_region
        %p597 = scmp.lt.s32.totalorder %s24, 1
        %s598 = scalar_select %p597, %s24, 1
        %s599 = smul.addr %s598, 2
        %s600 = scalar_lea.vmem %s8, %s599
      $region52: #{monobert_forward.2} parent=15 // pred_fallthru
        _
      // Predicated region
      $region53: #{monobert_forward.2} parent=15 // pred_check
        %p601 = pneg %p278
      $region54: #{monobert_forward.2} parent=15 // pred_check_branch
        %603 = sbr.rel (%p601) target = $region56
      $region55: #{monobert_forward.2} parent=15 // pred_region
        %p604 = scmp.lt.s32.totalorder %s24, 1
        %s605 = scalar_select %p604, %s24, 1
        %s606 = smul.addr %s605, 2
        %s607 = scalar_lea.vmem %s9, %s606
      $region56: #{monobert_forward.2} parent=15 // pred_fallthru
        _
      // Predicated region
      $region57: #{monobert_forward.2} parent=15 // pred_check
        %p608 = pneg %p304
      $region58: #{monobert_forward.2} parent=15 // pred_check_branch
        %610 = sbr.rel (%p608) target = $region60
      $region59: #{monobert_forward.2} parent=15 // pred_region
        %p611 = scmp.lt.s32.totalorder %s24, 1
        %s612 = scalar_select %p611, %s24, 1
        %s613 = smul.addr %s612, 8
        %s614 = smul.addr %s613, 4
        %s615 = scalar_lea.vmem %s10, %s614
      $region60: #{monobert_forward.2} parent=15 // pred_fallthru
        _
      // Predicated region
      $region61: #{monobert_forward.2} parent=15 // pred_check
        %p616 = pneg %p330
      $region62: #{monobert_forward.2} parent=15 // pred_check_branch
        %618 = sbr.rel (%p616) target = $region64
      $region63: #{monobert_forward.2} parent=15 // pred_region
        %p619 = scmp.lt.s32.totalorder %s24, 1
        %s620 = scalar_select %p619, %s24, 1
        %s621 = smul.addr %s620, 2
        %s622 = scalar_lea.vmem %s11, %s621
      $region64: #{monobert_forward.2} parent=15 // pred_fallthru
        _
      // Predicated region
      $region65: #{monobert_forward.2} parent=15 // pred_check
        %p623 = pneg %p356
      $region66: #{monobert_forward.2} parent=15 // pred_check_branch
        %625 = sbr.rel (%p623) target = $region68
      $region67: #{monobert_forward.2} parent=15 // pred_region
        %p626 = scmp.lt.s32.totalorder %s24, 1
        %s627 = scalar_select %p626, %s24, 1
        %s628 = smul.addr %s627, 16
        %s629 = smul.addr %s628, 4
        %s630 = scalar_lea.vmem %s12, %s629
      $region68: #{monobert_forward.2} parent=15 // pred_fallthru
        _
      // Predicated region
      $region69: #{monobert_forward.2} parent=15 // pred_check
        %p631 = pneg %p382
      $region70: #{monobert_forward.2} parent=15 // pred_check_branch
        %633 = sbr.rel (%p631) target = $region72
      $region71: #{monobert_forward.2} parent=15 // pred_region
        %p634 = scmp.lt.s32.totalorder %s24, 1
        %s635 = scalar_select %p634, %s24, 1
        %s636 = smul.addr %s635, 2
        %s637 = scalar_lea.vmem %s13, %s636
      $region72: #{monobert_forward.2} parent=15 // pred_fallthru
        _
      // Predicated region
      $region73: #{monobert_forward.2} parent=15 // pred_check
        %p638 = pneg %p408
      $region74: #{monobert_forward.2} parent=15 // pred_check_branch
        %640 = sbr.rel (%p638) target = $region76
      $region75: #{monobert_forward.2} parent=15 // pred_region
        %p641 = scmp.lt.s32.totalorder %s24, 1
        %s642 = scalar_select %p641, %s24, 1
        %s643 = smul.addr %s642, 2
        %s644 = scalar_lea.vmem %s14, %s643
      $region76: #{monobert_forward.2} parent=15 // pred_fallthru
        _
      // Predicated region
      $region77: #{monobert_forward.2} parent=15 // pred_check
        %p645 = pneg %p434
      $region78: #{monobert_forward.2} parent=15 // pred_check_branch
        %647 = sbr.rel (%p645) target = $region80
      $region79: #{monobert_forward.2} parent=15 // pred_region
        %p648 = scmp.lt.s32.totalorder %s24, 1
        %s649 = scalar_select %p648, %s24, 1
        %s650 = smul.addr %s649, 2
        %s651 = scalar_lea.vmem %s15, %s650
      $region80: #{monobert_forward.2} parent=15 // pred_fallthru
        _
      // Predicated region
      $region81: #{monobert_forward.2} parent=15 // pred_check
        %p652 = pneg %p460
      $region82: #{monobert_forward.2} parent=15 // pred_check_branch
        %654 = sbr.rel (%p652) target = $region84
      $region83: #{monobert_forward.2} parent=15 // pred_region
        %p655 = scmp.lt.s32.totalorder %s24, 1
        %s656 = scalar_select %p655, %s24, 1
        %s657 = smul.addr %s656, 4
        %s658 = smul.addr %s657, 4
        %s659 = scalar_lea.vmem %s16, %s658
      $region84: #{monobert_forward.2} parent=15 // pred_fallthru
        _
      // Predicated region
      $region85: #{monobert_forward.2} parent=15 // pred_check
        %p660 = pneg %p486
      $region86: #{monobert_forward.2} parent=15 // pred_check_branch
        %662 = sbr.rel (%p660) target = $region88
      $region87: #{monobert_forward.2} parent=15 // pred_region
        %p663 = scmp.lt.s32.totalorder %s24, 1
        %s664 = scalar_select %p663, %s24, 1
        %s665 = scalar_lea.vmem %s17, %s664
      $region88: #{monobert_forward.2} parent=15 // pred_fallthru
        _
    $region16: #{monobert_forward.2} parent=5 // pred_fallthru
      _
    %p666 = scmp.le.s32.totalorder 1, %s24
    %p667 = scmp.lt.s32.totalorder %s24, 3
    %p668 = pnand %p666, %p667
    %p669 = pneg %p668
    // Predicated region
    $region89: #{monobert_forward.2} parent=5 // pred_check
      _
    $region90: #{monobert_forward.2} parent=5 // pred_check_branch
      %671 = sbr.rel (%p668) target = $region92
    $region91: #{monobert_forward.2} parent=5 // pred_region
      %s672 = ssub.s32 %s24, 1
      %p673 = scmp.lt.s32.totalorder %s29, 1
      %s674 = scalar_select %p673, %s29, 1
      %s675 = smul.addr %s674, 2
      %s676 = smul.addr %s675, 8
      %s677 = scalar_lea.vmem %s0, %s676
      %p678 = pneg %p50
      %p679 = pneg %p47
      %p680 = scmp.lt.s32.totalorder %s29, 1
      %s681 = scalar_select %p680, %s29, 1
      %s682 = smul.addr %s681, 2
      %s683 = scalar_lea.vmem %s1, %s682
      %p684 = pneg %p76
      %p685 = pneg %p73
      %p686 = scmp.lt.s32.totalorder %s29, 1
      %s687 = scalar_select %p686, %s29, 1
      %s688 = scalar_lea.vmem %s2, %s687
      %p689 = pneg %p102
      %p690 = pneg %p99
      %p691 = scmp.lt.s32.totalorder %s29, 1
      %s692 = scalar_select %p691, %s29, 1
      %s693 = scalar_lea.vmem %s3, %s692
      %p694 = pneg %p128
      %p695 = pneg %p125
      %p696 = scmp.lt.s32.totalorder %s29, 1
      %s697 = scalar_select %p696, %s29, 1
      %s698 = smul.addr %s697, 8
      %s699 = smul.addr %s698, 4
      %s700 = scalar_lea.vmem %s4, %s699
      %p701 = pneg %p154
      %p702 = pneg %p151
      %p703 = scmp.lt.s32.totalorder %s29, 1
      %s704 = scalar_select %p703, %s29, 1
      %s705 = smul.addr %s704, 2
      %s706 = scalar_lea.vmem %s5, %s705
      %p707 = pneg %p180
      %p708 = pneg %p177
      %p709 = scmp.lt.s32.totalorder %s29, 1
      %s710 = scalar_select %p709, %s29, 1
      %s711 = smul.addr %s710, 8
      %s712 = smul.addr %s711, 4
      %s713 = scalar_lea.vmem %s6, %s712
      %p714 = pneg %p206
      %p715 = pneg %p203
      %p716 = scmp.lt.s32.totalorder %s29, 1
      %s717 = scalar_select %p716, %s29, 1
      %s718 = smul.addr %s717, 2
      %s719 = scalar_lea.vmem %s7, %s718
      %p720 = pneg %p232
      %p721 = pneg %p229
      %p722 = scmp.lt.s32.totalorder %s29, 1
      %s723 = scalar_select %p722, %s29, 1
      %s724 = smul.addr %s723, 2
      %s725 = scalar_lea.vmem %s8, %s724
      %p726 = pneg %p258
      %p727 = pneg %p255
      %p728 = scmp.lt.s32.totalorder %s29, 1
      %s729 = scalar_select %p728, %s29, 1
      %s730 = smul.addr %s729, 2
      %s731 = scalar_lea.vmem %s9, %s730
      %p732 = pneg %p284
      %p733 = pneg %p281
      %p734 = scmp.lt.s32.totalorder %s29, 1
      %s735 = scalar_select %p734, %s29, 1
      %s736 = smul.addr %s735, 8
      %s737 = smul.addr %s736, 4
      %s738 = scalar_lea.vmem %s10, %s737
      %p739 = pneg %p310
      %p740 = pneg %p307
      %p741 = scmp.lt.s32.totalorder %s29, 1
      %s742 = scalar_select %p741, %s29, 1
      %s743 = smul.addr %s742, 2
      %s744 = scalar_lea.vmem %s11, %s743
      %p745 = pneg %p336
      %p746 = pneg %p333
      %p747 = scmp.lt.s32.totalorder %s29, 1
      %s748 = scalar_select %p747, %s29, 1
      %s749 = smul.addr %s748, 16
      %s750 = smul.addr %s749, 4
      %s751 = scalar_lea.vmem %s12, %s750
      %p752 = pneg %p362
      %p753 = pneg %p359
      %p754 = scmp.lt.s32.totalorder %s29, 1
      %s755 = scalar_select %p754, %s29, 1
      %s756 = smul.addr %s755, 2
      %s757 = scalar_lea.vmem %s13, %s756
      %p758 = pneg %p388
      %p759 = pneg %p385
      %p760 = scmp.lt.s32.totalorder %s29, 1
      %s761 = scalar_select %p760, %s29, 1
      %s762 = smul.addr %s761, 2
      %s763 = scalar_lea.vmem %s14, %s762
      %p764 = pneg %p414
      %p765 = pneg %p411
      %p766 = scmp.lt.s32.totalorder %s29, 1
      %s767 = scalar_select %p766, %s29, 1
      %s768 = smul.addr %s767, 2
      %s769 = scalar_lea.vmem %s15, %s768
      %p770 = pneg %p440
      %p771 = pneg %p437
      %p772 = scmp.lt.s32.totalorder %s29, 1
      %s773 = scalar_select %p772, %s29, 1
      %s774 = smul.addr %s773, 4
      %s775 = smul.addr %s774, 4
      %s776 = scalar_lea.vmem %s16, %s775
      %p777 = pneg %p466
      %p778 = pneg %p463
      %p779 = scmp.lt.s32.totalorder %s29, 1
      %s780 = scalar_select %p779, %s29, 1
      %s781 = scalar_lea.vmem %s17, %s780
      %p782 = pneg %p492
      %p783 = pneg %p489
      %p784 = pneg %p518
      %p785 = pneg %p515
      %p786 = scmp.lt.s32.totalorder %s29, 1
      %s787 = scalar_select %p786, %s29, 1
      %s788 = smul.addr %s787, 2
      %s789 = scalar_lea.vmem %s18, %s788
      %p790 = scmp.lt.s32.totalorder %s29, 1
      %s791 = scalar_select %p790, %s29, 1
      %s792 = smul.addr %s791, 2
      %s793 = smul.addr %s792, 8
      %s794 = scalar_lea.vmem %s0, %s793
      %p795 = scmp.lt.s32.totalorder %s29, 1
      %s796 = scalar_select %p795, %s29, 1
      %s797 = smul.addr %s796, 2
      %s798 = scalar_lea.vmem %s1, %s797
      %p799 = scmp.lt.s32.totalorder %s29, 1
      %s800 = scalar_select %p799, %s29, 1
      %s801 = scalar_lea.vmem %s2, %s800
      %p802 = scmp.lt.s32.totalorder %s29, 1
      %s803 = scalar_select %p802, %s29, 1
      %s804 = scalar_lea.vmem %s3, %s803
      %p805 = scmp.lt.s32.totalorder %s29, 1
      %s806 = scalar_select %p805, %s29, 1
      %s807 = smul.addr %s806, 8
      %s808 = smul.addr %s807, 4
      %s809 = scalar_lea.vmem %s4, %s808
      %p810 = scmp.lt.s32.totalorder %s29, 1
      %s811 = scalar_select %p810, %s29, 1
      %s812 = smul.addr %s811, 2
      %s813 = scalar_lea.vmem %s5, %s812
      %p814 = scmp.lt.s32.totalorder %s29, 1
      %s815 = scalar_select %p814, %s29, 1
      %s816 = smul.addr %s815, 8
      %s817 = smul.addr %s816, 4
      %s818 = scalar_lea.vmem %s6, %s817
      %p819 = scmp.lt.s32.totalorder %s29, 1
      %s820 = scalar_select %p819, %s29, 1
      %s821 = smul.addr %s820, 2
      %s822 = scalar_lea.vmem %s7, %s821
      %p823 = scmp.lt.s32.totalorder %s29, 1
      %s824 = scalar_select %p823, %s29, 1
      %s825 = smul.addr %s824, 2
      %s826 = scalar_lea.vmem %s8, %s825
      %p827 = scmp.lt.s32.totalorder %s29, 1
      %s828 = scalar_select %p827, %s29, 1
      %s829 = smul.addr %s828, 2
      %s830 = scalar_lea.vmem %s9, %s829
      %p831 = scmp.lt.s32.totalorder %s29, 1
      %s832 = scalar_select %p831, %s29, 1
      %s833 = smul.addr %s832, 8
      %s834 = smul.addr %s833, 4
      %s835 = scalar_lea.vmem %s10, %s834
      %p836 = scmp.lt.s32.totalorder %s29, 1
      %s837 = scalar_select %p836, %s29, 1
      %s838 = smul.addr %s837, 2
      %s839 = scalar_lea.vmem %s11, %s838
      %p840 = scmp.lt.s32.totalorder %s29, 1
      %s841 = scalar_select %p840, %s29, 1
      %s842 = smul.addr %s841, 16
      %s843 = smul.addr %s842, 4
      %s844 = scalar_lea.vmem %s12, %s843
      %p845 = scmp.lt.s32.totalorder %s29, 1
      %s846 = scalar_select %p845, %s29, 1
      %s847 = smul.addr %s846, 2
      %s848 = scalar_lea.vmem %s13, %s847
      %p849 = scmp.lt.s32.totalorder %s29, 1
      %s850 = scalar_select %p849, %s29, 1
      %s851 = smul.addr %s850, 2
      %s852 = scalar_lea.vmem %s14, %s851
      %p853 = scmp.lt.s32.totalorder %s29, 1
      %s854 = scalar_select %p853, %s29, 1
      %s855 = smul.addr %s854, 2
      %s856 = scalar_lea.vmem %s15, %s855
      %p857 = scmp.lt.s32.totalorder %s29, 1
      %s858 = scalar_select %p857, %s29, 1
      %s859 = smul.addr %s858, 4
      %s860 = smul.addr %s859, 4
      %s861 = scalar_lea.vmem %s16, %s860
      %p862 = scmp.lt.s32.totalorder %s29, 1
      %s863 = scalar_select %p862, %s29, 1
      %s864 = scalar_lea.vmem %s17, %s863
      %p865 = scmp.lt.s32.totalorder %s29, 1
      %s866 = scalar_select %p865, %s29, 1
      %s867 = smul.addr %s866, 2
      %s868 = scalar_lea.vmem %s18, %s867
      %v870 = vld [vmem:[%s794] sm:$0xff]
      %v871 = vld [vmem:[%s794 + $0x8] sm:$0xff]
      %v872 = vld [vmem:[%s801] sm:$0x1]
      %v873 = vld [vmem:[%s804] sm:$0x1]
      %vm874 = vcmask 261120
      %v875 = vsel %vm874, %v870, 0.0
      %876 = vadd.xlane.f32.xlu0 %v875
      %v877 = vpop.xlane.xlu0 %876
      %v878 = vsel %vm874, %v871, 0.0
      %879 = vadd.xlane.f32.xlu0 %v878
      %v880 = vpop.xlane.xlu0 %879
      %v881 = vrcp.pop 32.0
      %v882 = vmul.f32 %v877, %v881
      %v883 = vmul.f32 %v880, %v881
      %v884 = vsub.f32 %v870, %v882
      %v885 = vsub.f32 %v871, %v883
      %v886 = vmul.f32 %v884, %v884
      %v887 = vmul.f32 %v885, %v885
      %v888 = vsel %vm874, %v886, 0.0
      %889 = vadd.xlane.f32.xlu0 %v888
      %v890 = vpop.xlane.xlu0 %889
      %v891 = vsel %vm874, %v887, 0.0
      %892 = vadd.xlane.f32.xlu0 %v891
      %v893 = vpop.xlane.xlu0 %892
      %v894 = vmul.f32 %v890, %v881
      %v895 = vmul.f32 %v893, %v881
      %v896 = vadd.f32 %v894, 1e-12
      %v897 = vadd.f32 %v895, 1e-12
      %v898 = vrsqrt.pop %v896
      %v899 = vrsqrt.pop %v897
      %v900 = vmul.f32 %v884, %v898
      %v901 = vmul.f32 %v885, %v899
      %v903 = vlaneseq
      %v904 = vshrl.u32 %v903, 7
      %v905 = vsub.s32 0, %v904
      %v906 = vrot.slane %v872, %v905
      %v908 = vmul.f32 %v900, %v906
      %v909 = vmul.f32 %v901, %v906
      %v911 = vlaneseq
      %v912 = vshrl.u32 %v911, 7
      %v913 = vsub.s32 0, %v912
      %v914 = vrot.slane %v873, %v913
      %v916 = vadd.f32 %v908, %v914
      %v917 = vadd.f32 %v909, %v914
      %v918 = vld [vmem:[%s798] sm:$0x1]
      %v919 = vld [vmem:[%s798 + $0x1] sm:$0x1]
      %v920 = vcvt.s32.f32 %v918
      %v921 = vcvt.s32.f32 %v919
      %v922 = vsub.f32 1.0, %v920
      %v923 = vsub.f32 1.0, %v921
      %v924 = vmul.f32 %v922, -10000.0
      %v925 = vmul.f32 %v923, -10000.0
      %v926 = vpack.c.bf16 %v917, %v916
      %v927 = vld [vmem:[%s809] sm:$0xf]
      %v928 = vld [vmem:[%s809 + $0x4] sm:$0xf]
      %v929 = vld [vmem:[%s809 + $0x8] sm:$0xf]
      %v930 = vld [vmem:[%s809 + $0xc] sm:$0xf]
      %v931 = vld [vmem:[%s813] sm:$0x1]
      %v933 = vlaneseq
      %v934 = vshrl.u32 %v933, 7
      %v935 = vsub.s32 0, %v934
      %v936 = vrot.slane %v931, %v935
      %v942 = vunpack.c.l.b16 %v927
      %v943 = vunpack.c.l.b16 %v928
      %v944 = vunpack.c.l.b16 %v929
      %v945 = vunpack.c.l.b16 %v930
      %v946 = vpack.c.b16 %v943, %v942
      %v947 = vpack.c.b16 %v945, %v944
      %v951 = vsel %vm874, %v926, 0
      %953 = vmatprep.subr.bf16.mxu0 0
      %954 = vmatpush1.bf16.msra.mxu0 %v946
      %955 = vmatprep.subr.bf16.mxu0 0
      %956 = vmatpush1.bf16.msra.mxu0 %v947
      %957 = vmatprep.subr.bf16.mxu0 0
      %958 = vmatpush1.bf16.msra.mxu0 0
      %959 = vmatprep.subr.bf16.mxu0 0
      %960 = vmatpush1.bf16.msra.mxu0 0
      %961 = vmatprep.subr.bf16.mxu0 0
      %962 = vmatpush1.bf16.msra.mxu0 0
      %963 = vmatprep.subr.bf16.mxu0 0
      %964 = vmatpush1.bf16.msra.mxu0 0
      %965 = vmatprep.subr.bf16.mxu0 0
      %966 = vmatpush1.bf16.msra.mxu0 0
      %967 = vmatprep.subr.bf16.mxu0 0
      %968 = vmatpush1.bf16.msra.mxu0 0
      %969 = vmatprep.subr.bf16.mxu0 0
      %970 = vmatpush1.bf16.msra.mxu0 0
      %971 = vmatprep.subr.bf16.mxu0 0
      %972 = vmatpush1.bf16.msra.mxu0 0
      %973 = vmatprep.subr.bf16.mxu0 0
      %974 = vmatpush1.bf16.msra.mxu0 0
      %975 = vmatprep.subr.bf16.mxu0 0
      %976 = vmatpush1.bf16.msra.mxu0 0
      %977 = vmatprep.subr.bf16.mxu0 0
      %978 = vmatpush1.bf16.msra.mxu0 0
      %979 = vmatprep.subr.bf16.mxu0 0
      %980 = vmatpush1.bf16.msra.mxu0 0
      %981 = vmatprep.subr.bf16.mxu0 0
      %982 = vmatpush1.bf16.msra.mxu0 0
      %983 = vmatprep.subr.bf16.mxu0 0
      %984 = vmatpush1.bf16.msra.mxu0 0
      %985 = vmatprep.mubr.bf16.mxu0 0
      %986 = vmatmul.mubr.bf16.gmra.mrb[0].mxu0 %v951
      %v987 = vpop.f32.mrb[0].mxu0
      %v988 = vadd.f32 %v936, %v987
      %v989 = vpop.f32.mrb[0].mxu0
      %v990 = vpop.f32.mrb[0].mxu0
      %v991 = vadd.f32 %v936, %v990
      %v992 = vpop.f32.mrb[0].mxu0
      %993 = vdwg.mxu0
      %v994 = vpack.c.bf16 %v988, %v988
      %v995 = vpack.c.bf16 %v991, %v991
      %997 = vrot.lane.b32.xlu0 %v994, 96
      %v998 = vpop.permute.xlu0 %997
      %vm999 = vcmask 64512
      %v1001 = vsel %vm999, %v994, 0
      %v1004 = vsel %vm999, %v998, 0
      %1006 = vmatprep.subr.bf16.mxu0 0
      %1007 = vmatpush1.bf16.xpose.msra.mxu0 %v1004
      %1008 = vmatprep.subr.bf16.mxu0 0
      %1009 = vmatpush1.bf16.xpose.msra.mxu0 0
      %1010 = vmatprep.subr.bf16.mxu0 0
      %1011 = vmatpush1.bf16.xpose.msra.mxu0 0
      %1012 = vmatprep.subr.bf16.mxu0 0
      %1013 = vmatpush1.bf16.xpose.msra.mxu0 0
      %1014 = vmatprep.subr.bf16.mxu0 0
      %1015 = vmatpush1.bf16.xpose.msra.mxu0 0
      %1016 = vmatprep.subr.bf16.mxu0 0
      %1017 = vmatpush1.bf16.xpose.msra.mxu0 0
      %1018 = vmatprep.subr.bf16.mxu0 0
      %1019 = vmatpush1.bf16.xpose.msra.mxu0 0
      %1020 = vmatprep.subr.bf16.mxu0 0
      %1021 = vmatpush1.bf16.xpose.msra.mxu0 0
      %1022 = vmatprep.subr.bf16.mxu0 0
      %1023 = vmatpush1.bf16.xpose.msra.mxu0 0
      %1024 = vmatprep.subr.bf16.mxu0 0
      %1025 = vmatpush1.bf16.xpose.msra.mxu0 0
      %1026 = vmatprep.subr.bf16.mxu0 0
      %1027 = vmatpush1.bf16.xpose.msra.mxu0 0
      %1028 = vmatprep.subr.bf16.mxu0 0
      %1029 = vmatpush1.bf16.xpose.msra.mxu0 0
      %1030 = vmatprep.subr.bf16.mxu0 0
      %1031 = vmatpush1.bf16.xpose.msra.mxu0 0
      %1032 = vmatprep.subr.bf16.mxu0 0
      %1033 = vmatpush1.bf16.xpose.msra.mxu0 0
      %1034 = vmatprep.subr.bf16.mxu0 0
      %1035 = vmatpush1.bf16.xpose.msra.mxu0 0
      %1036 = vmatprep.subr.bf16.mxu0 0
      %1037 = vmatpush1.bf16.xpose.msra.mxu0 0
      %1038 = vmatprep.mubr.bf16.mxu0 0
      %1039 = vmatmul.mubr.bf16.gmra.mrb[0].mxu0 %v1001
      %v1040 = vpop.f32.mrb[0].mxu0
      %v1041 = vadd.f32 0.0, %v1040
      %v1042 = vpop.f32.mrb[0].mxu0
      %v1043 = vpop.f32.mrb[0].mxu0
      %v1044 = vpop.f32.mrb[0].mxu0
      %1045 = vdwg.mxu0
      %1047 = vrot.lane.b32.xlu0 %v995, 96
      %v1048 = vpop.permute.xlu0 %1047
      %v1050 = vsel %vm999, %v995, 0
      %v1053 = vsel %vm999, %v1048, 0
      %1055 = vmatprep.subr.bf16.mxu0 0
      %1056 = vmatpush1.bf16.xpose.msra.mxu0 %v1053
      %1057 = vmatprep.subr.bf16.mxu0 0
      %1058 = vmatpush1.bf16.xpose.msra.mxu0 0
      %1059 = vmatprep.subr.bf16.mxu0 0
      %1060 = vmatpush1.bf16.xpose.msra.mxu0 0
      %1061 = vmatprep.subr.bf16.mxu0 0
      %1062 = vmatpush1.bf16.xpose.msra.mxu0 0
      %1063 = vmatprep.subr.bf16.mxu0 0
      %1064 = vmatpush1.bf16.xpose.msra.mxu0 0
      %1065 = vmatprep.subr.bf16.mxu0 0
      %1066 = vmatpush1.bf16.xpose.msra.mxu0 0
      %1067 = vmatprep.subr.bf16.mxu0 0
      %1068 = vmatpush1.bf16.xpose.msra.mxu0 0
      %1069 = vmatprep.subr.bf16.mxu0 0
      %1070 = vmatpush1.bf16.xpose.msra.mxu0 0
      %1071 = vmatprep.subr.bf16.mxu0 0
      %1072 = vmatpush1.bf16.xpose.msra.mxu0 0
      %1073 = vmatprep.subr.bf16.mxu0 0
      %1074 = vmatpush1.bf16.xpose.msra.mxu0 0
      %1075 = vmatprep.subr.bf16.mxu0 0
      %1076 = vmatpush1.bf16.xpose.msra.mxu0 0
      %1077 = vmatprep.subr.bf16.mxu0 0
      %1078 = vmatpush1.bf16.xpose.msra.mxu0 0
      %1079 = vmatprep.subr.bf16.mxu0 0
      %1080 = vmatpush1.bf16.xpose.msra.mxu0 0
      %1081 = vmatprep.subr.bf16.mxu0 0
      %1082 = vmatpush1.bf16.xpose.msra.mxu0 0
      %1083 = vmatprep.subr.bf16.mxu0 0
      %1084 = vmatpush1.bf16.xpose.msra.mxu0 0
      %1085 = vmatprep.subr.bf16.mxu0 0
      %1086 = vmatpush1.bf16.xpose.msra.mxu0 0
      %1087 = vmatprep.mubr.bf16.mxu0 0
      %1088 = vmatmul.mubr.bf16.gmra.mrb[0].mxu0 %v1050
      %v1089 = vpop.f32.mrb[0].mxu0
      %v1090 = vadd.f32 0.0, %v1089
      %v1091 = vpop.f32.mrb[0].mxu0
      %v1092 = vpop.f32.mrb[0].mxu0
      %v1093 = vpop.f32.mrb[0].mxu0
      %1094 = vdwg.mxu0
      %v1095 = vmul.f32 %v1041, 0.35355338
      %v1096 = vmul.f32 %v1090, 0.35355338
      %v1099 = vlaneseq
      %v1100 = vshrl.u32 %v1099, 7
      %v1101 = vsub.s32 0, %v1100
      %v1102 = vrot.slane %v924, %v1101
      %v1103 = vlaneseq
      %v1104 = vshrl.u32 %v1103, 7
      %v1105 = vsub.s32 0, %v1104
      %v1106 = vrot.slane %v925, %v1105
      %v1109 = vadd.f32 %v1095, %v1102
      %v1110 = vadd.f32 %v1096, %v1106
      %v1111 = vsel %vm999, %v1109, -inf
      %1112 = vmax.xlane.f32.xlu0 %v1111
      %v1113 = vpop.xlane.xlu0 %1112
      %v1114 = vsel %vm999, %v1110, -inf
      %1115 = vmax.xlane.f32.xlu0 %v1114
      %v1116 = vpop.xlane.xlu0 %1115
      %v1117 = vsub.f32 %v1109, %v1113
      %v1118 = vsub.f32 %v1110, %v1116
      %v1119 = vmul.f32 %v1117, 1.442695
      %v1120 = vpow.pop %v1119
      %v1121 = vmul.f32 %v1118, 1.442695
      %v1122 = vpow.pop %v1121
      %v1123 = vsel %vm999, %v1120, 0.0
      %1124 = vadd.xlane.f32.xlu0 %v1123
      %v1125 = vpop.xlane.xlu0 %1124
      %v1126 = vsel %vm999, %v1122, 0.0
      %1127 = vadd.xlane.f32.xlu0 %v1126
      %v1128 = vpop.xlane.xlu0 %1127
      %v1129 = vrcp.pop %v1125
      %v1130 = vrcp.pop %v1128
      %v1131 = vmul.f32 %v1120, %v1129
      %v1132 = vmul.f32 %v1122, %v1130
      %v1133 = vpack.c.bf16 %v1131, %v1131
      %v1134 = vpack.c.bf16 %v1132, %v1132
      %1135 = vrot.lane.b32.xlu0 %v994, 64
      %v1136 = vpop.permute.xlu0 %1135
      %v1138 = vsel %vm999, %v1133, 0
      %vm1140 = vcmask 1043456
      %v1142 = vsel %vm1140, %v1136, 0
      %1144 = vmatprep.subr.bf16.mxu0 0
      %1145 = vmatpush1.bf16.msra.mxu0 %v1142
      %1146 = vmatprep.subr.bf16.mxu0 0
      %1147 = vmatpush1.bf16.msra.mxu0 0
      %1148 = vmatprep.subr.bf16.mxu0 0
      %1149 = vmatpush1.bf16.msra.mxu0 0
      %1150 = vmatprep.subr.bf16.mxu0 0
      %1151 = vmatpush1.bf16.msra.mxu0 0
      %1152 = vmatprep.subr.bf16.mxu0 0
      %1153 = vmatpush1.bf16.msra.mxu0 0
      %1154 = vmatprep.subr.bf16.mxu0 0
      %1155 = vmatpush1.bf16.msra.mxu0 0
      %1156 = vmatprep.subr.bf16.mxu0 0
      %1157 = vmatpush1.bf16.msra.mxu0 0
      %1158 = vmatprep.subr.bf16.mxu0 0
      %1159 = vmatpush1.bf16.msra.mxu0 0
      %1160 = vmatprep.subr.bf16.mxu0 0
      %1161 = vmatpush1.bf16.msra.mxu0 0
      %1162 = vmatprep.subr.bf16.mxu0 0
      %1163 = vmatpush1.bf16.msra.mxu0 0
      %1164 = vmatprep.subr.bf16.mxu0 0
      %1165 = vmatpush1.bf16.msra.mxu0 0
      %1166 = vmatprep.subr.bf16.mxu0 0
      %1167 = vmatpush1.bf16.msra.mxu0 0
      %1168 = vmatprep.subr.bf16.mxu0 0
      %1169 = vmatpush1.bf16.msra.mxu0 0
      %1170 = vmatprep.subr.bf16.mxu0 0
      %1171 = vmatpush1.bf16.msra.mxu0 0
      %1172 = vmatprep.subr.bf16.mxu0 0
      %1173 = vmatpush1.bf16.msra.mxu0 0
      %1174 = vmatprep.subr.bf16.mxu0 0
      %1175 = vmatpush1.bf16.msra.mxu0 0
      %1176 = vmatprep.mubr.bf16.mxu0 0
      %1177 = vmatmul.mubr.bf16.gmra.mrb[0].mxu0 %v1138
      %v1178 = vpop.f32.mrb[0].mxu0
      %v1179 = vadd.f32 0.0, %v1178
      %v1180 = vpop.f32.mrb[0].mxu0
      %v1181 = vpop.f32.mrb[0].mxu0
      %v1182 = vpop.f32.mrb[0].mxu0
      %1183 = vdwg.mxu0
      %1184 = vrot.lane.b32.xlu0 %v995, 64
      %v1185 = vpop.permute.xlu0 %1184
      %v1187 = vsel %vm999, %v1134, 0
      %v1190 = vsel %vm1140, %v1185, 0
      %1192 = vmatprep.subr.bf16.mxu0 0
      %1193 = vmatpush1.bf16.msra.mxu0 %v1190
      %1194 = vmatprep.subr.bf16.mxu0 0
      %1195 = vmatpush1.bf16.msra.mxu0 0
      %1196 = vmatprep.subr.bf16.mxu0 0
      %1197 = vmatpush1.bf16.msra.mxu0 0
      %1198 = vmatprep.subr.bf16.mxu0 0
      %1199 = vmatpush1.bf16.msra.mxu0 0
      %1200 = vmatprep.subr.bf16.mxu0 0
      %1201 = vmatpush1.bf16.msra.mxu0 0
      %1202 = vmatprep.subr.bf16.mxu0 0
      %1203 = vmatpush1.bf16.msra.mxu0 0
      %1204 = vmatprep.subr.bf16.mxu0 0
      %1205 = vmatpush1.bf16.msra.mxu0 0
      %1206 = vmatprep.subr.bf16.mxu0 0
      %1207 = vmatpush1.bf16.msra.mxu0 0
      %1208 = vmatprep.subr.bf16.mxu0 0
      %1209 = vmatpush1.bf16.msra.mxu0 0
      %1210 = vmatprep.subr.bf16.mxu0 0
      %1211 = vmatpush1.bf16.msra.mxu0 0
      %1212 = vmatprep.subr.bf16.mxu0 0
      %1213 = vmatpush1.bf16.msra.mxu0 0
      %1214 = vmatprep.subr.bf16.mxu0 0
      %1215 = vmatpush1.bf16.msra.mxu0 0
      %1216 = vmatprep.subr.bf16.mxu0 0
      %1217 = vmatpush1.bf16.msra.mxu0 0
      %1218 = vmatprep.subr.bf16.mxu0 0
      %1219 = vmatpush1.bf16.msra.mxu0 0
      %1220 = vmatprep.subr.bf16.mxu0 0
      %1221 = vmatpush1.bf16.msra.mxu0 0
      %1222 = vmatprep.subr.bf16.mxu0 0
      %1223 = vmatpush1.bf16.msra.mxu0 0
      %1224 = vmatprep.mubr.bf16.mxu0 0
      %1225 = vmatmul.mubr.bf16.gmra.mrb[0].mxu0 %v1187
      %v1226 = vpop.f32.mrb[0].mxu0
      %v1227 = vadd.f32 0.0, %v1226
      %v1228 = vpop.f32.mrb[0].mxu0
      %v1229 = vpop.f32.mrb[0].mxu0
      %v1230 = vpop.f32.mrb[0].mxu0
      %1231 = vdwg.mxu0
      %1232 = vrot.lane.b32.xlu0 %v994, 120
      %v1233 = vpop.permute.xlu0 %1232
      %1234 = vrot.lane.b32.xlu0 %v994, 88
      %v1235 = vpop.permute.xlu0 %1234
      %v1237 = vsel %vm999, %v1233, 0
      %v1240 = vsel %vm999, %v1235, 0
      %1242 = vmatprep.subr.bf16.mxu0 0
      %1243 = vmatpush1.bf16.xpose.msra.mxu0 %v1240
      %1244 = vmatprep.subr.bf16.mxu0 0
      %1245 = vmatpush1.bf16.xpose.msra.mxu0 0
      %1246 = vmatprep.subr.bf16.mxu0 0
      %1247 = vmatpush1.bf16.xpose.msra.mxu0 0
      %1248 = vmatprep.subr.bf16.mxu0 0
      %1249 = vmatpush1.bf16.xpose.msra.mxu0 0
      %1250 = vmatprep.subr.bf16.mxu0 0
      %1251 = vmatpush1.bf16.xpose.msra.mxu0 0
      %1252 = vmatprep.subr.bf16.mxu0 0
      %1253 = vmatpush1.bf16.xpose.msra.mxu0 0
      %1254 = vmatprep.subr.bf16.mxu0 0
      %1255 = vmatpush1.bf16.xpose.msra.mxu0 0
      %1256 = vmatprep.subr.bf16.mxu0 0
      %1257 = vmatpush1.bf16.xpose.msra.mxu0 0
      %1258 = vmatprep.subr.bf16.mxu0 0
      %1259 = vmatpush1.bf16.xpose.msra.mxu0 0
      %1260 = vmatprep.subr.bf16.mxu0 0
      %1261 = vmatpush1.bf16.xpose.msra.mxu0 0
      %1262 = vmatprep.subr.bf16.mxu0 0
      %1263 = vmatpush1.bf16.xpose.msra.mxu0 0
      %1264 = vmatprep.subr.bf16.mxu0 0
      %1265 = vmatpush1.bf16.xpose.msra.mxu0 0
      %1266 = vmatprep.subr.bf16.mxu0 0
      %1267 = vmatpush1.bf16.xpose.msra.mxu0 0
      %1268 = vmatprep.subr.bf16.mxu0 0
      %1269 = vmatpush1.bf16.xpose.msra.mxu0 0
      %1270 = vmatprep.subr.bf16.mxu0 0
      %1271 = vmatpush1.bf16.xpose.msra.mxu0 0
      %1272 = vmatprep.subr.bf16.mxu0 0
      %1273 = vmatpush1.bf16.xpose.msra.mxu0 0
      %1274 = vmatprep.mubr.bf16.mxu0 0
      %1275 = vmatmul.mubr.bf16.gmra.mrb[0].mxu0 %v1237
      %v1276 = vpop.f32.mrb[0].mxu0
      %v1277 = vadd.f32 0.0, %v1276
      %v1278 = vpop.f32.mrb[0].mxu0
      %v1279 = vpop.f32.mrb[0].mxu0
      %v1280 = vpop.f32.mrb[0].mxu0
      %1281 = vdwg.mxu0
      %1282 = vrot.lane.b32.xlu0 %v995, 120
      %v1283 = vpop.permute.xlu0 %1282
      %1284 = vrot.lane.b32.xlu0 %v995, 88
      %v1285 = vpop.permute.xlu0 %1284
      %v1287 = vsel %vm999, %v1283, 0
      %v1290 = vsel %vm999, %v1285, 0
      %1292 = vmatprep.subr.bf16.mxu0 0
      %1293 = vmatpush1.bf16.xpose.msra.mxu0 %v1290
      %1294 = vmatprep.subr.bf16.mxu0 0
      %1295 = vmatpush1.bf16.xpose.msra.mxu0 0
      %1296 = vmatprep.subr.bf16.mxu0 0
      %1297 = vmatpush1.bf16.xpose.msra.mxu0 0
      %1298 = vmatprep.subr.bf16.mxu0 0
      %1299 = vmatpush1.bf16.xpose.msra.mxu0 0
      %1300 = vmatprep.subr.bf16.mxu0 0
      %1301 = vmatpush1.bf16.xpose.msra.mxu0 0
      %1302 = vmatprep.subr.bf16.mxu0 0
      %1303 = vmatpush1.bf16.xpose.msra.mxu0 0
      %1304 = vmatprep.subr.bf16.mxu0 0
      %1305 = vmatpush1.bf16.xpose.msra.mxu0 0
      %1306 = vmatprep.subr.bf16.mxu0 0
      %1307 = vmatpush1.bf16.xpose.msra.mxu0 0
      %1308 = vmatprep.subr.bf16.mxu0 0
      %1309 = vmatpush1.bf16.xpose.msra.mxu0 0
      %1310 = vmatprep.subr.bf16.mxu0 0
      %1311 = vmatpush1.bf16.xpose.msra.mxu0 0
      %1312 = vmatprep.subr.bf16.mxu0 0
      %1313 = vmatpush1.bf16.xpose.msra.mxu0 0
      %1314 = vmatprep.subr.bf16.mxu0 0
      %1315 = vmatpush1.bf16.xpose.msra.mxu0 0
      %1316 = vmatprep.subr.bf16.mxu0 0
      %1317 = vmatpush1.bf16.xpose.msra.mxu0 0
      %1318 = vmatprep.subr.bf16.mxu0 0
      %1319 = vmatpush1.bf16.xpose.msra.mxu0 0
      %1320 = vmatprep.subr.bf16.mxu0 0
      %1321 = vmatpush1.bf16.xpose.msra.mxu0 0
      %1322 = vmatprep.subr.bf16.mxu0 0
      %1323 = vmatpush1.bf16.xpose.msra.mxu0 0
      %1324 = vmatprep.mubr.bf16.mxu0 0
      %1325 = vmatmul.mubr.bf16.gmra.mrb[0].mxu0 %v1287
      %v1326 = vpop.f32.mrb[0].mxu0
      %v1327 = vadd.f32 0.0, %v1326
      %v1328 = vpop.f32.mrb[0].mxu0
      %v1329 = vpop.f32.mrb[0].mxu0
      %v1330 = vpop.f32.mrb[0].mxu0
      %1331 = vdwg.mxu0
      %v1332 = vmul.f32 %v1277, 0.35355338
      %v1333 = vmul.f32 %v1327, 0.35355338
      %v1334 = vadd.f32 %v1332, %v1102
      %v1335 = vadd.f32 %v1333, %v1106
      %v1336 = vsel %vm999, %v1334, -inf
      %1337 = vmax.xlane.f32.xlu0 %v1336
      %v1338 = vpop.xlane.xlu0 %1337
      %v1339 = vsel %vm999, %v1335, -inf
      %1340 = vmax.xlane.f32.xlu0 %v1339
      %v1341 = vpop.xlane.xlu0 %1340
      %v1342 = vsub.f32 %v1334, %v1338
      %v1343 = vsub.f32 %v1335, %v1341
      %v1344 = vmul.f32 %v1342, 1.442695
      %v1345 = vpow.pop %v1344
      %v1346 = vmul.f32 %v1343, 1.442695
      %v1347 = vpow.pop %v1346
      %v1348 = vsel %vm999, %v1345, 0.0
      %1349 = vadd.xlane.f32.xlu0 %v1348
      %v1350 = vpop.xlane.xlu0 %1349
      %v1351 = vsel %vm999, %v1347, 0.0
      %1352 = vadd.xlane.f32.xlu0 %v1351
      %v1353 = vpop.xlane.xlu0 %1352
      %v1354 = vrcp.pop %v1350
      %v1355 = vrcp.pop %v1353
      %v1356 = vmul.f32 %v1345, %v1354
      %v1357 = vmul.f32 %v1347, %v1355
      %v1358 = vpack.c.bf16 %v1356, %v1356
      %v1359 = vpack.c.bf16 %v1357, %v1357
      %1360 = vrot.lane.b32.xlu0 %v994, 56
      %v1361 = vpop.permute.xlu0 %1360
      %v1363 = vsel %vm999, %v1358, 0
      %v1366 = vsel %vm1140, %v1361, 0
      %1368 = vmatprep.subr.bf16.mxu0 0
      %1369 = vmatpush1.bf16.msra.mxu0 %v1366
      %1370 = vmatprep.subr.bf16.mxu0 0
      %1371 = vmatpush1.bf16.msra.mxu0 0
      %1372 = vmatprep.subr.bf16.mxu0 0
      %1373 = vmatpush1.bf16.msra.mxu0 0
      %1374 = vmatprep.subr.bf16.mxu0 0
      %1375 = vmatpush1.bf16.msra.mxu0 0
      %1376 = vmatprep.subr.bf16.mxu0 0
      %1377 = vmatpush1.bf16.msra.mxu0 0
      %1378 = vmatprep.subr.bf16.mxu0 0
      %1379 = vmatpush1.bf16.msra.mxu0 0
      %1380 = vmatprep.subr.bf16.mxu0 0
      %1381 = vmatpush1.bf16.msra.mxu0 0
      %1382 = vmatprep.subr.bf16.mxu0 0
      %1383 = vmatpush1.bf16.msra.mxu0 0
      %1384 = vmatprep.subr.bf16.mxu0 0
      %1385 = vmatpush1.bf16.msra.mxu0 0
      %1386 = vmatprep.subr.bf16.mxu0 0
      %1387 = vmatpush1.bf16.msra.mxu0 0
      %1388 = vmatprep.subr.bf16.mxu0 0
      %1389 = vmatpush1.bf16.msra.mxu0 0
      %1390 = vmatprep.subr.bf16.mxu0 0
      %1391 = vmatpush1.bf16.msra.mxu0 0
      %1392 = vmatprep.subr.bf16.mxu0 0
      %1393 = vmatpush1.bf16.msra.mxu0 0
      %1394 = vmatprep.subr.bf16.mxu0 0
      %1395 = vmatpush1.bf16.msra.mxu0 0
      %1396 = vmatprep.subr.bf16.mxu0 0
      %1397 = vmatpush1.bf16.msra.mxu0 0
      %1398 = vmatprep.subr.bf16.mxu0 0
      %1399 = vmatpush1.bf16.msra.mxu0 0
      %1400 = vmatprep.mubr.bf16.mxu0 0
      %1401 = vmatmul.mubr.bf16.gmra.mrb[0].mxu0 %v1363
      %v1402 = vpop.f32.mrb[0].mxu0
      %v1403 = vadd.f32 0.0, %v1402
      %v1404 = vpop.f32.mrb[0].mxu0
      %v1405 = vpop.f32.mrb[0].mxu0
      %v1406 = vpop.f32.mrb[0].mxu0
      %1407 = vdwg.mxu0
      %1408 = vrot.lane.b32.xlu0 %v995, 56
      %v1409 = vpop.permute.xlu0 %1408
      %v1411 = vsel %vm999, %v1359, 0
      %v1414 = vsel %vm1140, %v1409, 0
      %1416 = vmatprep.subr.bf16.mxu0 0
      %1417 = vmatpush1.bf16.msra.mxu0 %v1414
      %1418 = vmatprep.subr.bf16.mxu0 0
      %1419 = vmatpush1.bf16.msra.mxu0 0
      %1420 = vmatprep.subr.bf16.mxu0 0
      %1421 = vmatpush1.bf16.msra.mxu0 0
      %1422 = vmatprep.subr.bf16.mxu0 0
      %1423 = vmatpush1.bf16.msra.mxu0 0
      %1424 = vmatprep.subr.bf16.mxu0 0
      %1425 = vmatpush1.bf16.msra.mxu0 0
      %1426 = vmatprep.subr.bf16.mxu0 0
      %1427 = vmatpush1.bf16.msra.mxu0 0
      %1428 = vmatprep.subr.bf16.mxu0 0
      %1429 = vmatpush1.bf16.msra.mxu0 0
      %1430 = vmatprep.subr.bf16.mxu0 0
      %1431 = vmatpush1.bf16.msra.mxu0 0
      %1432 = vmatprep.subr.bf16.mxu0 0
      %1433 = vmatpush1.bf16.msra.mxu0 0
      %1434 = vmatprep.subr.bf16.mxu0 0
      %1435 = vmatpush1.bf16.msra.mxu0 0
      %1436 = vmatprep.subr.bf16.mxu0 0
      %1437 = vmatpush1.bf16.msra.mxu0 0
      %1438 = vmatprep.subr.bf16.mxu0 0
      %1439 = vmatpush1.bf16.msra.mxu0 0
      %1440 = vmatprep.subr.bf16.mxu0 0
      %1441 = vmatpush1.bf16.msra.mxu0 0
      %1442 = vmatprep.subr.bf16.mxu0 0
      %1443 = vmatpush1.bf16.msra.mxu0 0
      %1444 = vmatprep.subr.bf16.mxu0 0
      %1445 = vmatpush1.bf16.msra.mxu0 0
      %1446 = vmatprep.subr.bf16.mxu0 0
      %1447 = vmatpush1.bf16.msra.mxu0 0
      %1448 = vmatprep.mubr.bf16.mxu0 0
      %1449 = vmatmul.mubr.bf16.gmra.mrb[0].mxu0 %v1411
      %v1450 = vpop.f32.mrb[0].mxu0
      %v1451 = vadd.f32 0.0, %v1450
      %v1452 = vpop.f32.mrb[0].mxu0
      %v1453 = vpop.f32.mrb[0].mxu0
      %v1454 = vpop.f32.mrb[0].mxu0
      %1455 = vdwg.mxu0
      %1456 = vrot.lane.b32.xlu0 %v994, 112
      %v1457 = vpop.permute.xlu0 %1456
      %1458 = vrot.lane.b32.xlu0 %v994, 80
      %v1459 = vpop.permute.xlu0 %1458
      %v1461 = vsel %vm999, %v1457, 0
      %v1464 = vsel %vm999, %v1459, 0
      %1466 = vmatprep.subr.bf16.mxu0 0
      %1467 = vmatpush1.bf16.xpose.msra.mxu0 %v1464
      %1468 = vmatprep.subr.bf16.mxu0 0
      %1469 = vmatpush1.bf16.xpose.msra.mxu0 0
      %1470 = vmatprep.subr.bf16.mxu0 0
      %1471 = vmatpush1.bf16.xpose.msra.mxu0 0
      %1472 = vmatprep.subr.bf16.mxu0 0
      %1473 = vmatpush1.bf16.xpose.msra.mxu0 0
      %1474 = vmatprep.subr.bf16.mxu0 0
      %1475 = vmatpush1.bf16.xpose.msra.mxu0 0
      %1476 = vmatprep.subr.bf16.mxu0 0
      %1477 = vmatpush1.bf16.xpose.msra.mxu0 0
      %1478 = vmatprep.subr.bf16.mxu0 0
      %1479 = vmatpush1.bf16.xpose.msra.mxu0 0
      %1480 = vmatprep.subr.bf16.mxu0 0
      %1481 = vmatpush1.bf16.xpose.msra.mxu0 0
      %1482 = vmatprep.subr.bf16.mxu0 0
      %1483 = vmatpush1.bf16.xpose.msra.mxu0 0
      %1484 = vmatprep.subr.bf16.mxu0 0
      %1485 = vmatpush1.bf16.xpose.msra.mxu0 0
      %1486 = vmatprep.subr.bf16.mxu0 0
      %1487 = vmatpush1.bf16.xpose.msra.mxu0 0
      %1488 = vmatprep.subr.bf16.mxu0 0
      %1489 = vmatpush1.bf16.xpose.msra.mxu0 0
      %1490 = vmatprep.subr.bf16.mxu0 0
      %1491 = vmatpush1.bf16.xpose.msra.mxu0 0
      %1492 = vmatprep.subr.bf16.mxu0 0
      %1493 = vmatpush1.bf16.xpose.msra.mxu0 0
      %1494 = vmatprep.subr.bf16.mxu0 0
      %1495 = vmatpush1.bf16.xpose.msra.mxu0 0
      %1496 = vmatprep.subr.bf16.mxu0 0
      %1497 = vmatpush1.bf16.xpose.msra.mxu0 0
      %1498 = vmatprep.mubr.bf16.mxu0 0
      %1499 = vmatmul.mubr.bf16.gmra.mrb[0].mxu0 %v1461
      %v1500 = vpop.f32.mrb[0].mxu0
      %v1501 = vadd.f32 0.0, %v1500
      %v1502 = vpop.f32.mrb[0].mxu0
      %v1503 = vpop.f32.mrb[0].mxu0
      %v1504 = vpop.f32.mrb[0].mxu0
      %1505 = vdwg.mxu0
      %1506 = vrot.lane.b32.xlu0 %v995, 112
      %v1507 = vpop.permute.xlu0 %1506
      %1508 = vrot.lane.b32.xlu0 %v995, 80
      %v1509 = vpop.permute.xlu0 %1508
      %v1511 = vsel %vm999, %v1507, 0
      %v1514 = vsel %vm999, %v1509, 0
      %1516 = vmatprep.subr.bf16.mxu0 0
      %1517 = vmatpush1.bf16.xpose.msra.mxu0 %v1514
      %1518 = vmatprep.subr.bf16.mxu0 0
      %1519 = vmatpush1.bf16.xpose.msra.mxu0 0
      %1520 = vmatprep.subr.bf16.mxu0 0
      %1521 = vmatpush1.bf16.xpose.msra.mxu0 0
      %1522 = vmatprep.subr.bf16.mxu0 0
      %1523 = vmatpush1.bf16.xpose.msra.mxu0 0
      %1524 = vmatprep.subr.bf16.mxu0 0
      %1525 = vmatpush1.bf16.xpose.msra.mxu0 0
      %1526 = vmatprep.subr.bf16.mxu0 0
      %1527 = vmatpush1.bf16.xpose.msra.mxu0 0
      %1528 = vmatprep.subr.bf16.mxu0 0
      %1529 = vmatpush1.bf16.xpose.msra.mxu0 0
      %1530 = vmatprep.subr.bf16.mxu0 0
      %1531 = vmatpush1.bf16.xpose.msra.mxu0 0
      %1532 = vmatprep.subr.bf16.mxu0 0
      %1533 = vmatpush1.bf16.xpose.msra.mxu0 0
      %1534 = vmatprep.subr.bf16.mxu0 0
      %1535 = vmatpush1.bf16.xpose.msra.mxu0 0
      %1536 = vmatprep.subr.bf16.mxu0 0
      %1537 = vmatpush1.bf16.xpose.msra.mxu0 0
      %1538 = vmatprep.subr.bf16.mxu0 0
      %1539 = vmatpush1.bf16.xpose.msra.mxu0 0
      %1540 = vmatprep.subr.bf16.mxu0 0
      %1541 = vmatpush1.bf16.xpose.msra.mxu0 0
      %1542 = vmatprep.subr.bf16.mxu0 0
      %1543 = vmatpush1.bf16.xpose.msra.mxu0 0
      %1544 = vmatprep.subr.bf16.mxu0 0
      %1545 = vmatpush1.bf16.xpose.msra.mxu0 0
      %1546 = vmatprep.subr.bf16.mxu0 0
      %1547 = vmatpush1.bf16.xpose.msra.mxu0 0
      %1548 = vmatprep.mubr.bf16.mxu0 0
      %1549 = vmatmul.mubr.bf16.gmra.mrb[0].mxu0 %v1511
      %v1550 = vpop.f32.mrb[0].mxu0
      %v1551 = vadd.f32 0.0, %v1550
      %v1552 = vpop.f32.mrb[0].mxu0
      %v1553 = vpop.f32.mrb[0].mxu0
      %v1554 = vpop.f32.mrb[0].mxu0
      %1555 = vdwg.mxu0
      %v1556 = vmul.f32 %v1501, 0.35355338
      %v1557 = vmul.f32 %v1551, 0.35355338
      %v1558 = vadd.f32 %v1556, %v1102
      %v1559 = vadd.f32 %v1557, %v1106
      %v1560 = vsel %vm999, %v1558, -inf
      %1561 = vmax.xlane.f32.xlu0 %v1560
      %v1562 = vpop.xlane.xlu0 %1561
      %v1563 = vsel %vm999, %v1559, -inf
      %1564 = vmax.xlane.f32.xlu0 %v1563
      %v1565 = vpop.xlane.xlu0 %1564
      %v1566 = vsub.f32 %v1558, %v1562
      %v1567 = vsub.f32 %v1559, %v1565
      %v1568 = vmul.f32 %v1566, 1.442695
      %v1569 = vpow.pop %v1568
      %v1570 = vmul.f32 %v1567, 1.442695
      %v1571 = vpow.pop %v1570
      %v1572 = vsel %vm999, %v1569, 0.0
      %1573 = vadd.xlane.f32.xlu0 %v1572
      %v1574 = vpop.xlane.xlu0 %1573
      %v1575 = vsel %vm999, %v1571, 0.0
      %1576 = vadd.xlane.f32.xlu0 %v1575
      %v1577 = vpop.xlane.xlu0 %1576
      %v1578 = vrcp.pop %v1574
      %v1579 = vrcp.pop %v1577
      %v1580 = vmul.f32 %v1569, %v1578
      %v1581 = vmul.f32 %v1571, %v1579
      %v1582 = vpack.c.bf16 %v1580, %v1580
      %v1583 = vpack.c.bf16 %v1581, %v1581
      %1584 = vrot.lane.b32.xlu0 %v994, 48
      %v1585 = vpop.permute.xlu0 %1584
      %v1587 = vsel %vm999, %v1582, 0
      %v1590 = vsel %vm1140, %v1585, 0
      %1592 = vmatprep.subr.bf16.mxu0 0
      %1593 = vmatpush1.bf16.msra.mxu0 %v1590
      %1594 = vmatprep.subr.bf16.mxu0 0
      %1595 = vmatpush1.bf16.msra.mxu0 0
      %1596 = vmatprep.subr.bf16.mxu0 0
      %1597 = vmatpush1.bf16.msra.mxu0 0
      %1598 = vmatprep.subr.bf16.mxu0 0
      %1599 = vmatpush1.bf16.msra.mxu0 0
      %1600 = vmatprep.subr.bf16.mxu0 0
      %1601 = vmatpush1.bf16.msra.mxu0 0
      %1602 = vmatprep.subr.bf16.mxu0 0
      %1603 = vmatpush1.bf16.msra.mxu0 0
      %1604 = vmatprep.subr.bf16.mxu0 0
      %1605 = vmatpush1.bf16.msra.mxu0 0
      %1606 = vmatprep.subr.bf16.mxu0 0
      %1607 = vmatpush1.bf16.msra.mxu0 0
      %1608 = vmatprep.subr.bf16.mxu0 0
      %1609 = vmatpush1.bf16.msra.mxu0 0
      %1610 = vmatprep.subr.bf16.mxu0 0
      %1611 = vmatpush1.bf16.msra.mxu0 0
      %1612 = vmatprep.subr.bf16.mxu0 0
      %1613 = vmatpush1.bf16.msra.mxu0 0
      %1614 = vmatprep.subr.bf16.mxu0 0
      %1615 = vmatpush1.bf16.msra.mxu0 0
      %1616 = vmatprep.subr.bf16.mxu0 0
      %1617 = vmatpush1.bf16.msra.mxu0 0
      %1618 = vmatprep.subr.bf16.mxu0 0
      %1619 = vmatpush1.bf16.msra.mxu0 0
      %1620 = vmatprep.subr.bf16.mxu0 0
      %1621 = vmatpush1.bf16.msra.mxu0 0
      %1622 = vmatprep.subr.bf16.mxu0 0
      %1623 = vmatpush1.bf16.msra.mxu0 0
      %1624 = vmatprep.mubr.bf16.mxu0 0
      %1625 = vmatmul.mubr.bf16.gmra.mrb[0].mxu0 %v1587
      %v1626 = vpop.f32.mrb[0].mxu0
      %v1627 = vadd.f32 0.0, %v1626
      %v1628 = vpop.f32.mrb[0].mxu0
      %v1629 = vpop.f32.mrb[0].mxu0
      %v1630 = vpop.f32.mrb[0].mxu0
      %1631 = vdwg.mxu0
      %1632 = vrot.lane.b32.xlu0 %v995, 48
      %v1633 = vpop.permute.xlu0 %1632
      %v1635 = vsel %vm999, %v1583, 0
      %v1638 = vsel %vm1140, %v1633, 0
      %1640 = vmatprep.subr.bf16.mxu0 0
      %1641 = vmatpush1.bf16.msra.mxu0 %v1638
      %1642 = vmatprep.subr.bf16.mxu0 0
      %1643 = vmatpush1.bf16.msra.mxu0 0
      %1644 = vmatprep.subr.bf16.mxu0 0
      %1645 = vmatpush1.bf16.msra.mxu0 0
      %1646 = vmatprep.subr.bf16.mxu0 0
      %1647 = vmatpush1.bf16.msra.mxu0 0
      %1648 = vmatprep.subr.bf16.mxu0 0
      %1649 = vmatpush1.bf16.msra.mxu0 0
      %1650 = vmatprep.subr.bf16.mxu0 0
      %1651 = vmatpush1.bf16.msra.mxu0 0
      %1652 = vmatprep.subr.bf16.mxu0 0
      %1653 = vmatpush1.bf16.msra.mxu0 0
      %1654 = vmatprep.subr.bf16.mxu0 0
      %1655 = vmatpush1.bf16.msra.mxu0 0
      %1656 = vmatprep.subr.bf16.mxu0 0
      %1657 = vmatpush1.bf16.msra.mxu0 0
      %1658 = vmatprep.subr.bf16.mxu0 0
      %1659 = vmatpush1.bf16.msra.mxu0 0
      %1660 = vmatprep.subr.bf16.mxu0 0
      %1661 = vmatpush1.bf16.msra.mxu0 0
      %1662 = vmatprep.subr.bf16.mxu0 0
      %1663 = vmatpush1.bf16.msra.mxu0 0
      %1664 = vmatprep.subr.bf16.mxu0 0
      %1665 = vmatpush1.bf16.msra.mxu0 0
      %1666 = vmatprep.subr.bf16.mxu0 0
      %1667 = vmatpush1.bf16.msra.mxu0 0
      %1668 = vmatprep.subr.bf16.mxu0 0
      %1669 = vmatpush1.bf16.msra.mxu0 0
      %1670 = vmatprep.subr.bf16.mxu0 0
      %1671 = vmatpush1.bf16.msra.mxu0 0
      %1672 = vmatprep.mubr.bf16.mxu0 0
      %1673 = vmatmul.mubr.bf16.gmra.mrb[0].mxu0 %v1635
      %v1674 = vpop.f32.mrb[0].mxu0
      %v1675 = vadd.f32 0.0, %v1674
      %v1676 = vpop.f32.mrb[0].mxu0
      %v1677 = vpop.f32.mrb[0].mxu0
      %v1678 = vpop.f32.mrb[0].mxu0
      %1679 = vdwg.mxu0
      %1680 = vrot.lane.b32.xlu0 %v994, 104
      %v1681 = vpop.permute.xlu0 %1680
      %1682 = vrot.lane.b32.xlu0 %v994, 72
      %v1683 = vpop.permute.xlu0 %1682
      %v1685 = vsel %vm999, %v1681, 0
      %v1688 = vsel %vm999, %v1683, 0
      %1690 = vmatprep.subr.bf16.mxu0 0
      %1691 = vmatpush1.bf16.xpose.msra.mxu0 %v1688
      %1692 = vmatprep.subr.bf16.mxu0 0
      %1693 = vmatpush1.bf16.xpose.msra.mxu0 0
      %1694 = vmatprep.subr.bf16.mxu0 0
      %1695 = vmatpush1.bf16.xpose.msra.mxu0 0
      %1696 = vmatprep.subr.bf16.mxu0 0
      %1697 = vmatpush1.bf16.xpose.msra.mxu0 0
      %1698 = vmatprep.subr.bf16.mxu0 0
      %1699 = vmatpush1.bf16.xpose.msra.mxu0 0
      %1700 = vmatprep.subr.bf16.mxu0 0
      %1701 = vmatpush1.bf16.xpose.msra.mxu0 0
      %1702 = vmatprep.subr.bf16.mxu0 0
      %1703 = vmatpush1.bf16.xpose.msra.mxu0 0
      %1704 = vmatprep.subr.bf16.mxu0 0
      %1705 = vmatpush1.bf16.xpose.msra.mxu0 0
      %1706 = vmatprep.subr.bf16.mxu0 0
      %1707 = vmatpush1.bf16.xpose.msra.mxu0 0
      %1708 = vmatprep.subr.bf16.mxu0 0
      %1709 = vmatpush1.bf16.xpose.msra.mxu0 0
      %1710 = vmatprep.subr.bf16.mxu0 0
      %1711 = vmatpush1.bf16.xpose.msra.mxu0 0
      %1712 = vmatprep.subr.bf16.mxu0 0
      %1713 = vmatpush1.bf16.xpose.msra.mxu0 0
      %1714 = vmatprep.subr.bf16.mxu0 0
      %1715 = vmatpush1.bf16.xpose.msra.mxu0 0
      %1716 = vmatprep.subr.bf16.mxu0 0
      %1717 = vmatpush1.bf16.xpose.msra.mxu0 0
      %1718 = vmatprep.subr.bf16.mxu0 0
      %1719 = vmatpush1.bf16.xpose.msra.mxu0 0
      %1720 = vmatprep.subr.bf16.mxu0 0
      %1721 = vmatpush1.bf16.xpose.msra.mxu0 0
      %1722 = vmatprep.mubr.bf16.mxu0 0
      %1723 = vmatmul.mubr.bf16.gmra.mrb[0].mxu0 %v1685
      %v1724 = vpop.f32.mrb[0].mxu0
      %v1725 = vadd.f32 0.0, %v1724
      %v1726 = vpop.f32.mrb[0].mxu0
      %v1727 = vpop.f32.mrb[0].mxu0
      %v1728 = vpop.f32.mrb[0].mxu0
      %1729 = vdwg.mxu0
      %1730 = vrot.lane.b32.xlu0 %v995, 104
      %v1731 = vpop.permute.xlu0 %1730
      %1732 = vrot.lane.b32.xlu0 %v995, 72
      %v1733 = vpop.permute.xlu0 %1732
      %v1735 = vsel %vm999, %v1731, 0
      %v1738 = vsel %vm999, %v1733, 0
      %1740 = vmatprep.subr.bf16.mxu0 0
      %1741 = vmatpush1.bf16.xpose.msra.mxu0 %v1738
      %1742 = vmatprep.subr.bf16.mxu0 0
      %1743 = vmatpush1.bf16.xpose.msra.mxu0 0
      %1744 = vmatprep.subr.bf16.mxu0 0
      %1745 = vmatpush1.bf16.xpose.msra.mxu0 0
      %1746 = vmatprep.subr.bf16.mxu0 0
      %1747 = vmatpush1.bf16.xpose.msra.mxu0 0
      %1748 = vmatprep.subr.bf16.mxu0 0
      %1749 = vmatpush1.bf16.xpose.msra.mxu0 0
      %1750 = vmatprep.subr.bf16.mxu0 0
      %1751 = vmatpush1.bf16.xpose.msra.mxu0 0
      %1752 = vmatprep.subr.bf16.mxu0 0
      %1753 = vmatpush1.bf16.xpose.msra.mxu0 0
      %1754 = vmatprep.subr.bf16.mxu0 0
      %1755 = vmatpush1.bf16.xpose.msra.mxu0 0
      %1756 = vmatprep.subr.bf16.mxu0 0
      %1757 = vmatpush1.bf16.xpose.msra.mxu0 0
      %1758 = vmatprep.subr.bf16.mxu0 0
      %1759 = vmatpush1.bf16.xpose.msra.mxu0 0
      %1760 = vmatprep.subr.bf16.mxu0 0
      %1761 = vmatpush1.bf16.xpose.msra.mxu0 0
      %1762 = vmatprep.subr.bf16.mxu0 0
      %1763 = vmatpush1.bf16.xpose.msra.mxu0 0
      %1764 = vmatprep.subr.bf16.mxu0 0
      %1765 = vmatpush1.bf16.xpose.msra.mxu0 0
      %1766 = vmatprep.subr.bf16.mxu0 0
      %1767 = vmatpush1.bf16.xpose.msra.mxu0 0
      %1768 = vmatprep.subr.bf16.mxu0 0
      %1769 = vmatpush1.bf16.xpose.msra.mxu0 0
      %1770 = vmatprep.subr.bf16.mxu0 0
      %1771 = vmatpush1.bf16.xpose.msra.mxu0 0
      %1772 = vmatprep.mubr.bf16.mxu0 0
      %1773 = vmatmul.mubr.bf16.gmra.mrb[0].mxu0 %v1735
      %v1774 = vpop.f32.mrb[0].mxu0
      %v1775 = vadd.f32 0.0, %v1774
      %v1776 = vpop.f32.mrb[0].mxu0
      %v1777 = vpop.f32.mrb[0].mxu0
      %v1778 = vpop.f32.mrb[0].mxu0
      %1779 = vdwg.mxu0
      %v1780 = vmul.f32 %v1725, 0.35355338
      %v1781 = vmul.f32 %v1775, 0.35355338
      %v1782 = vadd.f32 %v1780, %v1102
      %v1783 = vadd.f32 %v1781, %v1106
      %v1784 = vsel %vm999, %v1782, -inf
      %1785 = vmax.xlane.f32.xlu0 %v1784
      %v1786 = vpop.xlane.xlu0 %1785
      %v1787 = vsel %vm999, %v1783, -inf
      %1788 = vmax.xlane.f32.xlu0 %v1787
      %v1789 = vpop.xlane.xlu0 %1788
      %v1790 = vsub.f32 %v1782, %v1786
      %v1791 = vsub.f32 %v1783, %v1789
      %v1792 = vmul.f32 %v1790, 1.442695
      %v1793 = vpow.pop %v1792
      %v1794 = vmul.f32 %v1791, 1.442695
      %v1795 = vpow.pop %v1794
      %v1796 = vsel %vm999, %v1793, 0.0
      %1797 = vadd.xlane.f32.xlu0 %v1796
      %v1798 = vpop.xlane.xlu0 %1797
      %v1799 = vsel %vm999, %v1795, 0.0
      %1800 = vadd.xlane.f32.xlu0 %v1799
      %v1801 = vpop.xlane.xlu0 %1800
      %v1802 = vrcp.pop %v1798
      %v1803 = vrcp.pop %v1801
      %v1804 = vmul.f32 %v1793, %v1802
      %v1805 = vmul.f32 %v1795, %v1803
      %v1806 = vpack.c.bf16 %v1804, %v1804
      %v1807 = vpack.c.bf16 %v1805, %v1805
      %1808 = vrot.lane.b32.xlu0 %v994, 40
      %v1809 = vpop.permute.xlu0 %1808
      %v1811 = vsel %vm999, %v1806, 0
      %v1814 = vsel %vm1140, %v1809, 0
      %1816 = vmatprep.subr.bf16.mxu0 0
      %1817 = vmatpush1.bf16.msra.mxu0 %v1814
      %1818 = vmatprep.subr.bf16.mxu0 0
      %1819 = vmatpush1.bf16.msra.mxu0 0
      %1820 = vmatprep.subr.bf16.mxu0 0
      %1821 = vmatpush1.bf16.msra.mxu0 0
      %1822 = vmatprep.subr.bf16.mxu0 0
      %1823 = vmatpush1.bf16.msra.mxu0 0
      %1824 = vmatprep.subr.bf16.mxu0 0
      %1825 = vmatpush1.bf16.msra.mxu0 0
      %1826 = vmatprep.subr.bf16.mxu0 0
      %1827 = vmatpush1.bf16.msra.mxu0 0
      %1828 = vmatprep.subr.bf16.mxu0 0
      %1829 = vmatpush1.bf16.msra.mxu0 0
      %1830 = vmatprep.subr.bf16.mxu0 0
      %1831 = vmatpush1.bf16.msra.mxu0 0
      %1832 = vmatprep.subr.bf16.mxu0 0
      %1833 = vmatpush1.bf16.msra.mxu0 0
      %1834 = vmatprep.subr.bf16.mxu0 0
      %1835 = vmatpush1.bf16.msra.mxu0 0
      %1836 = vmatprep.subr.bf16.mxu0 0
      %1837 = vmatpush1.bf16.msra.mxu0 0
      %1838 = vmatprep.subr.bf16.mxu0 0
      %1839 = vmatpush1.bf16.msra.mxu0 0
      %1840 = vmatprep.subr.bf16.mxu0 0
      %1841 = vmatpush1.bf16.msra.mxu0 0
      %1842 = vmatprep.subr.bf16.mxu0 0
      %1843 = vmatpush1.bf16.msra.mxu0 0
      %1844 = vmatprep.subr.bf16.mxu0 0
      %1845 = vmatpush1.bf16.msra.mxu0 0
      %1846 = vmatprep.subr.bf16.mxu0 0
      %1847 = vmatpush1.bf16.msra.mxu0 0
      %1848 = vmatprep.mubr.bf16.mxu0 0
      %1849 = vmatmul.mubr.bf16.gmra.mrb[0].mxu0 %v1811
      %v1850 = vpop.f32.mrb[0].mxu0
      %v1851 = vadd.f32 0.0, %v1850
      %v1852 = vpop.f32.mrb[0].mxu0
      %v1853 = vpop.f32.mrb[0].mxu0
      %v1854 = vpop.f32.mrb[0].mxu0
      %1855 = vdwg.mxu0
      %1856 = vrot.lane.b32.xlu0 %v995, 40
      %v1857 = vpop.permute.xlu0 %1856
      %v1859 = vsel %vm999, %v1807, 0
      %v1862 = vsel %vm1140, %v1857, 0
      %1864 = vmatprep.subr.bf16.mxu0 0
      %1865 = vmatpush1.bf16.msra.mxu0 %v1862
      %1866 = vmatprep.subr.bf16.mxu0 0
      %1867 = vmatpush1.bf16.msra.mxu0 0
      %1868 = vmatprep.subr.bf16.mxu0 0
      %1869 = vmatpush1.bf16.msra.mxu0 0
      %1870 = vmatprep.subr.bf16.mxu0 0
      %1871 = vmatpush1.bf16.msra.mxu0 0
      %1872 = vmatprep.subr.bf16.mxu0 0
      %1873 = vmatpush1.bf16.msra.mxu0 0
      %1874 = vmatprep.subr.bf16.mxu0 0
      %1875 = vmatpush1.bf16.msra.mxu0 0
      %1876 = vmatprep.subr.bf16.mxu0 0
      %1877 = vmatpush1.bf16.msra.mxu0 0
      %1878 = vmatprep.subr.bf16.mxu0 0
      %1879 = vmatpush1.bf16.msra.mxu0 0
      %1880 = vmatprep.subr.bf16.mxu0 0
      %1881 = vmatpush1.bf16.msra.mxu0 0
      %1882 = vmatprep.subr.bf16.mxu0 0
      %1883 = vmatpush1.bf16.msra.mxu0 0
      %1884 = vmatprep.subr.bf16.mxu0 0
      %1885 = vmatpush1.bf16.msra.mxu0 0
      %1886 = vmatprep.subr.bf16.mxu0 0
      %1887 = vmatpush1.bf16.msra.mxu0 0
      %1888 = vmatprep.subr.bf16.mxu0 0
      %1889 = vmatpush1.bf16.msra.mxu0 0
      %1890 = vmatprep.subr.bf16.mxu0 0
      %1891 = vmatpush1.bf16.msra.mxu0 0
      %1892 = vmatprep.subr.bf16.mxu0 0
      %1893 = vmatpush1.bf16.msra.mxu0 0
      %1894 = vmatprep.subr.bf16.mxu0 0
      %1895 = vmatpush1.bf16.msra.mxu0 0
      %1896 = vmatprep.mubr.bf16.mxu0 0
      %1897 = vmatmul.mubr.bf16.gmra.mrb[0].mxu0 %v1859
      %v1898 = vpop.f32.mrb[0].mxu0
      %v1899 = vadd.f32 0.0, %v1898
      %v1900 = vpop.f32.mrb[0].mxu0
      %v1901 = vpop.f32.mrb[0].mxu0
      %v1902 = vpop.f32.mrb[0].mxu0
      %1903 = vdwg.mxu0
      %1906 = vrot.lane.b32.xlu0 %v1403, 8
      %v1907 = vpop.permute.xlu0 %1906
      %1908 = vrot.lane.b32.xlu0 %v1451, 8
      %v1909 = vpop.permute.xlu0 %1908
      %1914 = vrot.lane.b32.xlu0 %v1627, 16
      %v1915 = vpop.permute.xlu0 %1914
      %1916 = vrot.lane.b32.xlu0 %v1675, 16
      %v1917 = vpop.permute.xlu0 %1916
      %1922 = vrot.lane.b32.xlu0 %v1851, 24
      %v1923 = vpop.permute.xlu0 %1922
      %1924 = vrot.lane.b32.xlu0 %v1899, 24
      %v1925 = vpop.permute.xlu0 %1924
      %v1928 = vsel %vm999, %v1179, %v1907
      %v1929 = vsel %vm999, %v1227, %v1909
      %vm1930 = vcmask 130048
      %v1931 = vsel %vm1930, %v1928, %v1915
      %v1932 = vsel %vm1930, %v1929, %v1917
      %vm1933 = vcmask 195584
      %v1934 = vsel %vm1933, %v1931, %v1923
      %v1935 = vsel %vm1933, %v1932, %v1925
      %v1936 = vpack.c.bf16 %v1935, %v1934
      %v1937 = vld [vmem:[%s818] sm:$0xf]
      %v1938 = vld [vmem:[%s818 + $0x4] sm:$0xf]
      %v1939 = vld [vmem:[%s818 + $0x8] sm:$0xf]
      %v1940 = vld [vmem:[%s818 + $0xc] sm:$0xf]
      %v1941 = vld [vmem:[%s822] sm:$0x1]
      %v1943 = vlaneseq
      %v1944 = vshrl.u32 %v1943, 7
      %v1945 = vsub.s32 0, %v1944
      %v1946 = vrot.slane %v1941, %v1945
      %v1952 = vunpack.c.l.b16 %v1937
      %v1953 = vunpack.c.l.b16 %v1938
      %v1954 = vunpack.c.l.b16 %v1939
      %v1955 = vunpack.c.l.b16 %v1940
      %v1956 = vpack.c.b16 %v1953, %v1952
      %v1957 = vpack.c.b16 %v1955, %v1954
      %v1961 = vsel %vm874, %v1936, 0
      %1963 = vmatprep.subr.bf16.mxu0 0
      %1964 = vmatpush1.bf16.msra.mxu0 %v1956
      %1965 = vmatprep.subr.bf16.mxu0 0
      %1966 = vmatpush1.bf16.msra.mxu0 %v1957
      %1967 = vmatprep.subr.bf16.mxu0 0
      %1968 = vmatpush1.bf16.msra.mxu0 0
      %1969 = vmatprep.subr.bf16.mxu0 0
      %1970 = vmatpush1.bf16.msra.mxu0 0
      %1971 = vmatprep.subr.bf16.mxu0 0
      %1972 = vmatpush1.bf16.msra.mxu0 0
      %1973 = vmatprep.subr.bf16.mxu0 0
      %1974 = vmatpush1.bf16.msra.mxu0 0
      %1975 = vmatprep.subr.bf16.mxu0 0
      %1976 = vmatpush1.bf16.msra.mxu0 0
      %1977 = vmatprep.subr.bf16.mxu0 0
      %1978 = vmatpush1.bf16.msra.mxu0 0
      %1979 = vmatprep.subr.bf16.mxu0 0
      %1980 = vmatpush1.bf16.msra.mxu0 0
      %1981 = vmatprep.subr.bf16.mxu0 0
      %1982 = vmatpush1.bf16.msra.mxu0 0
      %1983 = vmatprep.subr.bf16.mxu0 0
      %1984 = vmatpush1.bf16.msra.mxu0 0
      %1985 = vmatprep.subr.bf16.mxu0 0
      %1986 = vmatpush1.bf16.msra.mxu0 0
      %1987 = vmatprep.subr.bf16.mxu0 0
      %1988 = vmatpush1.bf16.msra.mxu0 0
      %1989 = vmatprep.subr.bf16.mxu0 0
      %1990 = vmatpush1.bf16.msra.mxu0 0
      %1991 = vmatprep.subr.bf16.mxu0 0
      %1992 = vmatpush1.bf16.msra.mxu0 0
      %1993 = vmatprep.subr.bf16.mxu0 0
      %1994 = vmatpush1.bf16.msra.mxu0 0
      %1995 = vmatprep.mubr.bf16.mxu0 0
      %1996 = vmatmul.mubr.bf16.gmra.mrb[0].mxu0 %v1961
      %v1997 = vpop.f32.mrb[0].mxu0
      %v1998 = vadd.f32 %v1946, %v1997
      %v1999 = vpop.f32.mrb[0].mxu0
      %v2000 = vpop.f32.mrb[0].mxu0
      %v2001 = vadd.f32 %v1946, %v2000
      %v2002 = vpop.f32.mrb[0].mxu0
      %2003 = vdwg.mxu0
      %v2004 = vadd.f32 %v1998, %v916
      %v2005 = vadd.f32 %v2001, %v917
      %v2006 = vld [vmem:[%s826] sm:$0x1]
      %v2007 = vld [vmem:[%s830] sm:$0x1]
      %v2008 = vsel %vm874, %v2004, 0.0
      %2009 = vadd.xlane.f32.xlu0 %v2008
      %v2010 = vpop.xlane.xlu0 %2009
      %v2011 = vsel %vm874, %v2005, 0.0
      %2012 = vadd.xlane.f32.xlu0 %v2011
      %v2013 = vpop.xlane.xlu0 %2012
      %v2014 = vmul.f32 %v2010, %v881
      %v2015 = vmul.f32 %v2013, %v881
      %v2016 = vsub.f32 %v2004, %v2014
      %v2017 = vsub.f32 %v2005, %v2015
      %v2018 = vmul.f32 %v2016, %v2016
      %v2019 = vmul.f32 %v2017, %v2017
      %v2020 = vsel %vm874, %v2018, 0.0
      %2021 = vadd.xlane.f32.xlu0 %v2020
      %v2022 = vpop.xlane.xlu0 %2021
      %v2023 = vsel %vm874, %v2019, 0.0
      %2024 = vadd.xlane.f32.xlu0 %v2023
      %v2025 = vpop.xlane.xlu0 %2024
      %v2026 = vmul.f32 %v2022, %v881
      %v2027 = vmul.f32 %v2025, %v881
      %v2028 = vadd.f32 %v2026, 1e-12
      %v2029 = vadd.f32 %v2027, 1e-12
      %v2030 = vrsqrt.pop %v2028
      %v2031 = vrsqrt.pop %v2029
      %v2032 = vmul.f32 %v2016, %v2030
      %v2033 = vmul.f32 %v2017, %v2031
      %v2035 = vlaneseq
      %v2036 = vshrl.u32 %v2035, 7
      %v2037 = vsub.s32 0, %v2036
      %v2038 = vrot.slane %v2006, %v2037
      %v2040 = vmul.f32 %v2032, %v2038
      %v2041 = vmul.f32 %v2033, %v2038
      %v2043 = vlaneseq
      %v2044 = vshrl.u32 %v2043, 7
      %v2045 = vsub.s32 0, %v2044
      %v2046 = vrot.slane %v2007, %v2045
      %v2048 = vadd.f32 %v2040, %v2046
      %v2049 = vadd.f32 %v2041, %v2046
      %v2050 = vpack.c.bf16 %v2049, %v2048
      %v2051 = vld [vmem:[%s835] sm:$0xf]
      %v2052 = vld [vmem:[%s835 + $0x4] sm:$0xf]
      %v2053 = vld [vmem:[%s835 + $0x8] sm:$0xf]
      %v2054 = vld [vmem:[%s835 + $0xc] sm:$0xf]
      %v2055 = vld [vmem:[%s839] sm:$0x1]
      %v2057 = vlaneseq
      %v2058 = vshrl.u32 %v2057, 7
      %v2059 = vsub.s32 0, %v2058
      %v2060 = vrot.slane %v2055, %v2059
      %v2066 = vunpack.c.l.b16 %v2051
      %v2067 = vunpack.c.l.b16 %v2052
      %v2068 = vunpack.c.l.b16 %v2053
      %v2069 = vunpack.c.l.b16 %v2054
      %v2070 = vpack.c.b16 %v2067, %v2066
      %v2071 = vpack.c.b16 %v2069, %v2068
      %v2075 = vsel %vm874, %v2050, 0
      %2077 = vmatprep.subr.bf16.mxu0 0
      %2078 = vmatpush1.bf16.msra.mxu0 %v2070
      %2079 = vmatprep.subr.bf16.mxu0 0
      %2080 = vmatpush1.bf16.msra.mxu0 %v2071
      %2081 = vmatprep.subr.bf16.mxu0 0
      %2082 = vmatpush1.bf16.msra.mxu0 0
      %2083 = vmatprep.subr.bf16.mxu0 0
      %2084 = vmatpush1.bf16.msra.mxu0 0
      %2085 = vmatprep.subr.bf16.mxu0 0
      %2086 = vmatpush1.bf16.msra.mxu0 0
      %2087 = vmatprep.subr.bf16.mxu0 0
      %2088 = vmatpush1.bf16.msra.mxu0 0
      %2089 = vmatprep.subr.bf16.mxu0 0
      %2090 = vmatpush1.bf16.msra.mxu0 0
      %2091 = vmatprep.subr.bf16.mxu0 0
      %2092 = vmatpush1.bf16.msra.mxu0 0
      %2093 = vmatprep.subr.bf16.mxu0 0
      %2094 = vmatpush1.bf16.msra.mxu0 0
      %2095 = vmatprep.subr.bf16.mxu0 0
      %2096 = vmatpush1.bf16.msra.mxu0 0
      %2097 = vmatprep.subr.bf16.mxu0 0
      %2098 = vmatpush1.bf16.msra.mxu0 0
      %2099 = vmatprep.subr.bf16.mxu0 0
      %2100 = vmatpush1.bf16.msra.mxu0 0
      %2101 = vmatprep.subr.bf16.mxu0 0
      %2102 = vmatpush1.bf16.msra.mxu0 0
      %2103 = vmatprep.subr.bf16.mxu0 0
      %2104 = vmatpush1.bf16.msra.mxu0 0
      %2105 = vmatprep.subr.bf16.mxu0 0
      %2106 = vmatpush1.bf16.msra.mxu0 0
      %2107 = vmatprep.subr.bf16.mxu0 0
      %2108 = vmatpush1.bf16.msra.mxu0 0
      %2109 = vmatprep.mubr.bf16.mxu0 0
      %2110 = vmatmul.mubr.bf16.gmra.mrb[0].mxu0 %v2075
      %v2111 = vpop.f32.mrb[0].mxu0
      %v2112 = vadd.f32 %v2060, %v2111
      %v2113 = vpop.f32.mrb[0].mxu0
      %v2114 = vpop.f32.mrb[0].mxu0
      %v2115 = vadd.f32 %v2060, %v2114
      %v2116 = vpop.f32.mrb[0].mxu0
      %2117 = vdwg.mxu0
      %v2118 = vmul.f32 %v2112, 0.5
      %v2119 = vmul.f32 %v2115, 0.5
      %v2120 = vmul.f32 %v2112, 0.044715
      %v2121 = vmul.f32 %v2115, 0.044715
      %v2122 = vmul.f32 %v2120, %v2112
      %v2123 = vmul.f32 %v2121, %v2115
      %v2124 = vmul.f32 %v2122, %v2112
      %v2125 = vmul.f32 %v2123, %v2115
      %v2126 = vadd.f32 %v2112, %v2124
      %v2127 = vadd.f32 %v2115, %v2125
      %v2128 = vmul.f32 %v2126, 0.7978846
      %v2129 = vmul.f32 %v2127, 0.7978846
      %v2130 = vtanh.pop %v2128
      %v2131 = vtanh.pop %v2129
      %v2132 = vadd.f32 %v2130, 1.0
      %v2133 = vadd.f32 %v2131, 1.0
      %v2134 = vmul.f32 %v2118, %v2132
      %v2135 = vmul.f32 %v2119, %v2133
      %v2136 = vpack.c.bf16 %v2135, %v2134
      %v2137 = vld [vmem:[%s844] sm:$0xf]
      %v2138 = vld [vmem:[%s844 + $0x4] sm:$0xf]
      %v2139 = vld [vmem:[%s844 + $0x8] sm:$0xf]
      %v2140 = vld [vmem:[%s844 + $0xc] sm:$0xf]
      %v2141 = vld [vmem:[%s844 + $0x10] sm:$0xf]
      %v2142 = vld [vmem:[%s844 + $0x14] sm:$0xf]
      %v2143 = vld [vmem:[%s844 + $0x18] sm:$0xf]
      %v2144 = vld [vmem:[%s844 + $0x1c] sm:$0xf]
      %v2145 = vld [vmem:[%s848] sm:$0x1]
      %v2147 = vlaneseq
      %v2148 = vshrl.u32 %v2147, 7
      %v2149 = vsub.s32 0, %v2148
      %v2150 = vrot.slane %v2145, %v2149
      %v2160 = vunpack.c.l.b16 %v2137
      %v2161 = vunpack.c.l.b16 %v2138
      %v2162 = vunpack.c.l.b16 %v2139
      %v2163 = vunpack.c.l.b16 %v2140
      %v2164 = vunpack.c.l.b16 %v2141
      %v2165 = vunpack.c.l.b16 %v2142
      %v2166 = vunpack.c.l.b16 %v2143
      %v2167 = vunpack.c.l.b16 %v2144
      %v2168 = vpack.c.b16 %v2161, %v2160
      %v2169 = vpack.c.b16 %v2163, %v2162
      %v2170 = vpack.c.b16 %v2165, %v2164
      %v2171 = vpack.c.b16 %v2167, %v2166
      %vm2176 = vcmask 523264
      %v2178 = vsel %vm2176, %v2136, 0
      %2180 = vmatprep.subr.bf16.mxu0 0
      %2181 = vmatpush1.bf16.msra.mxu0 %v2168
      %2182 = vmatprep.subr.bf16.mxu0 0
      %2183 = vmatpush1.bf16.msra.mxu0 %v2169
      %2184 = vmatprep.subr.bf16.mxu0 0
      %2185 = vmatpush1.bf16.msra.mxu0 %v2170
      %2186 = vmatprep.subr.bf16.mxu0 0
      %2187 = vmatpush1.bf16.msra.mxu0 %v2171
      %2188 = vmatprep.subr.bf16.mxu0 0
      %2189 = vmatpush1.bf16.msra.mxu0 0
      %2190 = vmatprep.subr.bf16.mxu0 0
      %2191 = vmatpush1.bf16.msra.mxu0 0
      %2192 = vmatprep.subr.bf16.mxu0 0
      %2193 = vmatpush1.bf16.msra.mxu0 0
      %2194 = vmatprep.subr.bf16.mxu0 0
      %2195 = vmatpush1.bf16.msra.mxu0 0
      %2196 = vmatprep.subr.bf16.mxu0 0
      %2197 = vmatpush1.bf16.msra.mxu0 0
      %2198 = vmatprep.subr.bf16.mxu0 0
      %2199 = vmatpush1.bf16.msra.mxu0 0
      %2200 = vmatprep.subr.bf16.mxu0 0
      %2201 = vmatpush1.bf16.msra.mxu0 0
      %2202 = vmatprep.subr.bf16.mxu0 0
      %2203 = vmatpush1.bf16.msra.mxu0 0
      %2204 = vmatprep.subr.bf16.mxu0 0
      %2205 = vmatpush1.bf16.msra.mxu0 0
      %2206 = vmatprep.subr.bf16.mxu0 0
      %2207 = vmatpush1.bf16.msra.mxu0 0
      %2208 = vmatprep.subr.bf16.mxu0 0
      %2209 = vmatpush1.bf16.msra.mxu0 0
      %2210 = vmatprep.subr.bf16.mxu0 0
      %2211 = vmatpush1.bf16.msra.mxu0 0
      %2212 = vmatprep.mubr.bf16.mxu0 0
      %2213 = vmatmul.mubr.bf16.gmra.mrb[0].mxu0 %v2178
      %v2214 = vpop.f32.mrb[0].mxu0
      %v2215 = vadd.f32 %v2150, %v2214
      %v2216 = vpop.f32.mrb[0].mxu0
      %v2217 = vpop.f32.mrb[0].mxu0
      %v2218 = vadd.f32 %v2150, %v2217
      %v2219 = vpop.f32.mrb[0].mxu0
      %2220 = vdwg.mxu0
      %v2221 = vadd.f32 %v2215, %v2048
      %v2222 = vadd.f32 %v2218, %v2049
      %v2223 = vld [vmem:[%s852] sm:$0x1]
      %v2224 = vld [vmem:[%s856] sm:$0x1]
      %v2225 = vsel %vm874, %v2221, 0.0
      %2226 = vadd.xlane.f32.xlu0 %v2225
      %v2227 = vpop.xlane.xlu0 %2226
      %v2228 = vsel %vm874, %v2222, 0.0
      %2229 = vadd.xlane.f32.xlu0 %v2228
      %v2230 = vpop.xlane.xlu0 %2229
      %v2231 = vmul.f32 %v2227, %v881
      %v2232 = vmul.f32 %v2230, %v881
      %v2233 = vsub.f32 %v2221, %v2231
      %v2234 = vsub.f32 %v2222, %v2232
      %v2235 = vmul.f32 %v2233, %v2233
      %v2236 = vmul.f32 %v2234, %v2234
      %v2237 = vsel %vm874, %v2235, 0.0
      %2238 = vadd.xlane.f32.xlu0 %v2237
      %v2239 = vpop.xlane.xlu0 %2238
      %v2240 = vsel %vm874, %v2236, 0.0
      %2241 = vadd.xlane.f32.xlu0 %v2240
      %v2242 = vpop.xlane.xlu0 %2241
      %v2243 = vmul.f32 %v2239, %v881
      %v2244 = vmul.f32 %v2242, %v881
      %v2245 = vadd.f32 %v2243, 1e-12
      %v2246 = vadd.f32 %v2244, 1e-12
      %v2247 = vrsqrt.pop %v2245
      %v2248 = vrsqrt.pop %v2246
      %v2249 = vmul.f32 %v2233, %v2247
      %v2250 = vmul.f32 %v2234, %v2248
      %v2252 = vlaneseq
      %v2253 = vshrl.u32 %v2252, 7
      %v2254 = vsub.s32 0, %v2253
      %v2255 = vrot.slane %v2223, %v2254
      %v2257 = vmul.f32 %v2249, %v2255
      %v2258 = vmul.f32 %v2250, %v2255
      %v2260 = vlaneseq
      %v2261 = vshrl.u32 %v2260, 7
      %v2262 = vsub.s32 0, %v2261
      %v2263 = vrot.slane %v2224, %v2262
      %v2265 = vadd.f32 %v2257, %v2263
      %v2266 = vadd.f32 %v2258, %v2263
      %v2267 = vpack.c.bf16 %v2266, %v2265
      %s2268 = scalar_lea.vmem %s809, 16
      %v2269 = vld [vmem:[%s2268] sm:$0xf]
      %v2270 = vld [vmem:[%s2268 + $0x4] sm:$0xf]
      %v2271 = vld [vmem:[%s2268 + $0x8] sm:$0xf]
      %v2272 = vld [vmem:[%s2268 + $0xc] sm:$0xf]
      %s2273 = scalar_lea.vmem %s813, 1
      %v2274 = vld [vmem:[%s2273] sm:$0x1]
      %v2276 = vlaneseq
      %v2277 = vshrl.u32 %v2276, 7
      %v2278 = vsub.s32 0, %v2277
      %v2279 = vrot.slane %v2274, %v2278
      %v2285 = vunpack.c.l.b16 %v2269
      %v2286 = vunpack.c.l.b16 %v2270
      %v2287 = vunpack.c.l.b16 %v2271
      %v2288 = vunpack.c.l.b16 %v2272
      %v2289 = vpack.c.b16 %v2286, %v2285
      %v2290 = vpack.c.b16 %v2288, %v2287
      %v2294 = vsel %vm874, %v2267, 0
      %2296 = vmatprep.subr.bf16.mxu0 0
      %2297 = vmatpush1.bf16.msra.mxu0 %v2289
      %2298 = vmatprep.subr.bf16.mxu0 0
      %2299 = vmatpush1.bf16.msra.mxu0 %v2290
      %2300 = vmatprep.subr.bf16.mxu0 0
      %2301 = vmatpush1.bf16.msra.mxu0 0
      %2302 = vmatprep.subr.bf16.mxu0 0
      %2303 = vmatpush1.bf16.msra.mxu0 0
      %2304 = vmatprep.subr.bf16.mxu0 0
      %2305 = vmatpush1.bf16.msra.mxu0 0
      %2306 = vmatprep.subr.bf16.mxu0 0
      %2307 = vmatpush1.bf16.msra.mxu0 0
      %2308 = vmatprep.subr.bf16.mxu0 0
      %2309 = vmatpush1.bf16.msra.mxu0 0
      %2310 = vmatprep.subr.bf16.mxu0 0
      %2311 = vmatpush1.bf16.msra.mxu0 0
      %2312 = vmatprep.subr.bf16.mxu0 0
      %2313 = vmatpush1.bf16.msra.mxu0 0
      %2314 = vmatprep.subr.bf16.mxu0 0
      %2315 = vmatpush1.bf16.msra.mxu0 0
      %2316 = vmatprep.subr.bf16.mxu0 0
      %2317 = vmatpush1.bf16.msra.mxu0 0
      %2318 = vmatprep.subr.bf16.mxu0 0
      %2319 = vmatpush1.bf16.msra.mxu0 0
      %2320 = vmatprep.subr.bf16.mxu0 0
      %2321 = vmatpush1.bf16.msra.mxu0 0
      %2322 = vmatprep.subr.bf16.mxu0 0
      %2323 = vmatpush1.bf16.msra.mxu0 0
      %2324 = vmatprep.subr.bf16.mxu0 0
      %2325 = vmatpush1.bf16.msra.mxu0 0
      %2326 = vmatprep.subr.bf16.mxu0 0
      %2327 = vmatpush1.bf16.msra.mxu0 0
      %2328 = vmatprep.mubr.bf16.mxu0 0
      %2329 = vmatmul.mubr.bf16.gmra.mrb[0].mxu0 %v2294
      %v2330 = vpop.f32.mrb[0].mxu0
      %v2331 = vadd.f32 %v2279, %v2330
      %v2332 = vpop.f32.mrb[0].mxu0
      %v2333 = vpop.f32.mrb[0].mxu0
      %v2334 = vadd.f32 %v2279, %v2333
      %v2335 = vpop.f32.mrb[0].mxu0
      %2336 = vdwg.mxu0
      %v2337 = vpack.c.bf16 %v2331, %v2331
      %v2338 = vpack.c.bf16 %v2334, %v2334
      %2340 = vrot.lane.b32.xlu0 %v2337, 96
      %v2341 = vpop.permute.xlu0 %2340
      %v2343 = vsel %vm999, %v2337, 0
      %v2346 = vsel %vm999, %v2341, 0
      %2348 = vmatprep.subr.bf16.mxu0 0
      %2349 = vmatpush1.bf16.xpose.msra.mxu0 %v2346
      %2350 = vmatprep.subr.bf16.mxu0 0
      %2351 = vmatpush1.bf16.xpose.msra.mxu0 0
      %2352 = vmatprep.subr.bf16.mxu0 0
      %2353 = vmatpush1.bf16.xpose.msra.mxu0 0
      %2354 = vmatprep.subr.bf16.mxu0 0
      %2355 = vmatpush1.bf16.xpose.msra.mxu0 0
      %2356 = vmatprep.subr.bf16.mxu0 0
      %2357 = vmatpush1.bf16.xpose.msra.mxu0 0
      %2358 = vmatprep.subr.bf16.mxu0 0
      %2359 = vmatpush1.bf16.xpose.msra.mxu0 0
      %2360 = vmatprep.subr.bf16.mxu0 0
      %2361 = vmatpush1.bf16.xpose.msra.mxu0 0
      %2362 = vmatprep.subr.bf16.mxu0 0
      %2363 = vmatpush1.bf16.xpose.msra.mxu0 0
      %2364 = vmatprep.subr.bf16.mxu0 0
      %2365 = vmatpush1.bf16.xpose.msra.mxu0 0
      %2366 = vmatprep.subr.bf16.mxu0 0
      %2367 = vmatpush1.bf16.xpose.msra.mxu0 0
      %2368 = vmatprep.subr.bf16.mxu0 0
      %2369 = vmatpush1.bf16.xpose.msra.mxu0 0
      %2370 = vmatprep.subr.bf16.mxu0 0
      %2371 = vmatpush1.bf16.xpose.msra.mxu0 0
      %2372 = vmatprep.subr.bf16.mxu0 0
      %2373 = vmatpush1.bf16.xpose.msra.mxu0 0
      %2374 = vmatprep.subr.bf16.mxu0 0
      %2375 = vmatpush1.bf16.xpose.msra.mxu0 0
      %2376 = vmatprep.subr.bf16.mxu0 0
      %2377 = vmatpush1.bf16.xpose.msra.mxu0 0
      %2378 = vmatprep.subr.bf16.mxu0 0
      %2379 = vmatpush1.bf16.xpose.msra.mxu0 0
      %2380 = vmatprep.mubr.bf16.mxu0 0
      %2381 = vmatmul.mubr.bf16.gmra.mrb[0].mxu0 %v2343
      %v2382 = vpop.f32.mrb[0].mxu0
      %v2383 = vadd.f32 0.0, %v2382
      %v2384 = vpop.f32.mrb[0].mxu0
      %v2385 = vpop.f32.mrb[0].mxu0
      %v2386 = vpop.f32.mrb[0].mxu0
      %2387 = vdwg.mxu0
      %2389 = vrot.lane.b32.xlu0 %v2338, 96
      %v2390 = vpop.permute.xlu0 %2389
      %v2392 = vsel %vm999, %v2338, 0
      %v2395 = vsel %vm999, %v2390, 0
      %2397 = vmatprep.subr.bf16.mxu0 0
      %2398 = vmatpush1.bf16.xpose.msra.mxu0 %v2395
      %2399 = vmatprep.subr.bf16.mxu0 0
      %2400 = vmatpush1.bf16.xpose.msra.mxu0 0
      %2401 = vmatprep.subr.bf16.mxu0 0
      %2402 = vmatpush1.bf16.xpose.msra.mxu0 0
      %2403 = vmatprep.subr.bf16.mxu0 0
      %2404 = vmatpush1.bf16.xpose.msra.mxu0 0
      %2405 = vmatprep.subr.bf16.mxu0 0
      %2406 = vmatpush1.bf16.xpose.msra.mxu0 0
      %2407 = vmatprep.subr.bf16.mxu0 0
      %2408 = vmatpush1.bf16.xpose.msra.mxu0 0
      %2409 = vmatprep.subr.bf16.mxu0 0
      %2410 = vmatpush1.bf16.xpose.msra.mxu0 0
      %2411 = vmatprep.subr.bf16.mxu0 0
      %2412 = vmatpush1.bf16.xpose.msra.mxu0 0
      %2413 = vmatprep.subr.bf16.mxu0 0
      %2414 = vmatpush1.bf16.xpose.msra.mxu0 0
      %2415 = vmatprep.subr.bf16.mxu0 0
      %2416 = vmatpush1.bf16.xpose.msra.mxu0 0
      %2417 = vmatprep.subr.bf16.mxu0 0
      %2418 = vmatpush1.bf16.xpose.msra.mxu0 0
      %2419 = vmatprep.subr.bf16.mxu0 0
      %2420 = vmatpush1.bf16.xpose.msra.mxu0 0
      %2421 = vmatprep.subr.bf16.mxu0 0
      %2422 = vmatpush1.bf16.xpose.msra.mxu0 0
      %2423 = vmatprep.subr.bf16.mxu0 0
      %2424 = vmatpush1.bf16.xpose.msra.mxu0 0
      %2425 = vmatprep.subr.bf16.mxu0 0
      %2426 = vmatpush1.bf16.xpose.msra.mxu0 0
      %2427 = vmatprep.subr.bf16.mxu0 0
      %2428 = vmatpush1.bf16.xpose.msra.mxu0 0
      %2429 = vmatprep.mubr.bf16.mxu0 0
      %2430 = vmatmul.mubr.bf16.gmra.mrb[0].mxu0 %v2392
      %v2431 = vpop.f32.mrb[0].mxu0
      %v2432 = vadd.f32 0.0, %v2431
      %v2433 = vpop.f32.mrb[0].mxu0
      %v2434 = vpop.f32.mrb[0].mxu0
      %v2435 = vpop.f32.mrb[0].mxu0
      %2436 = vdwg.mxu0
      %v2437 = vmul.f32 %v2383, 0.35355338
      %v2438 = vmul.f32 %v2432, 0.35355338
      %v2439 = vadd.f32 %v2437, %v1102
      %v2440 = vadd.f32 %v2438, %v1106
      %v2441 = vsel %vm999, %v2439, -inf
      %2442 = vmax.xlane.f32.xlu0 %v2441
      %v2443 = vpop.xlane.xlu0 %2442
      %v2444 = vsel %vm999, %v2440, -inf
      %2445 = vmax.xlane.f32.xlu0 %v2444
      %v2446 = vpop.xlane.xlu0 %2445
      %v2447 = vsub.f32 %v2439, %v2443
      %v2448 = vsub.f32 %v2440, %v2446
      %v2449 = vmul.f32 %v2447, 1.442695
      %v2450 = vpow.pop %v2449
      %v2451 = vmul.f32 %v2448, 1.442695
      %v2452 = vpow.pop %v2451
      %v2453 = vsel %vm999, %v2450, 0.0
      %2454 = vadd.xlane.f32.xlu0 %v2453
      %v2455 = vpop.xlane.xlu0 %2454
      %v2456 = vsel %vm999, %v2452, 0.0
      %2457 = vadd.xlane.f32.xlu0 %v2456
      %v2458 = vpop.xlane.xlu0 %2457
      %v2459 = vrcp.pop %v2455
      %v2460 = vrcp.pop %v2458
      %v2461 = vmul.f32 %v2450, %v2459
      %v2462 = vmul.f32 %v2452, %v2460
      %v2463 = vpack.c.bf16 %v2461, %v2461
      %v2464 = vpack.c.bf16 %v2462, %v2462
      %2465 = vrot.lane.b32.xlu0 %v2337, 64
      %v2466 = vpop.permute.xlu0 %2465
      %v2468 = vsel %vm999, %v2463, 0
      %v2471 = vsel %vm1140, %v2466, 0
      %2473 = vmatprep.subr.bf16.mxu0 0
      %2474 = vmatpush1.bf16.msra.mxu0 %v2471
      %2475 = vmatprep.subr.bf16.mxu0 0
      %2476 = vmatpush1.bf16.msra.mxu0 0
      %2477 = vmatprep.subr.bf16.mxu0 0
      %2478 = vmatpush1.bf16.msra.mxu0 0
      %2479 = vmatprep.subr.bf16.mxu0 0
      %2480 = vmatpush1.bf16.msra.mxu0 0
      %2481 = vmatprep.subr.bf16.mxu0 0
      %2482 = vmatpush1.bf16.msra.mxu0 0
      %2483 = vmatprep.subr.bf16.mxu0 0
      %2484 = vmatpush1.bf16.msra.mxu0 0
      %2485 = vmatprep.subr.bf16.mxu0 0
      %2486 = vmatpush1.bf16.msra.mxu0 0
      %2487 = vmatprep.subr.bf16.mxu0 0
      %2488 = vmatpush1.bf16.msra.mxu0 0
      %2489 = vmatprep.subr.bf16.mxu0 0
      %2490 = vmatpush1.bf16.msra.mxu0 0
      %2491 = vmatprep.subr.bf16.mxu0 0
      %2492 = vmatpush1.bf16.msra.mxu0 0
      %2493 = vmatprep.subr.bf16.mxu0 0
      %2494 = vmatpush1.bf16.msra.mxu0 0
      %2495 = vmatprep.subr.bf16.mxu0 0
      %2496 = vmatpush1.bf16.msra.mxu0 0
      %2497 = vmatprep.subr.bf16.mxu0 0
      %2498 = vmatpush1.bf16.msra.mxu0 0
      %2499 = vmatprep.subr.bf16.mxu0 0
      %2500 = vmatpush1.bf16.msra.mxu0 0
      %2501 = vmatprep.subr.bf16.mxu0 0
      %2502 = vmatpush1.bf16.msra.mxu0 0
      %2503 = vmatprep.subr.bf16.mxu0 0
      %2504 = vmatpush1.bf16.msra.mxu0 0
      %2505 = vmatprep.mubr.bf16.mxu0 0
      %2506 = vmatmul.mubr.bf16.gmra.mrb[0].mxu0 %v2468
      %v2507 = vpop.f32.mrb[0].mxu0
      %v2508 = vadd.f32 0.0, %v2507
      %v2509 = vpop.f32.mrb[0].mxu0
      %v2510 = vpop.f32.mrb[0].mxu0
      %v2511 = vpop.f32.mrb[0].mxu0
      %2512 = vdwg.mxu0
      %2513 = vrot.lane.b32.xlu0 %v2338, 64
      %v2514 = vpop.permute.xlu0 %2513
      %v2516 = vsel %vm999, %v2464, 0
      %v2519 = vsel %vm1140, %v2514, 0
      %2521 = vmatprep.subr.bf16.mxu0 0
      %2522 = vmatpush1.bf16.msra.mxu0 %v2519
      %2523 = vmatprep.subr.bf16.mxu0 0
      %2524 = vmatpush1.bf16.msra.mxu0 0
      %2525 = vmatprep.subr.bf16.mxu0 0
      %2526 = vmatpush1.bf16.msra.mxu0 0
      %2527 = vmatprep.subr.bf16.mxu0 0
      %2528 = vmatpush1.bf16.msra.mxu0 0
      %2529 = vmatprep.subr.bf16.mxu0 0
      %2530 = vmatpush1.bf16.msra.mxu0 0
      %2531 = vmatprep.subr.bf16.mxu0 0
      %2532 = vmatpush1.bf16.msra.mxu0 0
      %2533 = vmatprep.subr.bf16.mxu0 0
      %2534 = vmatpush1.bf16.msra.mxu0 0
      %2535 = vmatprep.subr.bf16.mxu0 0
      %2536 = vmatpush1.bf16.msra.mxu0 0
      %2537 = vmatprep.subr.bf16.mxu0 0
      %2538 = vmatpush1.bf16.msra.mxu0 0
      %2539 = vmatprep.subr.bf16.mxu0 0
      %2540 = vmatpush1.bf16.msra.mxu0 0
      %2541 = vmatprep.subr.bf16.mxu0 0
      %2542 = vmatpush1.bf16.msra.mxu0 0
      %2543 = vmatprep.subr.bf16.mxu0 0
      %2544 = vmatpush1.bf16.msra.mxu0 0
      %2545 = vmatprep.subr.bf16.mxu0 0
      %2546 = vmatpush1.bf16.msra.mxu0 0
      %2547 = vmatprep.subr.bf16.mxu0 0
      %2548 = vmatpush1.bf16.msra.mxu0 0
      %2549 = vmatprep.subr.bf16.mxu0 0
      %2550 = vmatpush1.bf16.msra.mxu0 0
      %2551 = vmatprep.subr.bf16.mxu0 0
      %2552 = vmatpush1.bf16.msra.mxu0 0
      %2553 = vmatprep.mubr.bf16.mxu0 0
      %2554 = vmatmul.mubr.bf16.gmra.mrb[0].mxu0 %v2516
      %v2555 = vpop.f32.mrb[0].mxu0
      %v2556 = vadd.f32 0.0, %v2555
      %v2557 = vpop.f32.mrb[0].mxu0
      %v2558 = vpop.f32.mrb[0].mxu0
      %v2559 = vpop.f32.mrb[0].mxu0
      %2560 = vdwg.mxu0
      %2561 = vrot.lane.b32.xlu0 %v2337, 120
      %v2562 = vpop.permute.xlu0 %2561
      %2563 = vrot.lane.b32.xlu0 %v2337, 88
      %v2564 = vpop.permute.xlu0 %2563
      %v2566 = vsel %vm999, %v2562, 0
      %v2569 = vsel %vm999, %v2564, 0
      %2571 = vmatprep.subr.bf16.mxu0 0
      %2572 = vmatpush1.bf16.xpose.msra.mxu0 %v2569
      %2573 = vmatprep.subr.bf16.mxu0 0
      %2574 = vmatpush1.bf16.xpose.msra.mxu0 0
      %2575 = vmatprep.subr.bf16.mxu0 0
      %2576 = vmatpush1.bf16.xpose.msra.mxu0 0
      %2577 = vmatprep.subr.bf16.mxu0 0
      %2578 = vmatpush1.bf16.xpose.msra.mxu0 0
      %2579 = vmatprep.subr.bf16.mxu0 0
      %2580 = vmatpush1.bf16.xpose.msra.mxu0 0
      %2581 = vmatprep.subr.bf16.mxu0 0
      %2582 = vmatpush1.bf16.xpose.msra.mxu0 0
      %2583 = vmatprep.subr.bf16.mxu0 0
      %2584 = vmatpush1.bf16.xpose.msra.mxu0 0
      %2585 = vmatprep.subr.bf16.mxu0 0
      %2586 = vmatpush1.bf16.xpose.msra.mxu0 0
      %2587 = vmatprep.subr.bf16.mxu0 0
      %2588 = vmatpush1.bf16.xpose.msra.mxu0 0
      %2589 = vmatprep.subr.bf16.mxu0 0
      %2590 = vmatpush1.bf16.xpose.msra.mxu0 0
      %2591 = vmatprep.subr.bf16.mxu0 0
      %2592 = vmatpush1.bf16.xpose.msra.mxu0 0
      %2593 = vmatprep.subr.bf16.mxu0 0
      %2594 = vmatpush1.bf16.xpose.msra.mxu0 0
      %2595 = vmatprep.subr.bf16.mxu0 0
      %2596 = vmatpush1.bf16.xpose.msra.mxu0 0
      %2597 = vmatprep.subr.bf16.mxu0 0
      %2598 = vmatpush1.bf16.xpose.msra.mxu0 0
      %2599 = vmatprep.subr.bf16.mxu0 0
      %2600 = vmatpush1.bf16.xpose.msra.mxu0 0
      %2601 = vmatprep.subr.bf16.mxu0 0
      %2602 = vmatpush1.bf16.xpose.msra.mxu0 0
      %2603 = vmatprep.mubr.bf16.mxu0 0
      %2604 = vmatmul.mubr.bf16.gmra.mrb[0].mxu0 %v2566
      %v2605 = vpop.f32.mrb[0].mxu0
      %v2606 = vadd.f32 0.0, %v2605
      %v2607 = vpop.f32.mrb[0].mxu0
      %v2608 = vpop.f32.mrb[0].mxu0
      %v2609 = vpop.f32.mrb[0].mxu0
      %2610 = vdwg.mxu0
      %2611 = vrot.lane.b32.xlu0 %v2338, 120
      %v2612 = vpop.permute.xlu0 %2611
      %2613 = vrot.lane.b32.xlu0 %v2338, 88
      %v2614 = vpop.permute.xlu0 %2613
      %v2616 = vsel %vm999, %v2612, 0
      %v2619 = vsel %vm999, %v2614, 0
      %2621 = vmatprep.subr.bf16.mxu0 0
      %2622 = vmatpush1.bf16.xpose.msra.mxu0 %v2619
      %2623 = vmatprep.subr.bf16.mxu0 0
      %2624 = vmatpush1.bf16.xpose.msra.mxu0 0
      %2625 = vmatprep.subr.bf16.mxu0 0
      %2626 = vmatpush1.bf16.xpose.msra.mxu0 0
      %2627 = vmatprep.subr.bf16.mxu0 0
      %2628 = vmatpush1.bf16.xpose.msra.mxu0 0
      %2629 = vmatprep.subr.bf16.mxu0 0
      %2630 = vmatpush1.bf16.xpose.msra.mxu0 0
      %2631 = vmatprep.subr.bf16.mxu0 0
      %2632 = vmatpush1.bf16.xpose.msra.mxu0 0
      %2633 = vmatprep.subr.bf16.mxu0 0
      %2634 = vmatpush1.bf16.xpose.msra.mxu0 0
      %2635 = vmatprep.subr.bf16.mxu0 0
      %2636 = vmatpush1.bf16.xpose.msra.mxu0 0
      %2637 = vmatprep.subr.bf16.mxu0 0
      %2638 = vmatpush1.bf16.xpose.msra.mxu0 0
      %2639 = vmatprep.subr.bf16.mxu0 0
      %2640 = vmatpush1.bf16.xpose.msra.mxu0 0
      %2641 = vmatprep.subr.bf16.mxu0 0
      %2642 = vmatpush1.bf16.xpose.msra.mxu0 0
      %2643 = vmatprep.subr.bf16.mxu0 0
      %2644 = vmatpush1.bf16.xpose.msra.mxu0 0
      %2645 = vmatprep.subr.bf16.mxu0 0
      %2646 = vmatpush1.bf16.xpose.msra.mxu0 0
      %2647 = vmatprep.subr.bf16.mxu0 0
      %2648 = vmatpush1.bf16.xpose.msra.mxu0 0
      %2649 = vmatprep.subr.bf16.mxu0 0
      %2650 = vmatpush1.bf16.xpose.msra.mxu0 0
      %2651 = vmatprep.subr.bf16.mxu0 0
      %2652 = vmatpush1.bf16.xpose.msra.mxu0 0
      %2653 = vmatprep.mubr.bf16.mxu0 0
      %2654 = vmatmul.mubr.bf16.gmra.mrb[0].mxu0 %v2616
      %v2655 = vpop.f32.mrb[0].mxu0
      %v2656 = vadd.f32 0.0, %v2655
      %v2657 = vpop.f32.mrb[0].mxu0
      %v2658 = vpop.f32.mrb[0].mxu0
      %v2659 = vpop.f32.mrb[0].mxu0
      %2660 = vdwg.mxu0
      %v2661 = vmul.f32 %v2606, 0.35355338
      %v2662 = vmul.f32 %v2656, 0.35355338
      %v2663 = vadd.f32 %v2661, %v1102
      %v2664 = vadd.f32 %v2662, %v1106
      %v2665 = vsel %vm999, %v2663, -inf
      %2666 = vmax.xlane.f32.xlu0 %v2665
      %v2667 = vpop.xlane.xlu0 %2666
      %v2668 = vsel %vm999, %v2664, -inf
      %2669 = vmax.xlane.f32.xlu0 %v2668
      %v2670 = vpop.xlane.xlu0 %2669
      %v2671 = vsub.f32 %v2663, %v2667
      %v2672 = vsub.f32 %v2664, %v2670
      %v2673 = vmul.f32 %v2671, 1.442695
      %v2674 = vpow.pop %v2673
      %v2675 = vmul.f32 %v2672, 1.442695
      %v2676 = vpow.pop %v2675
      %v2677 = vsel %vm999, %v2674, 0.0
      %2678 = vadd.xlane.f32.xlu0 %v2677
      %v2679 = vpop.xlane.xlu0 %2678
      %v2680 = vsel %vm999, %v2676, 0.0
      %2681 = vadd.xlane.f32.xlu0 %v2680
      %v2682 = vpop.xlane.xlu0 %2681
      %v2683 = vrcp.pop %v2679
      %v2684 = vrcp.pop %v2682
      %v2685 = vmul.f32 %v2674, %v2683
      %v2686 = vmul.f32 %v2676, %v2684
      %v2687 = vpack.c.bf16 %v2685, %v2685
      %v2688 = vpack.c.bf16 %v2686, %v2686
      %2689 = vrot.lane.b32.xlu0 %v2337, 56
      %v2690 = vpop.permute.xlu0 %2689
      %v2692 = vsel %vm999, %v2687, 0
      %v2695 = vsel %vm1140, %v2690, 0
      %2697 = vmatprep.subr.bf16.mxu0 0
      %2698 = vmatpush1.bf16.msra.mxu0 %v2695
      %2699 = vmatprep.subr.bf16.mxu0 0
      %2700 = vmatpush1.bf16.msra.mxu0 0
      %2701 = vmatprep.subr.bf16.mxu0 0
      %2702 = vmatpush1.bf16.msra.mxu0 0
      %2703 = vmatprep.subr.bf16.mxu0 0
      %2704 = vmatpush1.bf16.msra.mxu0 0
      %2705 = vmatprep.subr.bf16.mxu0 0
      %2706 = vmatpush1.bf16.msra.mxu0 0
      %2707 = vmatprep.subr.bf16.mxu0 0
      %2708 = vmatpush1.bf16.msra.mxu0 0
      %2709 = vmatprep.subr.bf16.mxu0 0
      %2710 = vmatpush1.bf16.msra.mxu0 0
      %2711 = vmatprep.subr.bf16.mxu0 0
      %2712 = vmatpush1.bf16.msra.mxu0 0
      %2713 = vmatprep.subr.bf16.mxu0 0
      %2714 = vmatpush1.bf16.msra.mxu0 0
      %2715 = vmatprep.subr.bf16.mxu0 0
      %2716 = vmatpush1.bf16.msra.mxu0 0
      %2717 = vmatprep.subr.bf16.mxu0 0
      %2718 = vmatpush1.bf16.msra.mxu0 0
      %2719 = vmatprep.subr.bf16.mxu0 0
      %2720 = vmatpush1.bf16.msra.mxu0 0
      %2721 = vmatprep.subr.bf16.mxu0 0
      %2722 = vmatpush1.bf16.msra.mxu0 0
      %2723 = vmatprep.subr.bf16.mxu0 0
      %2724 = vmatpush1.bf16.msra.mxu0 0
      %2725 = vmatprep.subr.bf16.mxu0 0
      %2726 = vmatpush1.bf16.msra.mxu0 0
      %2727 = vmatprep.subr.bf16.mxu0 0
      %2728 = vmatpush1.bf16.msra.mxu0 0
      %2729 = vmatprep.mubr.bf16.mxu0 0
      %2730 = vmatmul.mubr.bf16.gmra.mrb[0].mxu0 %v2692
      %v2731 = vpop.f32.mrb[0].mxu0
      %v2732 = vadd.f32 0.0, %v2731
      %v2733 = vpop.f32.mrb[0].mxu0
      %v2734 = vpop.f32.mrb[0].mxu0
      %v2735 = vpop.f32.mrb[0].mxu0
      %2736 = vdwg.mxu0
      %2737 = vrot.lane.b32.xlu0 %v2338, 56
      %v2738 = vpop.permute.xlu0 %2737
      %v2740 = vsel %vm999, %v2688, 0
      %v2743 = vsel %vm1140, %v2738, 0
      %2745 = vmatprep.subr.bf16.mxu0 0
      %2746 = vmatpush1.bf16.msra.mxu0 %v2743
      %2747 = vmatprep.subr.bf16.mxu0 0
      %2748 = vmatpush1.bf16.msra.mxu0 0
      %2749 = vmatprep.subr.bf16.mxu0 0
      %2750 = vmatpush1.bf16.msra.mxu0 0
      %2751 = vmatprep.subr.bf16.mxu0 0
      %2752 = vmatpush1.bf16.msra.mxu0 0
      %2753 = vmatprep.subr.bf16.mxu0 0
      %2754 = vmatpush1.bf16.msra.mxu0 0
      %2755 = vmatprep.subr.bf16.mxu0 0
      %2756 = vmatpush1.bf16.msra.mxu0 0
      %2757 = vmatprep.subr.bf16.mxu0 0
      %2758 = vmatpush1.bf16.msra.mxu0 0
      %2759 = vmatprep.subr.bf16.mxu0 0
      %2760 = vmatpush1.bf16.msra.mxu0 0
      %2761 = vmatprep.subr.bf16.mxu0 0
      %2762 = vmatpush1.bf16.msra.mxu0 0
      %2763 = vmatprep.subr.bf16.mxu0 0
      %2764 = vmatpush1.bf16.msra.mxu0 0
      %2765 = vmatprep.subr.bf16.mxu0 0
      %2766 = vmatpush1.bf16.msra.mxu0 0
      %2767 = vmatprep.subr.bf16.mxu0 0
      %2768 = vmatpush1.bf16.msra.mxu0 0
      %2769 = vmatprep.subr.bf16.mxu0 0
      %2770 = vmatpush1.bf16.msra.mxu0 0
      %2771 = vmatprep.subr.bf16.mxu0 0
      %2772 = vmatpush1.bf16.msra.mxu0 0
      %2773 = vmatprep.subr.bf16.mxu0 0
      %2774 = vmatpush1.bf16.msra.mxu0 0
      %2775 = vmatprep.subr.bf16.mxu0 0
      %2776 = vmatpush1.bf16.msra.mxu0 0
      %2777 = vmatprep.mubr.bf16.mxu0 0
      %2778 = vmatmul.mubr.bf16.gmra.mrb[0].mxu0 %v2740
      %v2779 = vpop.f32.mrb[0].mxu0
      %v2780 = vadd.f32 0.0, %v2779
      %v2781 = vpop.f32.mrb[0].mxu0
      %v2782 = vpop.f32.mrb[0].mxu0
      %v2783 = vpop.f32.mrb[0].mxu0
      %2784 = vdwg.mxu0
      %2785 = vrot.lane.b32.xlu0 %v2337, 112
      %v2786 = vpop.permute.xlu0 %2785
      %2787 = vrot.lane.b32.xlu0 %v2337, 80
      %v2788 = vpop.permute.xlu0 %2787
      %v2790 = vsel %vm999, %v2786, 0
      %v2793 = vsel %vm999, %v2788, 0
      %2795 = vmatprep.subr.bf16.mxu0 0
      %2796 = vmatpush1.bf16.xpose.msra.mxu0 %v2793
      %2797 = vmatprep.subr.bf16.mxu0 0
      %2798 = vmatpush1.bf16.xpose.msra.mxu0 0
      %2799 = vmatprep.subr.bf16.mxu0 0
      %2800 = vmatpush1.bf16.xpose.msra.mxu0 0
      %2801 = vmatprep.subr.bf16.mxu0 0
      %2802 = vmatpush1.bf16.xpose.msra.mxu0 0
      %2803 = vmatprep.subr.bf16.mxu0 0
      %2804 = vmatpush1.bf16.xpose.msra.mxu0 0
      %2805 = vmatprep.subr.bf16.mxu0 0
      %2806 = vmatpush1.bf16.xpose.msra.mxu0 0
      %2807 = vmatprep.subr.bf16.mxu0 0
      %2808 = vmatpush1.bf16.xpose.msra.mxu0 0
      %2809 = vmatprep.subr.bf16.mxu0 0
      %2810 = vmatpush1.bf16.xpose.msra.mxu0 0
      %2811 = vmatprep.subr.bf16.mxu0 0
      %2812 = vmatpush1.bf16.xpose.msra.mxu0 0
      %2813 = vmatprep.subr.bf16.mxu0 0
      %2814 = vmatpush1.bf16.xpose.msra.mxu0 0
      %2815 = vmatprep.subr.bf16.mxu0 0
      %2816 = vmatpush1.bf16.xpose.msra.mxu0 0
      %2817 = vmatprep.subr.bf16.mxu0 0
      %2818 = vmatpush1.bf16.xpose.msra.mxu0 0
      %2819 = vmatprep.subr.bf16.mxu0 0
      %2820 = vmatpush1.bf16.xpose.msra.mxu0 0
      %2821 = vmatprep.subr.bf16.mxu0 0
      %2822 = vmatpush1.bf16.xpose.msra.mxu0 0
      %2823 = vmatprep.subr.bf16.mxu0 0
      %2824 = vmatpush1.bf16.xpose.msra.mxu0 0
      %2825 = vmatprep.subr.bf16.mxu0 0
      %2826 = vmatpush1.bf16.xpose.msra.mxu0 0
      %2827 = vmatprep.mubr.bf16.mxu0 0
      %2828 = vmatmul.mubr.bf16.gmra.mrb[0].mxu0 %v2790
      %v2829 = vpop.f32.mrb[0].mxu0
      %v2830 = vadd.f32 0.0, %v2829
      %v2831 = vpop.f32.mrb[0].mxu0
      %v2832 = vpop.f32.mrb[0].mxu0
      %v2833 = vpop.f32.mrb[0].mxu0
      %2834 = vdwg.mxu0
      %2835 = vrot.lane.b32.xlu0 %v2338, 112
      %v2836 = vpop.permute.xlu0 %2835
      %2837 = vrot.lane.b32.xlu0 %v2338, 80
      %v2838 = vpop.permute.xlu0 %2837
      %v2840 = vsel %vm999, %v2836, 0
      %v2843 = vsel %vm999, %v2838, 0
      %2845 = vmatprep.subr.bf16.mxu0 0
      %2846 = vmatpush1.bf16.xpose.msra.mxu0 %v2843
      %2847 = vmatprep.subr.bf16.mxu0 0
      %2848 = vmatpush1.bf16.xpose.msra.mxu0 0
      %2849 = vmatprep.subr.bf16.mxu0 0
      %2850 = vmatpush1.bf16.xpose.msra.mxu0 0
      %2851 = vmatprep.subr.bf16.mxu0 0
      %2852 = vmatpush1.bf16.xpose.msra.mxu0 0
      %2853 = vmatprep.subr.bf16.mxu0 0
      %2854 = vmatpush1.bf16.xpose.msra.mxu0 0
      %2855 = vmatprep.subr.bf16.mxu0 0
      %2856 = vmatpush1.bf16.xpose.msra.mxu0 0
      %2857 = vmatprep.subr.bf16.mxu0 0
      %2858 = vmatpush1.bf16.xpose.msra.mxu0 0
      %2859 = vmatprep.subr.bf16.mxu0 0
      %2860 = vmatpush1.bf16.xpose.msra.mxu0 0
      %2861 = vmatprep.subr.bf16.mxu0 0
      %2862 = vmatpush1.bf16.xpose.msra.mxu0 0
      %2863 = vmatprep.subr.bf16.mxu0 0
      %2864 = vmatpush1.bf16.xpose.msra.mxu0 0
      %2865 = vmatprep.subr.bf16.mxu0 0
      %2866 = vmatpush1.bf16.xpose.msra.mxu0 0
      %2867 = vmatprep.subr.bf16.mxu0 0
      %2868 = vmatpush1.bf16.xpose.msra.mxu0 0
      %2869 = vmatprep.subr.bf16.mxu0 0
      %2870 = vmatpush1.bf16.xpose.msra.mxu0 0
      %2871 = vmatprep.subr.bf16.mxu0 0
      %2872 = vmatpush1.bf16.xpose.msra.mxu0 0
      %2873 = vmatprep.subr.bf16.mxu0 0
      %2874 = vmatpush1.bf16.xpose.msra.mxu0 0
      %2875 = vmatprep.subr.bf16.mxu0 0
      %2876 = vmatpush1.bf16.xpose.msra.mxu0 0
      %2877 = vmatprep.mubr.bf16.mxu0 0
      %2878 = vmatmul.mubr.bf16.gmra.mrb[0].mxu0 %v2840
      %v2879 = vpop.f32.mrb[0].mxu0
      %v2880 = vadd.f32 0.0, %v2879
      %v2881 = vpop.f32.mrb[0].mxu0
      %v2882 = vpop.f32.mrb[0].mxu0
      %v2883 = vpop.f32.mrb[0].mxu0
      %2884 = vdwg.mxu0
      %v2885 = vmul.f32 %v2830, 0.35355338
      %v2886 = vmul.f32 %v2880, 0.35355338
      %v2887 = vadd.f32 %v2885, %v1102
      %v2888 = vadd.f32 %v2886, %v1106
      %v2889 = vsel %vm999, %v2887, -inf
      %2890 = vmax.xlane.f32.xlu0 %v2889
      %v2891 = vpop.xlane.xlu0 %2890
      %v2892 = vsel %vm999, %v2888, -inf
      %2893 = vmax.xlane.f32.xlu0 %v2892
      %v2894 = vpop.xlane.xlu0 %2893
      %v2895 = vsub.f32 %v2887, %v2891
      %v2896 = vsub.f32 %v2888, %v2894
      %v2897 = vmul.f32 %v2895, 1.442695
      %v2898 = vpow.pop %v2897
      %v2899 = vmul.f32 %v2896, 1.442695
      %v2900 = vpow.pop %v2899
      %v2901 = vsel %vm999, %v2898, 0.0
      %2902 = vadd.xlane.f32.xlu0 %v2901
      %v2903 = vpop.xlane.xlu0 %2902
      %v2904 = vsel %vm999, %v2900, 0.0
      %2905 = vadd.xlane.f32.xlu0 %v2904
      %v2906 = vpop.xlane.xlu0 %2905
      %v2907 = vrcp.pop %v2903
      %v2908 = vrcp.pop %v2906
      %v2909 = vmul.f32 %v2898, %v2907
      %v2910 = vmul.f32 %v2900, %v2908
      %v2911 = vpack.c.bf16 %v2909, %v2909
      %v2912 = vpack.c.bf16 %v2910, %v2910
      %2913 = vrot.lane.b32.xlu0 %v2337, 48
      %v2914 = vpop.permute.xlu0 %2913
      %v2916 = vsel %vm999, %v2911, 0
      %v2919 = vsel %vm1140, %v2914, 0
      %2921 = vmatprep.subr.bf16.mxu0 0
      %2922 = vmatpush1.bf16.msra.mxu0 %v2919
      %2923 = vmatprep.subr.bf16.mxu0 0
      %2924 = vmatpush1.bf16.msra.mxu0 0
      %2925 = vmatprep.subr.bf16.mxu0 0
      %2926 = vmatpush1.bf16.msra.mxu0 0
      %2927 = vmatprep.subr.bf16.mxu0 0
      %2928 = vmatpush1.bf16.msra.mxu0 0
      %2929 = vmatprep.subr.bf16.mxu0 0
      %2930 = vmatpush1.bf16.msra.mxu0 0
      %2931 = vmatprep.subr.bf16.mxu0 0
      %2932 = vmatpush1.bf16.msra.mxu0 0
      %2933 = vmatprep.subr.bf16.mxu0 0
      %2934 = vmatpush1.bf16.msra.mxu0 0
      %2935 = vmatprep.subr.bf16.mxu0 0
      %2936 = vmatpush1.bf16.msra.mxu0 0
      %2937 = vmatprep.subr.bf16.mxu0 0
      %2938 = vmatpush1.bf16.msra.mxu0 0
      %2939 = vmatprep.subr.bf16.mxu0 0
      %2940 = vmatpush1.bf16.msra.mxu0 0
      %2941 = vmatprep.subr.bf16.mxu0 0
      %2942 = vmatpush1.bf16.msra.mxu0 0
      %2943 = vmatprep.subr.bf16.mxu0 0
      %2944 = vmatpush1.bf16.msra.mxu0 0
      %2945 = vmatprep.subr.bf16.mxu0 0
      %2946 = vmatpush1.bf16.msra.mxu0 0
      %2947 = vmatprep.subr.bf16.mxu0 0
      %2948 = vmatpush1.bf16.msra.mxu0 0
      %2949 = vmatprep.subr.bf16.mxu0 0
      %2950 = vmatpush1.bf16.msra.mxu0 0
      %2951 = vmatprep.subr.bf16.mxu0 0
      %2952 = vmatpush1.bf16.msra.mxu0 0
      %2953 = vmatprep.mubr.bf16.mxu0 0
      %2954 = vmatmul.mubr.bf16.gmra.mrb[0].mxu0 %v2916
      %v2955 = vpop.f32.mrb[0].mxu0
      %v2956 = vadd.f32 0.0, %v2955
      %v2957 = vpop.f32.mrb[0].mxu0
      %v2958 = vpop.f32.mrb[0].mxu0
      %v2959 = vpop.f32.mrb[0].mxu0
      %2960 = vdwg.mxu0
      %2961 = vrot.lane.b32.xlu0 %v2338, 48
      %v2962 = vpop.permute.xlu0 %2961
      %v2964 = vsel %vm999, %v2912, 0
      %v2967 = vsel %vm1140, %v2962, 0
      %2969 = vmatprep.subr.bf16.mxu0 0
      %2970 = vmatpush1.bf16.msra.mxu0 %v2967
      %2971 = vmatprep.subr.bf16.mxu0 0
      %2972 = vmatpush1.bf16.msra.mxu0 0
      %2973 = vmatprep.subr.bf16.mxu0 0
      %2974 = vmatpush1.bf16.msra.mxu0 0
      %2975 = vmatprep.subr.bf16.mxu0 0
      %2976 = vmatpush1.bf16.msra.mxu0 0
      %2977 = vmatprep.subr.bf16.mxu0 0
      %2978 = vmatpush1.bf16.msra.mxu0 0
      %2979 = vmatprep.subr.bf16.mxu0 0
      %2980 = vmatpush1.bf16.msra.mxu0 0
      %2981 = vmatprep.subr.bf16.mxu0 0
      %2982 = vmatpush1.bf16.msra.mxu0 0
      %2983 = vmatprep.subr.bf16.mxu0 0
      %2984 = vmatpush1.bf16.msra.mxu0 0
      %2985 = vmatprep.subr.bf16.mxu0 0
      %2986 = vmatpush1.bf16.msra.mxu0 0
      %2987 = vmatprep.subr.bf16.mxu0 0
      %2988 = vmatpush1.bf16.msra.mxu0 0
      %2989 = vmatprep.subr.bf16.mxu0 0
      %2990 = vmatpush1.bf16.msra.mxu0 0
      %2991 = vmatprep.subr.bf16.mxu0 0
      %2992 = vmatpush1.bf16.msra.mxu0 0
      %2993 = vmatprep.subr.bf16.mxu0 0
      %2994 = vmatpush1.bf16.msra.mxu0 0
      %2995 = vmatprep.subr.bf16.mxu0 0
      %2996 = vmatpush1.bf16.msra.mxu0 0
      %2997 = vmatprep.subr.bf16.mxu0 0
      %2998 = vmatpush1.bf16.msra.mxu0 0
      %2999 = vmatprep.subr.bf16.mxu0 0
      %3000 = vmatpush1.bf16.msra.mxu0 0
      %3001 = vmatprep.mubr.bf16.mxu0 0
      %3002 = vmatmul.mubr.bf16.gmra.mrb[0].mxu0 %v2964
      %v3003 = vpop.f32.mrb[0].mxu0
      %v3004 = vadd.f32 0.0, %v3003
      %v3005 = vpop.f32.mrb[0].mxu0
      %v3006 = vpop.f32.mrb[0].mxu0
      %v3007 = vpop.f32.mrb[0].mxu0
      %3008 = vdwg.mxu0
      %3009 = vrot.lane.b32.xlu0 %v2337, 104
      %v3010 = vpop.permute.xlu0 %3009
      %3011 = vrot.lane.b32.xlu0 %v2337, 72
      %v3012 = vpop.permute.xlu0 %3011
      %v3014 = vsel %vm999, %v3010, 0
      %v3017 = vsel %vm999, %v3012, 0
      %3019 = vmatprep.subr.bf16.mxu0 0
      %3020 = vmatpush1.bf16.xpose.msra.mxu0 %v3017
      %3021 = vmatprep.subr.bf16.mxu0 0
      %3022 = vmatpush1.bf16.xpose.msra.mxu0 0
      %3023 = vmatprep.subr.bf16.mxu0 0
      %3024 = vmatpush1.bf16.xpose.msra.mxu0 0
      %3025 = vmatprep.subr.bf16.mxu0 0
      %3026 = vmatpush1.bf16.xpose.msra.mxu0 0
      %3027 = vmatprep.subr.bf16.mxu0 0
      %3028 = vmatpush1.bf16.xpose.msra.mxu0 0
      %3029 = vmatprep.subr.bf16.mxu0 0
      %3030 = vmatpush1.bf16.xpose.msra.mxu0 0
      %3031 = vmatprep.subr.bf16.mxu0 0
      %3032 = vmatpush1.bf16.xpose.msra.mxu0 0
      %3033 = vmatprep.subr.bf16.mxu0 0
      %3034 = vmatpush1.bf16.xpose.msra.mxu0 0
      %3035 = vmatprep.subr.bf16.mxu0 0
      %3036 = vmatpush1.bf16.xpose.msra.mxu0 0
      %3037 = vmatprep.subr.bf16.mxu0 0
      %3038 = vmatpush1.bf16.xpose.msra.mxu0 0
      %3039 = vmatprep.subr.bf16.mxu0 0
      %3040 = vmatpush1.bf16.xpose.msra.mxu0 0
      %3041 = vmatprep.subr.bf16.mxu0 0
      %3042 = vmatpush1.bf16.xpose.msra.mxu0 0
      %3043 = vmatprep.subr.bf16.mxu0 0
      %3044 = vmatpush1.bf16.xpose.msra.mxu0 0
      %3045 = vmatprep.subr.bf16.mxu0 0
      %3046 = vmatpush1.bf16.xpose.msra.mxu0 0
      %3047 = vmatprep.subr.bf16.mxu0 0
      %3048 = vmatpush1.bf16.xpose.msra.mxu0 0
      %3049 = vmatprep.subr.bf16.mxu0 0
      %3050 = vmatpush1.bf16.xpose.msra.mxu0 0
      %3051 = vmatprep.mubr.bf16.mxu0 0
      %3052 = vmatmul.mubr.bf16.gmra.mrb[0].mxu0 %v3014
      %v3053 = vpop.f32.mrb[0].mxu0
      %v3054 = vadd.f32 0.0, %v3053
      %v3055 = vpop.f32.mrb[0].mxu0
      %v3056 = vpop.f32.mrb[0].mxu0
      %v3057 = vpop.f32.mrb[0].mxu0
      %3058 = vdwg.mxu0
      %3059 = vrot.lane.b32.xlu0 %v2338, 104
      %v3060 = vpop.permute.xlu0 %3059
      %3061 = vrot.lane.b32.xlu0 %v2338, 72
      %v3062 = vpop.permute.xlu0 %3061
      %v3064 = vsel %vm999, %v3060, 0
      %v3067 = vsel %vm999, %v3062, 0
      %3069 = vmatprep.subr.bf16.mxu0 0
      %3070 = vmatpush1.bf16.xpose.msra.mxu0 %v3067
      %3071 = vmatprep.subr.bf16.mxu0 0
      %3072 = vmatpush1.bf16.xpose.msra.mxu0 0
      %3073 = vmatprep.subr.bf16.mxu0 0
      %3074 = vmatpush1.bf16.xpose.msra.mxu0 0
      %3075 = vmatprep.subr.bf16.mxu0 0
      %3076 = vmatpush1.bf16.xpose.msra.mxu0 0
      %3077 = vmatprep.subr.bf16.mxu0 0
      %3078 = vmatpush1.bf16.xpose.msra.mxu0 0
      %3079 = vmatprep.subr.bf16.mxu0 0
      %3080 = vmatpush1.bf16.xpose.msra.mxu0 0
      %3081 = vmatprep.subr.bf16.mxu0 0
      %3082 = vmatpush1.bf16.xpose.msra.mxu0 0
      %3083 = vmatprep.subr.bf16.mxu0 0
      %3084 = vmatpush1.bf16.xpose.msra.mxu0 0
      %3085 = vmatprep.subr.bf16.mxu0 0
      %3086 = vmatpush1.bf16.xpose.msra.mxu0 0
      %3087 = vmatprep.subr.bf16.mxu0 0
      %3088 = vmatpush1.bf16.xpose.msra.mxu0 0
      %3089 = vmatprep.subr.bf16.mxu0 0
      %3090 = vmatpush1.bf16.xpose.msra.mxu0 0
      %3091 = vmatprep.subr.bf16.mxu0 0
      %3092 = vmatpush1.bf16.xpose.msra.mxu0 0
      %3093 = vmatprep.subr.bf16.mxu0 0
      %3094 = vmatpush1.bf16.xpose.msra.mxu0 0
      %3095 = vmatprep.subr.bf16.mxu0 0
      %3096 = vmatpush1.bf16.xpose.msra.mxu0 0
      %3097 = vmatprep.subr.bf16.mxu0 0
      %3098 = vmatpush1.bf16.xpose.msra.mxu0 0
      %3099 = vmatprep.subr.bf16.mxu0 0
      %3100 = vmatpush1.bf16.xpose.msra.mxu0 0
      %3101 = vmatprep.mubr.bf16.mxu0 0
      %3102 = vmatmul.mubr.bf16.gmra.mrb[0].mxu0 %v3064
      %v3103 = vpop.f32.mrb[0].mxu0
      %v3104 = vadd.f32 0.0, %v3103
      %v3105 = vpop.f32.mrb[0].mxu0
      %v3106 = vpop.f32.mrb[0].mxu0
      %v3107 = vpop.f32.mrb[0].mxu0
      %3108 = vdwg.mxu0
      %v3109 = vmul.f32 %v3054, 0.35355338
      %v3110 = vmul.f32 %v3104, 0.35355338
      %v3111 = vadd.f32 %v3109, %v1102
      %v3112 = vadd.f32 %v3110, %v1106
      %v3113 = vsel %vm999, %v3111, -inf
      %3114 = vmax.xlane.f32.xlu0 %v3113
      %v3115 = vpop.xlane.xlu0 %3114
      %v3116 = vsel %vm999, %v3112, -inf
      %3117 = vmax.xlane.f32.xlu0 %v3116
      %v3118 = vpop.xlane.xlu0 %3117
      %v3119 = vsub.f32 %v3111, %v3115
      %v3120 = vsub.f32 %v3112, %v3118
      %v3121 = vmul.f32 %v3119, 1.442695
      %v3122 = vpow.pop %v3121
      %v3123 = vmul.f32 %v3120, 1.442695
      %v3124 = vpow.pop %v3123
      %v3125 = vsel %vm999, %v3122, 0.0
      %3126 = vadd.xlane.f32.xlu0 %v3125
      %v3127 = vpop.xlane.xlu0 %3126
      %v3128 = vsel %vm999, %v3124, 0.0
      %3129 = vadd.xlane.f32.xlu0 %v3128
      %v3130 = vpop.xlane.xlu0 %3129
      %v3131 = vrcp.pop %v3127
      %v3132 = vrcp.pop %v3130
      %v3133 = vmul.f32 %v3122, %v3131
      %v3134 = vmul.f32 %v3124, %v3132
      %v3135 = vpack.c.bf16 %v3133, %v3133
      %v3136 = vpack.c.bf16 %v3134, %v3134
      %3137 = vrot.lane.b32.xlu0 %v2337, 40
      %v3138 = vpop.permute.xlu0 %3137
      %v3140 = vsel %vm999, %v3135, 0
      %v3143 = vsel %vm1140, %v3138, 0
      %3145 = vmatprep.subr.bf16.mxu0 0
      %3146 = vmatpush1.bf16.msra.mxu0 %v3143
      %3147 = vmatprep.subr.bf16.mxu0 0
      %3148 = vmatpush1.bf16.msra.mxu0 0
      %3149 = vmatprep.subr.bf16.mxu0 0
      %3150 = vmatpush1.bf16.msra.mxu0 0
      %3151 = vmatprep.subr.bf16.mxu0 0
      %3152 = vmatpush1.bf16.msra.mxu0 0
      %3153 = vmatprep.subr.bf16.mxu0 0
      %3154 = vmatpush1.bf16.msra.mxu0 0
      %3155 = vmatprep.subr.bf16.mxu0 0
      %3156 = vmatpush1.bf16.msra.mxu0 0
      %3157 = vmatprep.subr.bf16.mxu0 0
      %3158 = vmatpush1.bf16.msra.mxu0 0
      %3159 = vmatprep.subr.bf16.mxu0 0
      %3160 = vmatpush1.bf16.msra.mxu0 0
      %3161 = vmatprep.subr.bf16.mxu0 0
      %3162 = vmatpush1.bf16.msra.mxu0 0
      %3163 = vmatprep.subr.bf16.mxu0 0
      %3164 = vmatpush1.bf16.msra.mxu0 0
      %3165 = vmatprep.subr.bf16.mxu0 0
      %3166 = vmatpush1.bf16.msra.mxu0 0
      %3167 = vmatprep.subr.bf16.mxu0 0
      %3168 = vmatpush1.bf16.msra.mxu0 0
      %3169 = vmatprep.subr.bf16.mxu0 0
      %3170 = vmatpush1.bf16.msra.mxu0 0
      %3171 = vmatprep.subr.bf16.mxu0 0
      %3172 = vmatpush1.bf16.msra.mxu0 0
      %3173 = vmatprep.subr.bf16.mxu0 0
      %3174 = vmatpush1.bf16.msra.mxu0 0
      %3175 = vmatprep.subr.bf16.mxu0 0
      %3176 = vmatpush1.bf16.msra.mxu0 0
      %3177 = vmatprep.mubr.bf16.mxu0 0
      %3178 = vmatmul.mubr.bf16.gmra.mrb[0].mxu0 %v3140
      %v3179 = vpop.f32.mrb[0].mxu0
      %v3180 = vadd.f32 0.0, %v3179
      %v3181 = vpop.f32.mrb[0].mxu0
      %v3182 = vpop.f32.mrb[0].mxu0
      %v3183 = vpop.f32.mrb[0].mxu0
      %3184 = vdwg.mxu0
      %3185 = vrot.lane.b32.xlu0 %v2338, 40
      %v3186 = vpop.permute.xlu0 %3185
      %v3188 = vsel %vm999, %v3136, 0
      %v3191 = vsel %vm1140, %v3186, 0
      %3193 = vmatprep.subr.bf16.mxu0 0
      %3194 = vmatpush1.bf16.msra.mxu0 %v3191
      %3195 = vmatprep.subr.bf16.mxu0 0
      %3196 = vmatpush1.bf16.msra.mxu0 0
      %3197 = vmatprep.subr.bf16.mxu0 0
      %3198 = vmatpush1.bf16.msra.mxu0 0
      %3199 = vmatprep.subr.bf16.mxu0 0
      %3200 = vmatpush1.bf16.msra.mxu0 0
      %3201 = vmatprep.subr.bf16.mxu0 0
      %3202 = vmatpush1.bf16.msra.mxu0 0
      %3203 = vmatprep.subr.bf16.mxu0 0
      %3204 = vmatpush1.bf16.msra.mxu0 0
      %3205 = vmatprep.subr.bf16.mxu0 0
      %3206 = vmatpush1.bf16.msra.mxu0 0
      %3207 = vmatprep.subr.bf16.mxu0 0
      %3208 = vmatpush1.bf16.msra.mxu0 0
      %3209 = vmatprep.subr.bf16.mxu0 0
      %3210 = vmatpush1.bf16.msra.mxu0 0
      %3211 = vmatprep.subr.bf16.mxu0 0
      %3212 = vmatpush1.bf16.msra.mxu0 0
      %3213 = vmatprep.subr.bf16.mxu0 0
      %3214 = vmatpush1.bf16.msra.mxu0 0
      %3215 = vmatprep.subr.bf16.mxu0 0
      %3216 = vmatpush1.bf16.msra.mxu0 0
      %3217 = vmatprep.subr.bf16.mxu0 0
      %3218 = vmatpush1.bf16.msra.mxu0 0
      %3219 = vmatprep.subr.bf16.mxu0 0
      %3220 = vmatpush1.bf16.msra.mxu0 0
      %3221 = vmatprep.subr.bf16.mxu0 0
      %3222 = vmatpush1.bf16.msra.mxu0 0
      %3223 = vmatprep.subr.bf16.mxu0 0
      %3224 = vmatpush1.bf16.msra.mxu0 0
      %3225 = vmatprep.mubr.bf16.mxu0 0
      %3226 = vmatmul.mubr.bf16.gmra.mrb[0].mxu0 %v3188
      %v3227 = vpop.f32.mrb[0].mxu0
      %v3228 = vadd.f32 0.0, %v3227
      %v3229 = vpop.f32.mrb[0].mxu0
      %v3230 = vpop.f32.mrb[0].mxu0
      %v3231 = vpop.f32.mrb[0].mxu0
      %3232 = vdwg.mxu0
      %3235 = vrot.lane.b32.xlu0 %v2732, 8
      %v3236 = vpop.permute.xlu0 %3235
      %3237 = vrot.lane.b32.xlu0 %v2780, 8
      %v3238 = vpop.permute.xlu0 %3237
      %3243 = vrot.lane.b32.xlu0 %v2956, 16
      %v3244 = vpop.permute.xlu0 %3243
      %3245 = vrot.lane.b32.xlu0 %v3004, 16
      %v3246 = vpop.permute.xlu0 %3245
      %3251 = vrot.lane.b32.xlu0 %v3180, 24
      %v3252 = vpop.permute.xlu0 %3251
      %3253 = vrot.lane.b32.xlu0 %v3228, 24
      %v3254 = vpop.permute.xlu0 %3253
      %v3257 = vsel %vm999, %v2508, %v3236
      %v3258 = vsel %vm999, %v2556, %v3238
      %v3259 = vsel %vm1930, %v3257, %v3244
      %v3260 = vsel %vm1930, %v3258, %v3246
      %v3261 = vsel %vm1933, %v3259, %v3252
      %v3262 = vsel %vm1933, %v3260, %v3254
      %v3263 = vpack.c.bf16 %v3262, %v3261
      %s3264 = scalar_lea.vmem %s818, 16
      %v3265 = vld [vmem:[%s3264] sm:$0xf]
      %v3266 = vld [vmem:[%s3264 + $0x4] sm:$0xf]
      %v3267 = vld [vmem:[%s3264 + $0x8] sm:$0xf]
      %v3268 = vld [vmem:[%s3264 + $0xc] sm:$0xf]
      %s3269 = scalar_lea.vmem %s822, 1
      %v3270 = vld [vmem:[%s3269] sm:$0x1]
      %v3272 = vlaneseq
      %v3273 = vshrl.u32 %v3272, 7
      %v3274 = vsub.s32 0, %v3273
      %v3275 = vrot.slane %v3270, %v3274
      %v3281 = vunpack.c.l.b16 %v3265
      %v3282 = vunpack.c.l.b16 %v3266
      %v3283 = vunpack.c.l.b16 %v3267
      %v3284 = vunpack.c.l.b16 %v3268
      %v3285 = vpack.c.b16 %v3282, %v3281
      %v3286 = vpack.c.b16 %v3284, %v3283
      %v3290 = vsel %vm874, %v3263, 0
      %3292 = vmatprep.subr.bf16.mxu0 0
      %3293 = vmatpush1.bf16.msra.mxu0 %v3285
      %3294 = vmatprep.subr.bf16.mxu0 0
      %3295 = vmatpush1.bf16.msra.mxu0 %v3286
      %3296 = vmatprep.subr.bf16.mxu0 0
      %3297 = vmatpush1.bf16.msra.mxu0 0
      %3298 = vmatprep.subr.bf16.mxu0 0
      %3299 = vmatpush1.bf16.msra.mxu0 0
      %3300 = vmatprep.subr.bf16.mxu0 0
      %3301 = vmatpush1.bf16.msra.mxu0 0
      %3302 = vmatprep.subr.bf16.mxu0 0
      %3303 = vmatpush1.bf16.msra.mxu0 0
      %3304 = vmatprep.subr.bf16.mxu0 0
      %3305 = vmatpush1.bf16.msra.mxu0 0
      %3306 = vmatprep.subr.bf16.mxu0 0
      %3307 = vmatpush1.bf16.msra.mxu0 0
      %3308 = vmatprep.subr.bf16.mxu0 0
      %3309 = vmatpush1.bf16.msra.mxu0 0
      %3310 = vmatprep.subr.bf16.mxu0 0
      %3311 = vmatpush1.bf16.msra.mxu0 0
      %3312 = vmatprep.subr.bf16.mxu0 0
      %3313 = vmatpush1.bf16.msra.mxu0 0
      %3314 = vmatprep.subr.bf16.mxu0 0
      %3315 = vmatpush1.bf16.msra.mxu0 0
      %3316 = vmatprep.subr.bf16.mxu0 0
      %3317 = vmatpush1.bf16.msra.mxu0 0
      %3318 = vmatprep.subr.bf16.mxu0 0
      %3319 = vmatpush1.bf16.msra.mxu0 0
      %3320 = vmatprep.subr.bf16.mxu0 0
      %3321 = vmatpush1.bf16.msra.mxu0 0
      %3322 = vmatprep.subr.bf16.mxu0 0
      %3323 = vmatpush1.bf16.msra.mxu0 0
      %3324 = vmatprep.mubr.bf16.mxu0 0
      %3325 = vmatmul.mubr.bf16.gmra.mrb[0].mxu0 %v3290
      %v3326 = vpop.f32.mrb[0].mxu0
      %v3327 = vadd.f32 %v3275, %v3326
      %v3328 = vpop.f32.mrb[0].mxu0
      %v3329 = vpop.f32.mrb[0].mxu0
      %v3330 = vadd.f32 %v3275, %v3329
      %v3331 = vpop.f32.mrb[0].mxu0
      %3332 = vdwg.mxu0
      %v3333 = vadd.f32 %v3327, %v2265
      %v3334 = vadd.f32 %v3330, %v2266
      %s3335 = scalar_lea.vmem %s826, 1
      %v3336 = vld [vmem:[%s3335] sm:$0x1]
      %s3337 = scalar_lea.vmem %s830, 1
      %v3338 = vld [vmem:[%s3337] sm:$0x1]
      %v3339 = vsel %vm874, %v3333, 0.0
      %3340 = vadd.xlane.f32.xlu0 %v3339
      %v3341 = vpop.xlane.xlu0 %3340
      %v3342 = vsel %vm874, %v3334, 0.0
      %3343 = vadd.xlane.f32.xlu0 %v3342
      %v3344 = vpop.xlane.xlu0 %3343
      %v3345 = vmul.f32 %v3341, %v881
      %v3346 = vmul.f32 %v3344, %v881
      %v3347 = vsub.f32 %v3333, %v3345
      %v3348 = vsub.f32 %v3334, %v3346
      %v3349 = vmul.f32 %v3347, %v3347
      %v3350 = vmul.f32 %v3348, %v3348
      %v3351 = vsel %vm874, %v3349, 0.0
      %3352 = vadd.xlane.f32.xlu0 %v3351
      %v3353 = vpop.xlane.xlu0 %3352
      %v3354 = vsel %vm874, %v3350, 0.0
      %3355 = vadd.xlane.f32.xlu0 %v3354
      %v3356 = vpop.xlane.xlu0 %3355
      %v3357 = vmul.f32 %v3353, %v881
      %v3358 = vmul.f32 %v3356, %v881
      %v3359 = vadd.f32 %v3357, 1e-12
      %v3360 = vadd.f32 %v3358, 1e-12
      %v3361 = vrsqrt.pop %v3359
      %v3362 = vrsqrt.pop %v3360
      %v3363 = vmul.f32 %v3347, %v3361
      %v3364 = vmul.f32 %v3348, %v3362
      %v3366 = vlaneseq
      %v3367 = vshrl.u32 %v3366, 7
      %v3368 = vsub.s32 0, %v3367
      %v3369 = vrot.slane %v3336, %v3368
      %v3371 = vmul.f32 %v3363, %v3369
      %v3372 = vmul.f32 %v3364, %v3369
      %v3374 = vlaneseq
      %v3375 = vshrl.u32 %v3374, 7
      %v3376 = vsub.s32 0, %v3375
      %v3377 = vrot.slane %v3338, %v3376
      %v3379 = vadd.f32 %v3371, %v3377
      %v3380 = vadd.f32 %v3372, %v3377
      %v3381 = vpack.c.bf16 %v3380, %v3379
      %s3382 = scalar_lea.vmem %s835, 16
      %v3383 = vld [vmem:[%s3382] sm:$0xf]
      %v3384 = vld [vmem:[%s3382 + $0x4] sm:$0xf]
      %v3385 = vld [vmem:[%s3382 + $0x8] sm:$0xf]
      %v3386 = vld [vmem:[%s3382 + $0xc] sm:$0xf]
      %s3387 = scalar_lea.vmem %s839, 1
      %v3388 = vld [vmem:[%s3387] sm:$0x1]
      %v3390 = vlaneseq
      %v3391 = vshrl.u32 %v3390, 7
      %v3392 = vsub.s32 0, %v3391
      %v3393 = vrot.slane %v3388, %v3392
      %v3399 = vunpack.c.l.b16 %v3383
      %v3400 = vunpack.c.l.b16 %v3384
      %v3401 = vunpack.c.l.b16 %v3385
      %v3402 = vunpack.c.l.b16 %v3386
      %v3403 = vpack.c.b16 %v3400, %v3399
      %v3404 = vpack.c.b16 %v3402, %v3401
      %v3408 = vsel %vm874, %v3381, 0
      %3410 = vmatprep.subr.bf16.mxu0 0
      %3411 = vmatpush1.bf16.msra.mxu0 %v3403
      %3412 = vmatprep.subr.bf16.mxu0 0
      %3413 = vmatpush1.bf16.msra.mxu0 %v3404
      %3414 = vmatprep.subr.bf16.mxu0 0
      %3415 = vmatpush1.bf16.msra.mxu0 0
      %3416 = vmatprep.subr.bf16.mxu0 0
      %3417 = vmatpush1.bf16.msra.mxu0 0
      %3418 = vmatprep.subr.bf16.mxu0 0
      %3419 = vmatpush1.bf16.msra.mxu0 0
      %3420 = vmatprep.subr.bf16.mxu0 0
      %3421 = vmatpush1.bf16.msra.mxu0 0
      %3422 = vmatprep.subr.bf16.mxu0 0
      %3423 = vmatpush1.bf16.msra.mxu0 0
      %3424 = vmatprep.subr.bf16.mxu0 0
      %3425 = vmatpush1.bf16.msra.mxu0 0
      %3426 = vmatprep.subr.bf16.mxu0 0
      %3427 = vmatpush1.bf16.msra.mxu0 0
      %3428 = vmatprep.subr.bf16.mxu0 0
      %3429 = vmatpush1.bf16.msra.mxu0 0
      %3430 = vmatprep.subr.bf16.mxu0 0
      %3431 = vmatpush1.bf16.msra.mxu0 0
      %3432 = vmatprep.subr.bf16.mxu0 0
      %3433 = vmatpush1.bf16.msra.mxu0 0
      %3434 = vmatprep.subr.bf16.mxu0 0
      %3435 = vmatpush1.bf16.msra.mxu0 0
      %3436 = vmatprep.subr.bf16.mxu0 0
      %3437 = vmatpush1.bf16.msra.mxu0 0
      %3438 = vmatprep.subr.bf16.mxu0 0
      %3439 = vmatpush1.bf16.msra.mxu0 0
      %3440 = vmatprep.subr.bf16.mxu0 0
      %3441 = vmatpush1.bf16.msra.mxu0 0
      %3442 = vmatprep.mubr.bf16.mxu0 0
      %3443 = vmatmul.mubr.bf16.gmra.mrb[0].mxu0 %v3408
      %v3444 = vpop.f32.mrb[0].mxu0
      %v3445 = vadd.f32 %v3393, %v3444
      %v3446 = vpop.f32.mrb[0].mxu0
      %v3447 = vpop.f32.mrb[0].mxu0
      %v3448 = vadd.f32 %v3393, %v3447
      %v3449 = vpop.f32.mrb[0].mxu0
      %3450 = vdwg.mxu0
      %v3451 = vmul.f32 %v3445, 0.5
      %v3452 = vmul.f32 %v3448, 0.5
      %v3453 = vmul.f32 %v3445, 0.044715
      %v3454 = vmul.f32 %v3448, 0.044715
      %v3455 = vmul.f32 %v3453, %v3445
      %v3456 = vmul.f32 %v3454, %v3448
      %v3457 = vmul.f32 %v3455, %v3445
      %v3458 = vmul.f32 %v3456, %v3448
      %v3459 = vadd.f32 %v3445, %v3457
      %v3460 = vadd.f32 %v3448, %v3458
      %v3461 = vmul.f32 %v3459, 0.7978846
      %v3462 = vmul.f32 %v3460, 0.7978846
      %v3463 = vtanh.pop %v3461
      %v3464 = vtanh.pop %v3462
      %v3465 = vadd.f32 %v3463, 1.0
      %v3466 = vadd.f32 %v3464, 1.0
      %v3467 = vmul.f32 %v3451, %v3465
      %v3468 = vmul.f32 %v3452, %v3466
      %v3469 = vpack.c.bf16 %v3468, %v3467
      %s3470 = scalar_lea.vmem %s844, 32
      %v3471 = vld [vmem:[%s3470] sm:$0xf]
      %v3472 = vld [vmem:[%s3470 + $0x4] sm:$0xf]
      %v3473 = vld [vmem:[%s3470 + $0x8] sm:$0xf]
      %v3474 = vld [vmem:[%s3470 + $0xc] sm:$0xf]
      %v3475 = vld [vmem:[%s3470 + $0x10] sm:$0xf]
      %v3476 = vld [vmem:[%s3470 + $0x14] sm:$0xf]
      %v3477 = vld [vmem:[%s3470 + $0x18] sm:$0xf]
      %v3478 = vld [vmem:[%s3470 + $0x1c] sm:$0xf]
      %s3479 = scalar_lea.vmem %s848, 1
      %v3480 = vld [vmem:[%s3479] sm:$0x1]
      %v3482 = vlaneseq
      %v3483 = vshrl.u32 %v3482, 7
      %v3484 = vsub.s32 0, %v3483
      %v3485 = vrot.slane %v3480, %v3484
      %v3495 = vunpack.c.l.b16 %v3471
      %v3496 = vunpack.c.l.b16 %v3472
      %v3497 = vunpack.c.l.b16 %v3473
      %v3498 = vunpack.c.l.b16 %v3474
      %v3499 = vunpack.c.l.b16 %v3475
      %v3500 = vunpack.c.l.b16 %v3476
      %v3501 = vunpack.c.l.b16 %v3477
      %v3502 = vunpack.c.l.b16 %v3478
      %v3503 = vpack.c.b16 %v3496, %v3495
      %v3504 = vpack.c.b16 %v3498, %v3497
      %v3505 = vpack.c.b16 %v3500, %v3499
      %v3506 = vpack.c.b16 %v3502, %v3501
      %v3512 = vsel %vm2176, %v3469, 0
      %3514 = vmatprep.subr.bf16.mxu0 0
      %3515 = vmatpush1.bf16.msra.mxu0 %v3503
      %3516 = vmatprep.subr.bf16.mxu0 0
      %3517 = vmatpush1.bf16.msra.mxu0 %v3504
      %3518 = vmatprep.subr.bf16.mxu0 0
      %3519 = vmatpush1.bf16.msra.mxu0 %v3505
      %3520 = vmatprep.subr.bf16.mxu0 0
      %3521 = vmatpush1.bf16.msra.mxu0 %v3506
      %3522 = vmatprep.subr.bf16.mxu0 0
      %3523 = vmatpush1.bf16.msra.mxu0 0
      %3524 = vmatprep.subr.bf16.mxu0 0
      %3525 = vmatpush1.bf16.msra.mxu0 0
      %3526 = vmatprep.subr.bf16.mxu0 0
      %3527 = vmatpush1.bf16.msra.mxu0 0
      %3528 = vmatprep.subr.bf16.mxu0 0
      %3529 = vmatpush1.bf16.msra.mxu0 0
      %3530 = vmatprep.subr.bf16.mxu0 0
      %3531 = vmatpush1.bf16.msra.mxu0 0
      %3532 = vmatprep.subr.bf16.mxu0 0
      %3533 = vmatpush1.bf16.msra.mxu0 0
      %3534 = vmatprep.subr.bf16.mxu0 0
      %3535 = vmatpush1.bf16.msra.mxu0 0
      %3536 = vmatprep.subr.bf16.mxu0 0
      %3537 = vmatpush1.bf16.msra.mxu0 0
      %3538 = vmatprep.subr.bf16.mxu0 0
      %3539 = vmatpush1.bf16.msra.mxu0 0
      %3540 = vmatprep.subr.bf16.mxu0 0
      %3541 = vmatpush1.bf16.msra.mxu0 0
      %3542 = vmatprep.subr.bf16.mxu0 0
      %3543 = vmatpush1.bf16.msra.mxu0 0
      %3544 = vmatprep.subr.bf16.mxu0 0
      %3545 = vmatpush1.bf16.msra.mxu0 0
      %3546 = vmatprep.mubr.bf16.mxu0 0
      %3547 = vmatmul.mubr.bf16.gmra.mrb[0].mxu0 %v3512
      %v3548 = vpop.f32.mrb[0].mxu0
      %v3549 = vadd.f32 %v3485, %v3548
      %v3550 = vpop.f32.mrb[0].mxu0
      %v3551 = vpop.f32.mrb[0].mxu0
      %v3552 = vadd.f32 %v3485, %v3551
      %v3553 = vpop.f32.mrb[0].mxu0
      %3554 = vdwg.mxu0
      %v3555 = vadd.f32 %v3549, %v3379
      %v3556 = vadd.f32 %v3552, %v3380
      %s3557 = scalar_lea.vmem %s852, 1
      %v3558 = vld [vmem:[%s3557] sm:$0x1]
      %s3559 = scalar_lea.vmem %s856, 1
      %v3560 = vld [vmem:[%s3559] sm:$0x1]
      %v3561 = vsel %vm874, %v3555, 0.0
      %3562 = vadd.xlane.f32.xlu0 %v3561
      %v3563 = vpop.xlane.xlu0 %3562
      %v3564 = vsel %vm874, %v3556, 0.0
      %3565 = vadd.xlane.f32.xlu0 %v3564
      %v3566 = vpop.xlane.xlu0 %3565
      %v3567 = vmul.f32 %v3563, %v881
      %v3568 = vmul.f32 %v3566, %v881
      %v3569 = vsub.f32 %v3555, %v3567
      %v3570 = vsub.f32 %v3556, %v3568
      %v3571 = vmul.f32 %v3569, %v3569
      %v3572 = vmul.f32 %v3570, %v3570
      %v3573 = vsel %vm874, %v3571, 0.0
      %3574 = vadd.xlane.f32.xlu0 %v3573
      %v3575 = vpop.xlane.xlu0 %3574
      %v3576 = vsel %vm874, %v3572, 0.0
      %3577 = vadd.xlane.f32.xlu0 %v3576
      %v3578 = vpop.xlane.xlu0 %3577
      %v3579 = vmul.f32 %v3575, %v881
      %v3580 = vmul.f32 %v3578, %v881
      %v3581 = vadd.f32 %v3579, 1e-12
      %v3582 = vadd.f32 %v3580, 1e-12
      %v3583 = vrsqrt.pop %v3581
      %v3584 = vrsqrt.pop %v3582
      %v3585 = vmul.f32 %v3569, %v3583
      %v3586 = vmul.f32 %v3570, %v3584
      %v3588 = vlaneseq
      %v3589 = vshrl.u32 %v3588, 7
      %v3590 = vsub.s32 0, %v3589
      %v3591 = vrot.slane %v3558, %v3590
      %v3593 = vmul.f32 %v3585, %v3591
      %v3594 = vmul.f32 %v3586, %v3591
      %v3596 = vlaneseq
      %v3597 = vshrl.u32 %v3596, 7
      %v3598 = vsub.s32 0, %v3597
      %v3599 = vrot.slane %v3560, %v3598
      %v3601 = vadd.f32 %v3593, %v3599
      %v3602 = vadd.f32 %v3594, %v3599
      %v3603 = vlaneseq
      %v3604 = vand.u32 %v3603, 127
      %v3605 = vlaneseq
      %v3606 = vshrl.u32 %v3605, 7
      %v3607 = vmul.u32 %v3606, 8
      %vm3608 = vcmp.eq.s32.totalorder %v3604, %v3607
      %v3609 = vsel %vm3608, 1, 0
      %v3610 = vcvt.s32.f32 %v3609
      %v3612 = vsel %vm1930, %v3610, 0
      %3614 = vmatprep.subr.mxu0 0.0
      %3615 = vmatpush1.msra.mxu0 %v3601
      %3616 = vmatprep.subr.mxu0 0.0
      %3617 = vmatpush1.msra.mxu0 %v3602
      %3618 = vmatprep.subr.mxu0 0.0
      %3619 = vmatpush1.msra.mxu0 0.0
      %3620 = vmatprep.subr.mxu0 0.0
      %3621 = vmatpush1.msra.mxu0 0.0
      %3622 = vmatprep.subr.mxu0 0.0
      %3623 = vmatpush1.msra.mxu0 0.0
      %3624 = vmatprep.subr.mxu0 0.0
      %3625 = vmatpush1.msra.mxu0 0.0
      %3626 = vmatprep.subr.mxu0 0.0
      %3627 = vmatpush1.msra.mxu0 0.0
      %3628 = vmatprep.subr.mxu0 0.0
      %3629 = vmatpush1.msra.mxu0 0.0
      %3630 = vmatprep.subr.mxu0 0.0
      %3631 = vmatpush1.msra.mxu0 0.0
      %3632 = vmatprep.subr.mxu0 0.0
      %3633 = vmatpush1.msra.mxu0 0.0
      %3634 = vmatprep.subr.mxu0 0.0
      %3635 = vmatpush1.msra.mxu0 0.0
      %3636 = vmatprep.subr.mxu0 0.0
      %3637 = vmatpush1.msra.mxu0 0.0
      %3638 = vmatprep.subr.mxu0 0.0
      %3639 = vmatpush1.msra.mxu0 0.0
      %3640 = vmatprep.subr.mxu0 0.0
      %3641 = vmatpush1.msra.mxu0 0.0
      %3642 = vmatprep.subr.mxu0 0.0
      %3643 = vmatpush1.msra.mxu0 0.0
      %3644 = vmatprep.subr.mxu0 0.0
      %3645 = vmatpush1.msra.mxu0 0.0
      %3646 = vmatprep.subr.mxu0 0.0
      %3647 = vmatpush1.msra.mxu0 0.0
      %3648 = vmatprep.subr.mxu0 0.0
      %3649 = vmatpush1.msra.mxu0 0.0
      %3650 = vmatprep.subr.mxu0 0.0
      %3651 = vmatpush1.msra.mxu0 0.0
      %3652 = vmatprep.subr.mxu0 0.0
      %3653 = vmatpush1.msra.mxu0 0.0
      %3654 = vmatprep.subr.mxu0 0.0
      %3655 = vmatpush1.msra.mxu0 0.0
      %3656 = vmatprep.subr.mxu0 0.0
      %3657 = vmatpush1.msra.mxu0 0.0
      %3658 = vmatprep.subr.mxu0 0.0
      %3659 = vmatpush1.msra.mxu0 0.0
      %3660 = vmatprep.subr.mxu0 0.0
      %3661 = vmatpush1.msra.mxu0 0.0
      %3662 = vmatprep.subr.mxu0 0.0
      %3663 = vmatpush1.msra.mxu0 0.0
      %3664 = vmatprep.subr.mxu0 0.0
      %3665 = vmatpush1.msra.mxu0 0.0
      %3666 = vmatprep.subr.mxu0 0.0
      %3667 = vmatpush1.msra.mxu0 0.0
      %3668 = vmatprep.subr.mxu0 0.0
      %3669 = vmatpush1.msra.mxu0 0.0
      %3670 = vmatprep.subr.mxu0 0.0
      %3671 = vmatpush1.msra.mxu0 0.0
      %3672 = vmatprep.subr.mxu0 0.0
      %3673 = vmatpush1.msra.mxu0 0.0
      %3674 = vmatprep.subr.mxu0 0.0
      %3675 = vmatpush1.msra.mxu0 0.0
      %3676 = vmatprep.subr.mxu0 0.0
      %3677 = vmatpush1.msra.mxu0 0.0
      %3678 = vmatprep.mubr.f32.mxu0 0.0
      %3679 = vmatmul.mubr.f32.gmra.mrb[0].mxu0 %v3612
      %v3680 = vpop.f32.mrb[0].mxu0
      %v3681 = vadd.f32 0.0, %v3680
      %v3682 = vpop.f32.mrb[0].mxu0
      %3683 = vdwg.mxu0
      %v3684 = vpack.c.bf16 %v3681, %v3681
      %v3685 = vld [vmem:[%s861] sm:$0xf]
      %v3686 = vld [vmem:[%s861 + $0x4] sm:$0xf]
      %v3687 = vld [vmem:[%s861 + $0x8] sm:$0xf]
      %v3688 = vld [vmem:[%s861 + $0xc] sm:$0xf]
      %v3689 = vld [vmem:[%s864] sm:$0x1]
      %v3691 = vlaneseq
      %v3692 = vshrl.u32 %v3691, 7
      %v3693 = vsub.s32 0, %v3692
      %v3694 = vrot.slane %v3689, %v3693
      %v3700 = vunpack.c.l.b16 %v3685
      %v3701 = vunpack.c.l.b16 %v3686
      %v3702 = vunpack.c.l.b16 %v3687
      %v3703 = vunpack.c.l.b16 %v3688
      %v3704 = vpack.c.b16 %v3701, %v3700
      %v3705 = vpack.c.b16 %v3703, %v3702
      %v3709 = vsel %vm874, %v3684, 0
      %3711 = vmatprep.subr.bf16.mxu0 0
      %3712 = vmatpush1.bf16.msra.mxu0 %v3704
      %3713 = vmatprep.subr.bf16.mxu0 0
      %3714 = vmatpush1.bf16.msra.mxu0 %v3705
      %3715 = vmatprep.subr.bf16.mxu0 0
      %3716 = vmatpush1.bf16.msra.mxu0 0
      %3717 = vmatprep.subr.bf16.mxu0 0
      %3718 = vmatpush1.bf16.msra.mxu0 0
      %3719 = vmatprep.subr.bf16.mxu0 0
      %3720 = vmatpush1.bf16.msra.mxu0 0
      %3721 = vmatprep.subr.bf16.mxu0 0
      %3722 = vmatpush1.bf16.msra.mxu0 0
      %3723 = vmatprep.subr.bf16.mxu0 0
      %3724 = vmatpush1.bf16.msra.mxu0 0
      %3725 = vmatprep.subr.bf16.mxu0 0
      %3726 = vmatpush1.bf16.msra.mxu0 0
      %3727 = vmatprep.subr.bf16.mxu0 0
      %3728 = vmatpush1.bf16.msra.mxu0 0
      %3729 = vmatprep.subr.bf16.mxu0 0
      %3730 = vmatpush1.bf16.msra.mxu0 0
      %3731 = vmatprep.subr.bf16.mxu0 0
      %3732 = vmatpush1.bf16.msra.mxu0 0
      %3733 = vmatprep.subr.bf16.mxu0 0
      %3734 = vmatpush1.bf16.msra.mxu0 0
      %3735 = vmatprep.subr.bf16.mxu0 0
      %3736 = vmatpush1.bf16.msra.mxu0 0
      %3737 = vmatprep.subr.bf16.mxu0 0
      %3738 = vmatpush1.bf16.msra.mxu0 0
      %3739 = vmatprep.subr.bf16.mxu0 0
      %3740 = vmatpush1.bf16.msra.mxu0 0
      %3741 = vmatprep.subr.bf16.mxu0 0
      %3742 = vmatpush1.bf16.msra.mxu0 0
      %3743 = vmatprep.mubr.bf16.mxu0 0
      %3744 = vmatmul.mubr.bf16.gmra.mrb[0].mxu0 %v3709
      %v3745 = vpop.f32.mrb[0].mxu0
      %v3746 = vadd.f32 %v3694, %v3745
      %v3747 = vpop.f32.mrb[0].mxu0
      %v3748 = vpop.f32.mrb[0].mxu0
      %v3749 = vpop.f32.mrb[0].mxu0
      %3750 = vdwg.mxu0
      %v3751 = vtanh.pop %v3746
      %vm3752 = vcmask 254976
      %3753 = vst.msk [vmem:[%s868] sm:$0x3] %vm3752, %v3751
      %p3754 = scmp.lt.s32.totalorder %s29, 1
      %s3755 = scalar_select %p3754, %s29, 1
      %s3756 = smul.addr %s3755, 2
      %s3757 = scalar_lea.vmem %s18, %s3756
      // Predicated region
      $region93: #{monobert_forward.2} parent=91 // pred_check
        %p3758 = pneg %p515
      $region94: #{monobert_forward.2} parent=91 // pred_check_branch
        %3760 = sbr.rel (%p3758) target = $region96
      $region95: #{monobert_forward.2} parent=91 // pred_region
        _
      $region96: #{monobert_forward.2} parent=91 // pred_fallthru
        _
    $region92: #{monobert_forward.2} parent=5 // pred_fallthru
      _
    %p3761 = scmp.le.s32.totalorder 2, %s24
    // Predicated region
    $region97: #{monobert_forward.2} parent=5 // pred_check
      %p3762 = pneg %p3761
    $region98: #{monobert_forward.2} parent=5 // pred_check_branch
      %3764 = sbr.rel (%p3762) target = $region100
    $region99: #{monobert_forward.2} parent=5 // pred_region
      %s3765 = ssub.s32 %s24, 2
      // Predicated region
      $region101: #{monobert_forward.2} parent=99 // pred_check
        %p3766 = pneg %p521
      $region102: #{monobert_forward.2} parent=99 // pred_check_branch
        %3768 = sbr.rel (%p3766) target = $region104
      $region103: #{monobert_forward.2} parent=99 // pred_region
        %p3769 = scmp.lt.s32.totalorder %s30, 1
        %s3770 = scalar_select %p3769, %s30, 1
        %s3771 = smul.addr %s3770, 2
        %s3772 = scalar_lea.vmem %s18, %s3771
      $region104: #{monobert_forward.2} parent=99 // pred_fallthru
        _
    $region100: #{monobert_forward.2} parent=5 // pred_fallthru
      _
  $region6: #{monobert_forward.2} parent=0 // loop_footer
    %s28 = sadd.s32 1, %s24
  $region7: #{monobert_forward.2} parent=0 // loop_footer_branch
    %23 = sbr.rel target = $region3
  $region8: #{monobert_forward.2} parent=0 // loop_exit
    _

</llo_original>
